<compile_context>
chip_gen: v5e
topology: v5e:2x2
jax: 0.10.0
libtpu: 0.0.40
codegen_flags: <defaults>
</compile_context>

<pallas_src>
import functools

import jax
import jax.numpy as jnp
from jax import lax
from jax.experimental import pallas as pl
from jax.experimental.pallas import tpu as pltpu


# ----------------------------------------------------------------------------
# Pallas kernel: full Matcher forward
# ----------------------------------------------------------------------------
def _matcher_kernel(x_ref, wir_ref, wiz_ref, win_ref, br_ref, bz_ref, bnx_ref,
                    whr_ref, whz_ref, whn_ref, bhn_ref, wc_ref, bc_ref,
                    out_ref, gxr_ref, gxz_ref, gxn_ref, *, T, B, H):
    """4 GRU passes (PyTorch r,z,n semantics) + |h1-h2| combiner + softmax.

    x_ref       : (T*2B, H) time-major; row block t = [x1[:, t] ; x2[:, t]]
    wi*_ref     : (H, H)    per-gate input->hidden weights (r, z, n)
    br/bz_ref   : (1, H)    b_ih_r + b_hh_r / b_ih_z + b_hh_z (folded)
    bnx_ref     : (1, H)    b_ih_n (input-side n bias)
    wh*_ref     : (H, H)    per-gate hidden->hidden weights (r, z, n)
    bhn_ref     : (1, H)    b_hh_n (cannot be folded: it is scaled by r)
    wc_ref      : (H, 2), bc_ref : (1, 2) combiner
    gx*_ref     : (T*2B, H) VMEM scratch: hoisted per-gate input projections
    """
    B2 = 2 * B

    # ---- Hoisted input projection (128-row matmuls, done once, off the
    # serial chain; reused by all four GRU passes). Biases folded in.
    x = x_ref[...]                                               # (T*2B, H)
    gxr_ref[...] = jnp.dot(x, wir_ref[...],
                           preferred_element_type=jnp.float32) + br_ref[...]
    gxz_ref[...] = jnp.dot(x, wiz_ref[...],
                           preferred_element_type=jnp.float32) + bz_ref[...]
    gxn_ref[...] = jnp.dot(x, win_ref[...],
                           preferred_element_type=jnp.float32) + bnx_ref[...]

    def gru(h, row0, rows):
        # Fully unrolled (T static). Per step: only the three per-gate
        # h @ W_hh matmuls + gate math. No lane slicing; row slices of the
        # precomputed gx scratches are sublane-aligned static loads.
        w_r = whr_ref[...]
        w_z = whz_ref[...]
        w_n = whn_ref[...]
        b_n = jnp.broadcast_to(bhn_ref[...], (rows, H))          # hoisted
        for t in range(T):                                       # trace-time unroll
            lo = t * B2 + row0
            gh_r = jnp.dot(h, w_r, preferred_element_type=jnp.float32)
            gh_z = jnp.dot(h, w_z, preferred_element_type=jnp.float32)
            gh_n = jnp.dot(h, w_n, preferred_element_type=jnp.float32) + b_n
            r = jax.nn.sigmoid(gxr_ref[lo:lo + rows, :] + gh_r)
            z = jax.nn.sigmoid(gxz_ref[lo:lo + rows, :] + gh_z)
            n = jnp.tanh(gxn_ref[lo:lo + rows, :] + r * gh_n)
            h = (1.0 - z) * n + z * h
        return h

    # Matcher.forward:
    #   _, h1 = enc(x1, 0); _, h2 = enc(x2, 0)     -> independent: fused (2B rows)
    #   _, h1 = enc(x1, h2); _, h2 = enc(x2, h1)   -> serial
    h12 = gru(jnp.zeros((B2, H), jnp.float32), row0=0, rows=B2)
    h1 = h12[:B, :]
    h2 = h12[B:, :]
    h1 = gru(h2, row0=0, rows=B)          # pass 3: x1, init = hidden2
    h2 = gru(h1, row0=B, rows=B)          # pass 4: x2, init = hidden1

    # combiner + softmax (F.softmax on a 2D tensor -> dim=1)
    d = jnp.abs(h1 - h2)                                         # (B, H)
    logits = jnp.dot(d, wc_ref[...],
                     preferred_element_type=jnp.float32) + bc_ref[...]
    logits = logits - jnp.max(logits, axis=-1, keepdims=True)
    e = jnp.exp(logits)
    out_ref[...] = e / jnp.sum(e, axis=-1, keepdims=True)


# ----------------------------------------------------------------------------
# Wrapper
# ----------------------------------------------------------------------------
@jax.jit
def matcher_forward(ids1, ids2, params):
    emb = params["embedding"]                        # (vocab, H)
    H = emb.shape[1]
    B, T = ids1.shape

    # Embedding lookup (gather) — glue, plain JAX.
    x1 = jnp.take(emb, ids1, axis=0).astype(jnp.float32)   # (B, T, H)
    x2 = jnp.take(emb, ids2, axis=0).astype(jnp.float32)

    # Time-major, batch-stacked activations: row block t = [x1[:, t] ; x2[:, t]]
    x12 = jnp.concatenate(
        [jnp.transpose(x1, (1, 0, 2)), jnp.transpose(x2, (1, 0, 2))], axis=1
    ).reshape(T * 2 * B, H)                                 # (T*2B, H)

    # Per-gate weight / bias splits (wrapper-side glue; gate order r, z, n).
    w_ih, w_hh = params["w_ih_t"], params["w_hh_t"]         # (H, 3H) each
    b_ih, b_hh = params["b_ih"], params["b_hh"]             # (1, 3H) each
    w_ih_r, w_ih_z, w_ih_n = (w_ih[:, :H], w_ih[:, H:2 * H], w_ih[:, 2 * H:])
    w_hh_r, w_hh_z, w_hh_n = (w_hh[:, :H], w_hh[:, H:2 * H], w_hh[:, 2 * H:])
    b_r = b_ih[:, :H] + b_hh[:, :H]                 # r-gate biases fold
    b_z = b_ih[:, H:2 * H] + b_hh[:, H:2 * H]       # z-gate biases fold
    b_nx = b_ih[:, 2 * H:]                          # input-side n bias
    b_hn = b_hh[:, 2 * H:]                          # hidden-side n bias (kept)

    # Advisory cost estimate (helps XLA schedule around the call).
    flops = (2 * (T * 2 * B) * H * 3 * H            # hoisted projection
             + 2 * T * (4 * B) * H * 3 * H          # recurrent h @ W_hh
             + 2 * B * H * 2)                       # combiner
    transcendentals = T * (4 * B) * 3 * H + 2 * B
    bytes_accessed = 4 * (x12.size + w_ih.size + w_hh.size + b_ih.size
                          + b_hh.size + params["w_c_t"].size
                          + params["b_c"].size + B * 2)

    vmem = pl.BlockSpec(memory_space=pltpu.MemorySpace.VMEM)
    kernel = functools.partial(_matcher_kernel, T=T, B=B, H=H)
    return pl.pallas_call(
        kernel,
        out_shape=jax.ShapeDtypeStruct((B, 2), jnp.float32),
        in_specs=[vmem] * 13,
        out_specs=vmem,
        scratch_shapes=[pltpu.VMEM((T * 2 * B, H), jnp.float32)] * 3,
        cost_estimate=pl.CostEstimate(flops=flops,
                                      transcendentals=transcendentals,
                                      bytes_accessed=bytes_accessed),
    )(x12, w_ih_r, w_ih_z, w_ih_n, b_r, b_z, b_nx,
      w_hh_r, w_hh_z, w_hh_n, b_hn, params["w_c_t"], params["b_c"])


# ----------------------------------------------------------------------------
# Pure-JAX reference (mirrors the PyTorch module) for validation
# ----------------------------------------------------------------------------
def matcher_reference(ids1, ids2, params):
    emb = params["embedding"]
    H = emb.shape[1]
    w_ih, w_hh = params["w_ih_t"], params["w_hh_t"]
    b_ih, b_hh = params["b_ih"], params["b_hh"]

    def gru(x, h0):                                   # x: (B, T, H)
        def step(h, x_t):
            gx = x_t @ w_ih + b_ih
            gh = h @ w_hh + b_hh
            r = jax.nn.sigmoid(gx[:, :H] + gh[:, :H])
            z = jax.nn.sigmoid(gx[:, H:2 * H] + gh[:, H:2 * H])
            n = jnp.tanh(gx[:, 2 * H:] + r * gh[:, 2 * H:])
            h_new = (1.0 - z) * n + z * h
            return h_new, None
        h_fin, _ = lax.scan(step, h0, jnp.transpose(x, (1, 0, 2)))
        return h_fin

    x1 = jnp.take(emb, ids1, axis=0)
    x2 = jnp.take(emb, ids2, axis=0)
    B = ids1.shape[0]
    z = jnp.zeros((B, H), jnp.float32)
    h1 = gru(x1, z)
    h2 = gru(x2, z)
    h1 = gru(x1, h2)
    h2 = gru(x2, h1)
    logits = jnp.abs(h1 - h2) @ params["w_c_t"] + params["b_c"]
    return jax.nn.softmax(logits, axis=-1)


# ----------------------------------------------------------------------------
# Deterministic parameter init + run
# ----------------------------------------------------------------------------
def init_params(key, vocab, hidden):
    ks = jax.random.split(key, 7)
    u = lambda k, shape, s=0.1: jax.random.uniform(k, shape, jnp.float32, -s, s)
    embedding = u(ks[0], (vocab, hidden))
    embedding = embedding.at[0].set(0.0)              # padding_idx=0 row
    return {
        "embedding": embedding,
        # PyTorch GRU weight_ih_l0 is (3H, H); store transposed (H, 3H)
        "w_ih_t": u(ks[1], (hidden, 3 * hidden)),
        "w_hh_t": u(ks[2], (hidden, 3 * hidden)),
        "b_ih": u(ks[3], (1, 3 * hidden)),
        "b_hh": u(ks[4], (1, 3 * hidden)),
        # nn.Linear(hidden, 2): weight (2, H) -> store transposed (H, 2)
        "w_c_t": u(ks[5], (hidden, 2)),
        "b_c": u(ks[6], (1, 2)),
    }


if __name__ == "__main__":
    VOCAB, HIDDEN, BATCH, SEQ = 50, 32, 8, 8

    key = jax.random.PRNGKey(0)
    kp, k1, k2 = jax.random.split(key, 3)
    params = init_params(kp, VOCAB, HIDDEN)

    input_1 = jax.random.randint(k1, (BATCH, SEQ), 0, VOCAB, dtype=jnp.int32)
    input_2 = jax.random.randint(k2, (BATCH, SEQ), 0, VOCAB, dtype=jnp.int32)

    out = jax.block_until_ready(matcher_forward(input_1, input_2, params))
    ref = jax.block_until_ready(matcher_reference(input_1, input_2, params))
    assert out.shape == (BATCH, 2), out.shape
    assert jnp.allclose(out, ref, atol=1e-5, rtol=1e-5), (out, ref)

    print("KERNEL_OK")
</pallas_src>

<mosaic_0001>
module attributes {stable_mosaic.version = 11 : i64} {
  func.func @_matcher_kernel(%arg0: memref<128x32xf32, #tpu.memory_space<vmem>>, %arg1: memref<32x32xf32, #tpu.memory_space<vmem>>, %arg2: memref<32x32xf32, #tpu.memory_space<vmem>>, %arg3: memref<32x32xf32, #tpu.memory_space<vmem>>, %arg4: memref<1x32xf32, #tpu.memory_space<vmem>>, %arg5: memref<1x32xf32, #tpu.memory_space<vmem>>, %arg6: memref<1x32xf32, #tpu.memory_space<vmem>>, %arg7: memref<32x32xf32, #tpu.memory_space<vmem>>, %arg8: memref<32x32xf32, #tpu.memory_space<vmem>>, %arg9: memref<32x32xf32, #tpu.memory_space<vmem>>, %arg10: memref<1x32xf32, #tpu.memory_space<vmem>>, %arg11: memref<32x2xf32, #tpu.memory_space<vmem>>, %arg12: memref<1x2xf32, #tpu.memory_space<vmem>>, %arg13: memref<8x2xf32, #tpu.memory_space<vmem>>, %arg14: memref<128x32xf32, #tpu.memory_space<vmem>>, %arg15: memref<128x32xf32, #tpu.memory_space<vmem>>, %arg16: memref<128x32xf32, #tpu.memory_space<vmem>>) attributes {dimension_semantics = [], scalar_prefetch = 0 : i64, scratch_operands = 3 : i64, tpu.core_type = #tpu.core_type<tc>} {
    %c0 = arith.constant 0 : index
    %c0_0 = arith.constant 0 : index
    %0 = vector.load %arg0[%c0, %c0_0] : memref<128x32xf32, #tpu.memory_space<vmem>>, vector<128x32xf32>
    %c0_1 = arith.constant 0 : index
    %c0_2 = arith.constant 0 : index
    %1 = vector.load %arg1[%c0_1, %c0_2] : memref<32x32xf32, #tpu.memory_space<vmem>>, vector<32x32xf32>
    %cst = arith.constant dense<0.000000e+00> : vector<128x32xf32>
    %2 = tpu.matmul %0, %1, %cst {dimension_numbers = #tpu.dot_dimension_numbers<[1], [0], [0], [1], [0, 0, 1, 1], [], []>} : vector<128x32xf32>, vector<32x32xf32>, vector<128x32xf32> -> vector<128x32xf32>
    %c0_3 = arith.constant 0 : index
    %c0_4 = arith.constant 0 : index
    %3 = vector.load %arg4[%c0_3, %c0_4] : memref<1x32xf32, #tpu.memory_space<vmem>>, vector<1x32xf32>
    %4 = vector.broadcast %3 : vector<1x32xf32> to vector<128x32xf32>
    %5 = arith.addf %2, %4 : vector<128x32xf32>
    %c0_5 = arith.constant 0 : index
    %c0_6 = arith.constant 0 : index
    %6 = vector.load %arg14[%c0_5, %c0_6] : memref<128x32xf32, #tpu.memory_space<vmem>>, vector<128x32xf32>
    tpu.vector_store %arg14[%c0_5, %c0_6], %5 {strides = array<i32>} : memref<128x32xf32, #tpu.memory_space<vmem>>, vector<128x32xf32>,
    %c0_7 = arith.constant 0 : index
    %c0_8 = arith.constant 0 : index
    %7 = vector.load %arg2[%c0_7, %c0_8] : memref<32x32xf32, #tpu.memory_space<vmem>>, vector<32x32xf32>
    %cst_9 = arith.constant dense<0.000000e+00> : vector<128x32xf32>
    %8 = tpu.matmul %0, %7, %cst_9 {dimension_numbers = #tpu.dot_dimension_numbers<[1], [0], [0], [1], [0, 0, 1, 1], [], []>} : vector<128x32xf32>, vector<32x32xf32>, vector<128x32xf32> -> vector<128x32xf32>
    %c0_10 = arith.constant 0 : index
    %c0_11 = arith.constant 0 : index
    %9 = vector.load %arg5[%c0_10, %c0_11] : memref<1x32xf32, #tpu.memory_space<vmem>>, vector<1x32xf32>
    %10 = vector.broadcast %9 : vector<1x32xf32> to vector<128x32xf32>
    %11 = arith.addf %8, %10 : vector<128x32xf32>
    %c0_12 = arith.constant 0 : index
    %c0_13 = arith.constant 0 : index
    %12 = vector.load %arg15[%c0_12, %c0_13] : memref<128x32xf32, #tpu.memory_space<vmem>>, vector<128x32xf32>
    tpu.vector_store %arg15[%c0_12, %c0_13], %11 {strides = array<i32>} : memref<128x32xf32, #tpu.memory_space<vmem>>, vector<128x32xf32>,
    %c0_14 = arith.constant 0 : index
    %c0_15 = arith.constant 0 : index
    %13 = vector.load %arg3[%c0_14, %c0_15] : memref<32x32xf32, #tpu.memory_space<vmem>>, vector<32x32xf32>
    %cst_16 = arith.constant dense<0.000000e+00> : vector<128x32xf32>
    %14 = tpu.matmul %0, %13, %cst_16 {dimension_numbers = #tpu.dot_dimension_numbers<[1], [0], [0], [1], [0, 0, 1, 1], [], []>} : vector<128x32xf32>, vector<32x32xf32>, vector<128x32xf32> -> vector<128x32xf32>
    %c0_17 = arith.constant 0 : index
    %c0_18 = arith.constant 0 : index
    %15 = vector.load %arg6[%c0_17, %c0_18] : memref<1x32xf32, #tpu.memory_space<vmem>>, vector<1x32xf32>
    %16 = vector.broadcast %15 : vector<1x32xf32> to vector<128x32xf32>
    %17 = arith.addf %14, %16 : vector<128x32xf32>
    %c0_19 = arith.constant 0 : index
    %c0_20 = arith.constant 0 : index
    %18 = vector.load %arg16[%c0_19, %c0_20] : memref<128x32xf32, #tpu.memory_space<vmem>>, vector<128x32xf32>
    tpu.vector_store %arg16[%c0_19, %c0_20], %17 {strides = array<i32>} : memref<128x32xf32, #tpu.memory_space<vmem>>, vector<128x32xf32>,
    %cst_21 = arith.constant 0.000000e+00 : f32
    %19 = vector.broadcast %cst_21 : f32 to vector<16x32xf32>
    %c0_22 = arith.constant 0 : index
    %c0_23 = arith.constant 0 : index
    %20 = vector.load %arg7[%c0_22, %c0_23] : memref<32x32xf32, #tpu.memory_space<vmem>>, vector<32x32xf32>
    %c0_24 = arith.constant 0 : index
    %c0_25 = arith.constant 0 : index
    %21 = vector.load %arg8[%c0_24, %c0_25] : memref<32x32xf32, #tpu.memory_space<vmem>>, vector<32x32xf32>
    %c0_26 = arith.constant 0 : index
    %c0_27 = arith.constant 0 : index
    %22 = vector.load %arg9[%c0_26, %c0_27] : memref<32x32xf32, #tpu.memory_space<vmem>>, vector<32x32xf32>
    %c0_28 = arith.constant 0 : index
    %c0_29 = arith.constant 0 : index
    %23 = vector.load %arg10[%c0_28, %c0_29] : memref<1x32xf32, #tpu.memory_space<vmem>>, vector<1x32xf32>
    %24 = vector.shape_cast %23 : vector<1x32xf32> to vector<1x32xf32>
    %25 = vector.broadcast %24 : vector<1x32xf32> to vector<16x32xf32>
    %cst_30 = arith.constant dense<0.000000e+00> : vector<16x32xf32>
    %26 = tpu.matmul %19, %20, %cst_30 {dimension_numbers = #tpu.dot_dimension_numbers<[1], [0], [0], [1], [0, 0, 1, 1], [], []>} : vector<16x32xf32>, vector<32x32xf32>, vector<16x32xf32> -> vector<16x32xf32>
    %cst_31 = arith.constant dense<0.000000e+00> : vector<16x32xf32>
    %27 = tpu.matmul %19, %21, %cst_31 {dimension_numbers = #tpu.dot_dimension_numbers<[1], [0], [0], [1], [0, 0, 1, 1], [], []>} : vector<16x32xf32>, vector<32x32xf32>, vector<16x32xf32> -> vector<16x32xf32>
    %cst_32 = arith.constant dense<0.000000e+00> : vector<16x32xf32>
    %28 = tpu.matmul %19, %22, %cst_32 {dimension_numbers = #tpu.dot_dimension_numbers<[1], [0], [0], [1], [0, 0, 1, 1], [], []>} : vector<16x32xf32>, vector<32x32xf32>, vector<16x32xf32> -> vector<16x32xf32>
    %29 = arith.addf %28, %25 : vector<16x32xf32>
    %c0_33 = arith.constant 0 : index
    %c0_34 = arith.constant 0 : index
    %30 = vector.load %arg14[%c0_33, %c0_34] : memref<128x32xf32, #tpu.memory_space<vmem>>, vector<16x32xf32>
    %31 = arith.addf %30, %26 : vector<16x32xf32>
    %32 = arith.negf %31 : vector<16x32xf32>
    %33 = math.exp %32 : vector<16x32xf32>
    %cst_35 = arith.constant 1.000000e+00 : f32
    %34 = vector.broadcast %cst_35 : f32 to vector<16x32xf32>
    %35 = arith.addf %34, %33 : vector<16x32xf32>
    %36 = arith.divf %34, %35 : vector<16x32xf32>
    %c0_36 = arith.constant 0 : index
    %c0_37 = arith.constant 0 : index
    %37 = vector.load %arg15[%c0_36, %c0_37] : memref<128x32xf32, #tpu.memory_space<vmem>>, vector<16x32xf32>
    %38 = arith.addf %37, %27 : vector<16x32xf32>
    %39 = arith.negf %38 : vector<16x32xf32>
    %40 = math.exp %39 : vector<16x32xf32>
    %cst_38 = arith.constant 1.000000e+00 : f32
    %41 = vector.broadcast %cst_38 : f32 to vector<16x32xf32>
    %42 = arith.addf %41, %40 : vector<16x32xf32>
    %43 = arith.divf %41, %42 : vector<16x32xf32>
    %c0_39 = arith.constant 0 : index
    %c0_40 = arith.constant 0 : index
    %44 = vector.load %arg16[%c0_39, %c0_40] : memref<128x32xf32, #tpu.memory_space<vmem>>, vector<16x32xf32>
    %45 = arith.mulf %36, %29 : vector<16x32xf32>
    %46 = arith.addf %44, %45 : vector<16x32xf32>
    %47 = math.tanh %46 : vector<16x32xf32>
    %cst_41 = arith.constant 1.000000e+00 : f32
    %48 = vector.broadcast %cst_41 : f32 to vector<16x32xf32>
    %49 = arith.subf %48, %43 : vector<16x32xf32>
    %50 = arith.mulf %49, %47 : vector<16x32xf32>
    %51 = arith.mulf %43, %19 : vector<16x32xf32>
    %52 = arith.addf %50, %51 : vector<16x32xf32>
    %cst_42 = arith.constant dense<0.000000e+00> : vector<16x32xf32>
    %53 = tpu.matmul %52, %20, %cst_42 {dimension_numbers = #tpu.dot_dimension_numbers<[1], [0], [0], [1], [0, 0, 1, 1], [], []>} : vector<16x32xf32>, vector<32x32xf32>, vector<16x32xf32> -> vector<16x32xf32>
    %cst_43 = arith.constant dense<0.000000e+00> : vector<16x32xf32>
    %54 = tpu.matmul %52, %21, %cst_43 {dimension_numbers = #tpu.dot_dimension_numbers<[1], [0], [0], [1], [0, 0, 1, 1], [], []>} : vector<16x32xf32>, vector<32x32xf32>, vector<16x32xf32> -> vector<16x32xf32>
    %cst_44 = arith.constant dense<0.000000e+00> : vector<16x32xf32>
    %55 = tpu.matmul %52, %22, %cst_44 {dimension_numbers = #tpu.dot_dimension_numbers<[1], [0], [0], [1], [0, 0, 1, 1], [], []>} : vector<16x32xf32>, vector<32x32xf32>, vector<16x32xf32> -> vector<16x32xf32>
    %56 = arith.addf %55, %25 : vector<16x32xf32>
    %c16 = arith.constant 16 : index
    %c0_45 = arith.constant 0 : index
    %57 = vector.load %arg14[%c16, %c0_45] : memref<128x32xf32, #tpu.memory_space<vmem>>, vector<16x32xf32>
    %58 = arith.addf %57, %53 : vector<16x32xf32>
    %59 = arith.negf %58 : vector<16x32xf32>
    %60 = math.exp %59 : vector<16x32xf32>
    %cst_46 = arith.constant 1.000000e+00 : f32
    %61 = vector.broadcast %cst_46 : f32 to vector<16x32xf32>
    %62 = arith.addf %61, %60 : vector<16x32xf32>
    %63 = arith.divf %61, %62 : vector<16x32xf32>
    %c16_47 = arith.constant 16 : index
    %c0_48 = arith.constant 0 : index
    %64 = vector.load %arg15[%c16_47, %c0_48] : memref<128x32xf32, #tpu.memory_space<vmem>>, vector<16x32xf32>
    %65 = arith.addf %64, %54 : vector<16x32xf32>
    %66 = arith.negf %65 : vector<16x32xf32>
    %67 = math.exp %66 : vector<16x32xf32>
    %cst_49 = arith.constant 1.000000e+00 : f32
    %68 = vector.broadcast %cst_49 : f32 to vector<16x32xf32>
    %69 = arith.addf %68, %67 : vector<16x32xf32>
    %70 = arith.divf %68, %69 : vector<16x32xf32>
    %c16_50 = arith.constant 16 : index
    %c0_51 = arith.constant 0 : index
    %71 = vector.load %arg16[%c16_50, %c0_51] : memref<128x32xf32, #tpu.memory_space<vmem>>, vector<16x32xf32>
    %72 = arith.mulf %63, %56 : vector<16x32xf32>
    %73 = arith.addf %71, %72 : vector<16x32xf32>
    %74 = math.tanh %73 : vector<16x32xf32>
    %cst_52 = arith.constant 1.000000e+00 : f32
    %75 = vector.broadcast %cst_52 : f32 to vector<16x32xf32>
    %76 = arith.subf %75, %70 : vector<16x32xf32>
    %77 = arith.mulf %76, %74 : vector<16x32xf32>
    %78 = arith.mulf %70, %52 : vector<16x32xf32>
    %79 = arith.addf %77, %78 : vector<16x32xf32>
    %cst_53 = arith.constant dense<0.000000e+00> : vector<16x32xf32>
    %80 = tpu.matmul %79, %20, %cst_53 {dimension_numbers = #tpu.dot_dimension_numbers<[1], [0], [0], [1], [0, 0, 1, 1], [], []>} : vector<16x32xf32>, vector<32x32xf32>, vector<16x32xf32> -> vector<16x32xf32>
    %cst_54 = arith.constant dense<0.000000e+00> : vector<16x32xf32>
    %81 = tpu.matmul %79, %21, %cst_54 {dimension_numbers = #tpu.dot_dimension_numbers<[1], [0], [0], [1], [0, 0, 1, 1], [], []>} : vector<16x32xf32>, vector<32x32xf32>, vector<16x32xf32> -> vector<16x32xf32>
    %cst_55 = arith.constant dense<0.000000e+00> : vector<16x32xf32>
    %82 = tpu.matmul %79, %22, %cst_55 {dimension_numbers = #tpu.dot_dimension_numbers<[1], [0], [0], [1], [0, 0, 1, 1], [], []>} : vector<16x32xf32>, vector<32x32xf32>, vector<16x32xf32> -> vector<16x32xf32>
    %83 = arith.addf %82, %25 : vector<16x32xf32>
    %c32 = arith.constant 32 : index
    %c0_56 = arith.constant 0 : index
    %84 = vector.load %arg14[%c32, %c0_56] : memref<128x32xf32, #tpu.memory_space<vmem>>, vector<16x32xf32>
    %85 = arith.addf %84, %80 : vector<16x32xf32>
    %86 = arith.negf %85 : vector<16x32xf32>
    %87 = math.exp %86 : vector<16x32xf32>
    %cst_57 = arith.constant 1.000000e+00 : f32
    %88 = vector.broadcast %cst_57 : f32 to vector<16x32xf32>
    %89 = arith.addf %88, %87 : vector<16x32xf32>
    %90 = arith.divf %88, %89 : vector<16x32xf32>
    %c32_58 = arith.constant 32 : index
    %c0_59 = arith.constant 0 : index
    %91 = vector.load %arg15[%c32_58, %c0_59] : memref<128x32xf32, #tpu.memory_space<vmem>>, vector<16x32xf32>
    %92 = arith.addf %91, %81 : vector<16x32xf32>
    %93 = arith.negf %92 : vector<16x32xf32>
    %94 = math.exp %93 : vector<16x32xf32>
    %cst_60 = arith.constant 1.000000e+00 : f32
    %95 = vector.broadcast %cst_60 : f32 to vector<16x32xf32>
    %96 = arith.addf %95, %94 : vector<16x32xf32>
    %97 = arith.divf %95, %96 : vector<16x32xf32>
    %c32_61 = arith.constant 32 : index
    %c0_62 = arith.constant 0 : index
    %98 = vector.load %arg16[%c32_61, %c0_62] : memref<128x32xf32, #tpu.memory_space<vmem>>, vector<16x32xf32>
    %99 = arith.mulf %90, %83 : vector<16x32xf32>
    %100 = arith.addf %98, %99 : vector<16x32xf32>
    %101 = math.tanh %100 : vector<16x32xf32>
    %cst_63 = arith.constant 1.000000e+00 : f32
    %102 = vector.broadcast %cst_63 : f32 to vector<16x32xf32>
    %103 = arith.subf %102, %97 : vector<16x32xf32>
    %104 = arith.mulf %103, %101 : vector<16x32xf32>
    %105 = arith.mulf %97, %79 : vector<16x32xf32>
    %106 = arith.addf %104, %105 : vector<16x32xf32>
    %cst_64 = arith.constant dense<0.000000e+00> : vector<16x32xf32>
    %107 = tpu.matmul %106, %20, %cst_64 {dimension_numbers = #tpu.dot_dimension_numbers<[1], [0], [0], [1], [0, 0, 1, 1], [], []>} : vector<16x32xf32>, vector<32x32xf32>, vector<16x32xf32> -> vector<16x32xf32>
    %cst_65 = arith.constant dense<0.000000e+00> : vector<16x32xf32>
    %108 = tpu.matmul %106, %21, %cst_65 {dimension_numbers = #tpu.dot_dimension_numbers<[1], [0], [0], [1], [0, 0, 1, 1], [], []>} : vector<16x32xf32>, vector<32x32xf32>, vector<16x32xf32> -> vector<16x32xf32>
    %cst_66 = arith.constant dense<0.000000e+00> : vector<16x32xf32>
    %109 = tpu.matmul %106, %22, %cst_66 {dimension_numbers = #tpu.dot_dimension_numbers<[1], [0], [0], [1], [0, 0, 1, 1], [], []>} : vector<16x32xf32>, vector<32x32xf32>, vector<16x32xf32> -> vector<16x32xf32>
    %110 = arith.addf %109, %25 : vector<16x32xf32>
    %c48 = arith.constant 48 : index
    %c0_67 = arith.constant 0 : index
    %111 = vector.load %arg14[%c48, %c0_67] : memref<128x32xf32, #tpu.memory_space<vmem>>, vector<16x32xf32>
    %112 = arith.addf %111, %107 : vector<16x32xf32>
    %113 = arith.negf %112 : vector<16x32xf32>
    %114 = math.exp %113 : vector<16x32xf32>
    %cst_68 = arith.constant 1.000000e+00 : f32
    %115 = vector.broadcast %cst_68 : f32 to vector<16x32xf32>
    %116 = arith.addf %115, %114 : vector<16x32xf32>
    %117 = arith.divf %115, %116 : vector<16x32xf32>
    %c48_69 = arith.constant 48 : index
    %c0_70 = arith.constant 0 : index
    %118 = vector.load %arg15[%c48_69, %c0_70] : memref<128x32xf32, #tpu.memory_space<vmem>>, vector<16x32xf32>
    %119 = arith.addf %118, %108 : vector<16x32xf32>
    %120 = arith.negf %119 : vector<16x32xf32>
    %121 = math.exp %120 : vector<16x32xf32>
    %cst_71 = arith.constant 1.000000e+00 : f32
    %122 = vector.broadcast %cst_71 : f32 to vector<16x32xf32>
    %123 = arith.addf %122, %121 : vector<16x32xf32>
    %124 = arith.divf %122, %123 : vector<16x32xf32>
    %c48_72 = arith.constant 48 : index
    %c0_73 = arith.constant 0 : index
    %125 = vector.load %arg16[%c48_72, %c0_73] : memref<128x32xf32, #tpu.memory_space<vmem>>, vector<16x32xf32>
    %126 = arith.mulf %117, %110 : vector<16x32xf32>
    %127 = arith.addf %125, %126 : vector<16x32xf32>
    %128 = math.tanh %127 : vector<16x32xf32>
    %cst_74 = arith.constant 1.000000e+00 : f32
    %129 = vector.broadcast %cst_74 : f32 to vector<16x32xf32>
    %130 = arith.subf %129, %124 : vector<16x32xf32>
    %131 = arith.mulf %130, %128 : vector<16x32xf32>
    %132 = arith.mulf %124, %106 : vector<16x32xf32>
    %133 = arith.addf %131, %132 : vector<16x32xf32>
    %cst_75 = arith.constant dense<0.000000e+00> : vector<16x32xf32>
    %134 = tpu.matmul %133, %20, %cst_75 {dimension_numbers = #tpu.dot_dimension_numbers<[1], [0], [0], [1], [0, 0, 1, 1], [], []>} : vector<16x32xf32>, vector<32x32xf32>, vector<16x32xf32> -> vector<16x32xf32>
    %cst_76 = arith.constant dense<0.000000e+00> : vector<16x32xf32>
    %135 = tpu.matmul %133, %21, %cst_76 {dimension_numbers = #tpu.dot_dimension_numbers<[1], [0], [0], [1], [0, 0, 1, 1], [], []>} : vector<16x32xf32>, vector<32x32xf32>, vector<16x32xf32> -> vector<16x32xf32>
    %cst_77 = arith.constant dense<0.000000e+00> : vector<16x32xf32>
    %136 = tpu.matmul %133, %22, %cst_77 {dimension_numbers = #tpu.dot_dimension_numbers<[1], [0], [0], [1], [0, 0, 1, 1], [], []>} : vector<16x32xf32>, vector<32x32xf32>, vector<16x32xf32> -> vector<16x32xf32>
    %137 = arith.addf %136, %25 : vector<16x32xf32>
    %c64 = arith.constant 64 : index
    %c0_78 = arith.constant 0 : index
    %138 = vector.load %arg14[%c64, %c0_78] : memref<128x32xf32, #tpu.memory_space<vmem>>, vector<16x32xf32>
    %139 = arith.addf %138, %134 : vector<16x32xf32>
    %140 = arith.negf %139 : vector<16x32xf32>
    %141 = math.exp %140 : vector<16x32xf32>
    %cst_79 = arith.constant 1.000000e+00 : f32
    %142 = vector.broadcast %cst_79 : f32 to vector<16x32xf32>
    %143 = arith.addf %142, %141 : vector<16x32xf32>
    %144 = arith.divf %142, %143 : vector<16x32xf32>
    %c64_80 = arith.constant 64 : index
    %c0_81 = arith.constant 0 : index
    %145 = vector.load %arg15[%c64_80, %c0_81] : memref<128x32xf32, #tpu.memory_space<vmem>>, vector<16x32xf32>
    %146 = arith.addf %145, %135 : vector<16x32xf32>
    %147 = arith.negf %146 : vector<16x32xf32>
    %148 = math.exp %147 : vector<16x32xf32>
    %cst_82 = arith.constant 1.000000e+00 : f32
    %149 = vector.broadcast %cst_82 : f32 to vector<16x32xf32>
    %150 = arith.addf %149, %148 : vector<16x32xf32>
    %151 = arith.divf %149, %150 : vector<16x32xf32>
    %c64_83 = arith.constant 64 : index
    %c0_84 = arith.constant 0 : index
    %152 = vector.load %arg16[%c64_83, %c0_84] : memref<128x32xf32, #tpu.memory_space<vmem>>, vector<16x32xf32>
    %153 = arith.mulf %144, %137 : vector<16x32xf32>
    %154 = arith.addf %152, %153 : vector<16x32xf32>
    %155 = math.tanh %154 : vector<16x32xf32>
    %cst_85 = arith.constant 1.000000e+00 : f32
    %156 = vector.broadcast %cst_85 : f32 to vector<16x32xf32>
    %157 = arith.subf %156, %151 : vector<16x32xf32>
    %158 = arith.mulf %157, %155 : vector<16x32xf32>
    %159 = arith.mulf %151, %133 : vector<16x32xf32>
    %160 = arith.addf %158, %159 : vector<16x32xf32>
    %cst_86 = arith.constant dense<0.000000e+00> : vector<16x32xf32>
    %161 = tpu.matmul %160, %20, %cst_86 {dimension_numbers = #tpu.dot_dimension_numbers<[1], [0], [0], [1], [0, 0, 1, 1], [], []>} : vector<16x32xf32>, vector<32x32xf32>, vector<16x32xf32> -> vector<16x32xf32>
    %cst_87 = arith.constant dense<0.000000e+00> : vector<16x32xf32>
    %162 = tpu.matmul %160, %21, %cst_87 {dimension_numbers = #tpu.dot_dimension_numbers<[1], [0], [0], [1], [0, 0, 1, 1], [], []>} : vector<16x32xf32>, vector<32x32xf32>, vector<16x32xf32> -> vector<16x32xf32>
    %cst_88 = arith.constant dense<0.000000e+00> : vector<16x32xf32>
    %163 = tpu.matmul %160, %22, %cst_88 {dimension_numbers = #tpu.dot_dimension_numbers<[1], [0], [0], [1], [0, 0, 1, 1], [], []>} : vector<16x32xf32>, vector<32x32xf32>, vector<16x32xf32> -> vector<16x32xf32>
    %164 = arith.addf %163, %25 : vector<16x32xf32>
    %c80 = arith.constant 80 : index
    %c0_89 = arith.constant 0 : index
    %165 = vector.load %arg14[%c80, %c0_89] : memref<128x32xf32, #tpu.memory_space<vmem>>, vector<16x32xf32>
    %166 = arith.addf %165, %161 : vector<16x32xf32>
    %167 = arith.negf %166 : vector<16x32xf32>
    %168 = math.exp %167 : vector<16x32xf32>
    %cst_90 = arith.constant 1.000000e+00 : f32
    %169 = vector.broadcast %cst_90 : f32 to vector<16x32xf32>
    %170 = arith.addf %169, %168 : vector<16x32xf32>
    %171 = arith.divf %169, %170 : vector<16x32xf32>
    %c80_91 = arith.constant 80 : index
    %c0_92 = arith.constant 0 : index
    %172 = vector.load %arg15[%c80_91, %c0_92] : memref<128x32xf32, #tpu.memory_space<vmem>>, vector<16x32xf32>
    %173 = arith.addf %172, %162 : vector<16x32xf32>
    %174 = arith.negf %173 : vector<16x32xf32>
    %175 = math.exp %174 : vector<16x32xf32>
    %cst_93 = arith.constant 1.000000e+00 : f32
    %176 = vector.broadcast %cst_93 : f32 to vector<16x32xf32>
    %177 = arith.addf %176, %175 : vector<16x32xf32>
    %178 = arith.divf %176, %177 : vector<16x32xf32>
    %c80_94 = arith.constant 80 : index
    %c0_95 = arith.constant 0 : index
    %179 = vector.load %arg16[%c80_94, %c0_95] : memref<128x32xf32, #tpu.memory_space<vmem>>, vector<16x32xf32>
    %180 = arith.mulf %171, %164 : vector<16x32xf32>
    %181 = arith.addf %179, %180 : vector<16x32xf32>
    %182 = math.tanh %181 : vector<16x32xf32>
    %cst_96 = arith.constant 1.000000e+00 : f32
    %183 = vector.broadcast %cst_96 : f32 to vector<16x32xf32>
    %184 = arith.subf %183, %178 : vector<16x32xf32>
    %185 = arith.mulf %184, %182 : vector<16x32xf32>
    %186 = arith.mulf %178, %160 : vector<16x32xf32>
    %187 = arith.addf %185, %186 : vector<16x32xf32>
    %cst_97 = arith.constant dense<0.000000e+00> : vector<16x32xf32>
    %188 = tpu.matmul %187, %20, %cst_97 {dimension_numbers = #tpu.dot_dimension_numbers<[1], [0], [0], [1], [0, 0, 1, 1], [], []>} : vector<16x32xf32>, vector<32x32xf32>, vector<16x32xf32> -> vector<16x32xf32>
    %cst_98 = arith.constant dense<0.000000e+00> : vector<16x32xf32>
    %189 = tpu.matmul %187, %21, %cst_98 {dimension_numbers = #tpu.dot_dimension_numbers<[1], [0], [0], [1], [0, 0, 1, 1], [], []>} : vector<16x32xf32>, vector<32x32xf32>, vector<16x32xf32> -> vector<16x32xf32>
    %cst_99 = arith.constant dense<0.000000e+00> : vector<16x32xf32>
    %190 = tpu.matmul %187, %22, %cst_99 {dimension_numbers = #tpu.dot_dimension_numbers<[1], [0], [0], [1], [0, 0, 1, 1], [], []>} : vector<16x32xf32>, vector<32x32xf32>, vector<16x32xf32> -> vector<16x32xf32>
    %191 = arith.addf %190, %25 : vector<16x32xf32>
    %c96 = arith.constant 96 : index
    %c0_100 = arith.constant 0 : index
    %192 = vector.load %arg14[%c96, %c0_100] : memref<128x32xf32, #tpu.memory_space<vmem>>, vector<16x32xf32>
    %193 = arith.addf %192, %188 : vector<16x32xf32>
    %194 = arith.negf %193 : vector<16x32xf32>
    %195 = math.exp %194 : vector<16x32xf32>
    %cst_101 = arith.constant 1.000000e+00 : f32
    %196 = vector.broadcast %cst_101 : f32 to vector<16x32xf32>
    %197 = arith.addf %196, %195 : vector<16x32xf32>
    %198 = arith.divf %196, %197 : vector<16x32xf32>
    %c96_102 = arith.constant 96 : index
    %c0_103 = arith.constant 0 : index
    %199 = vector.load %arg15[%c96_102, %c0_103] : memref<128x32xf32, #tpu.memory_space<vmem>>, vector<16x32xf32>
    %200 = arith.addf %199, %189 : vector<16x32xf32>
    %201 = arith.negf %200 : vector<16x32xf32>
    %202 = math.exp %201 : vector<16x32xf32>
    %cst_104 = arith.constant 1.000000e+00 : f32
    %203 = vector.broadcast %cst_104 : f32 to vector<16x32xf32>
    %204 = arith.addf %203, %202 : vector<16x32xf32>
    %205 = arith.divf %203, %204 : vector<16x32xf32>
    %c96_105 = arith.constant 96 : index
    %c0_106 = arith.constant 0 : index
    %206 = vector.load %arg16[%c96_105, %c0_106] : memref<128x32xf32, #tpu.memory_space<vmem>>, vector<16x32xf32>
    %207 = arith.mulf %198, %191 : vector<16x32xf32>
    %208 = arith.addf %206, %207 : vector<16x32xf32>
    %209 = math.tanh %208 : vector<16x32xf32>
    %cst_107 = arith.constant 1.000000e+00 : f32
    %210 = vector.broadcast %cst_107 : f32 to vector<16x32xf32>
    %211 = arith.subf %210, %205 : vector<16x32xf32>
    %212 = arith.mulf %211, %209 : vector<16x32xf32>
    %213 = arith.mulf %205, %187 : vector<16x32xf32>
    %214 = arith.addf %212, %213 : vector<16x32xf32>
    %cst_108 = arith.constant dense<0.000000e+00> : vector<16x32xf32>
    %215 = tpu.matmul %214, %20, %cst_108 {dimension_numbers = #tpu.dot_dimension_numbers<[1], [0], [0], [1], [0, 0, 1, 1], [], []>} : vector<16x32xf32>, vector<32x32xf32>, vector<16x32xf32> -> vector<16x32xf32>
    %cst_109 = arith.constant dense<0.000000e+00> : vector<16x32xf32>
    %216 = tpu.matmul %214, %21, %cst_109 {dimension_numbers = #tpu.dot_dimension_numbers<[1], [0], [0], [1], [0, 0, 1, 1], [], []>} : vector<16x32xf32>, vector<32x32xf32>, vector<16x32xf32> -> vector<16x32xf32>
    %cst_110 = arith.constant dense<0.000000e+00> : vector<16x32xf32>
    %217 = tpu.matmul %214, %22, %cst_110 {dimension_numbers = #tpu.dot_dimension_numbers<[1], [0], [0], [1], [0, 0, 1, 1], [], []>} : vector<16x32xf32>, vector<32x32xf32>, vector<16x32xf32> -> vector<16x32xf32>
    %218 = arith.addf %217, %25 : vector<16x32xf32>
    %c112 = arith.constant 112 : index
    %c0_111 = arith.constant 0 : index
    %219 = vector.load %arg14[%c112, %c0_111] : memref<128x32xf32, #tpu.memory_space<vmem>>, vector<16x32xf32>
    %220 = arith.addf %219, %215 : vector<16x32xf32>
    %221 = arith.negf %220 : vector<16x32xf32>
    %222 = math.exp %221 : vector<16x32xf32>
    %cst_112 = arith.constant 1.000000e+00 : f32
    %223 = vector.broadcast %cst_112 : f32 to vector<16x32xf32>
    %224 = arith.addf %223, %222 : vector<16x32xf32>
    %225 = arith.divf %223, %224 : vector<16x32xf32>
    %c112_113 = arith.constant 112 : index
    %c0_114 = arith.constant 0 : index
    %226 = vector.load %arg15[%c112_113, %c0_114] : memref<128x32xf32, #tpu.memory_space<vmem>>, vector<16x32xf32>
    %227 = arith.addf %226, %216 : vector<16x32xf32>
    %228 = arith.negf %227 : vector<16x32xf32>
    %229 = math.exp %228 : vector<16x32xf32>
    %cst_115 = arith.constant 1.000000e+00 : f32
    %230 = vector.broadcast %cst_115 : f32 to vector<16x32xf32>
    %231 = arith.addf %230, %229 : vector<16x32xf32>
    %232 = arith.divf %230, %231 : vector<16x32xf32>
    %c112_116 = arith.constant 112 : index
    %c0_117 = arith.constant 0 : index
    %233 = vector.load %arg16[%c112_116, %c0_117] : memref<128x32xf32, #tpu.memory_space<vmem>>, vector<16x32xf32>
    %234 = arith.mulf %225, %218 : vector<16x32xf32>
    %235 = arith.addf %233, %234 : vector<16x32xf32>
    %236 = math.tanh %235 : vector<16x32xf32>
    %cst_118 = arith.constant 1.000000e+00 : f32
    %237 = vector.broadcast %cst_118 : f32 to vector<16x32xf32>
    %238 = arith.subf %237, %232 : vector<16x32xf32>
    %239 = arith.mulf %238, %236 : vector<16x32xf32>
    %240 = arith.mulf %232, %214 : vector<16x32xf32>
    %241 = arith.addf %239, %240 : vector<16x32xf32>
    %242 = vector.extract_strided_slice %241 {offsets = [8, 0], sizes = [8, 32], strides = [1, 1]} : vector<16x32xf32> to vector<8x32xf32>
    %c0_119 = arith.constant 0 : index
    %c0_120 = arith.constant 0 : index
    %243 = vector.load %arg7[%c0_119, %c0_120] : memref<32x32xf32, #tpu.memory_space<vmem>>, vector<32x32xf32>
    %c0_121 = arith.constant 0 : index
    %c0_122 = arith.constant 0 : index
    %244 = vector.load %arg8[%c0_121, %c0_122] : memref<32x32xf32, #tpu.memory_space<vmem>>, vector<32x32xf32>
    %c0_123 = arith.constant 0 : index
    %c0_124 = arith.constant 0 : index
    %245 = vector.load %arg9[%c0_123, %c0_124] : memref<32x32xf32, #tpu.memory_space<vmem>>, vector<32x32xf32>
    %c0_125 = arith.constant 0 : index
    %c0_126 = arith.constant 0 : index
    %246 = vector.load %arg10[%c0_125, %c0_126] : memref<1x32xf32, #tpu.memory_space<vmem>>, vector<1x32xf32>
    %247 = vector.shape_cast %246 : vector<1x32xf32> to vector<1x32xf32>
    %248 = vector.broadcast %247 : vector<1x32xf32> to vector<8x32xf32>
    %cst_127 = arith.constant dense<0.000000e+00> : vector<8x32xf32>
    %249 = tpu.matmul %242, %243, %cst_127 {dimension_numbers = #tpu.dot_dimension_numbers<[1], [0], [0], [1], [0, 0, 1, 1], [], []>} : vector<8x32xf32>, vector<32x32xf32>, vector<8x32xf32> -> vector<8x32xf32>
    %cst_128 = arith.constant dense<0.000000e+00> : vector<8x32xf32>
    %250 = tpu.matmul %242, %244, %cst_128 {dimension_numbers = #tpu.dot_dimension_numbers<[1], [0], [0], [1], [0, 0, 1, 1], [], []>} : vector<8x32xf32>, vector<32x32xf32>, vector<8x32xf32> -> vector<8x32xf32>
    %cst_129 = arith.constant dense<0.000000e+00> : vector<8x32xf32>
    %251 = tpu.matmul %242, %245, %cst_129 {dimension_numbers = #tpu.dot_dimension_numbers<[1], [0], [0], [1], [0, 0, 1, 1], [], []>} : vector<8x32xf32>, vector<32x32xf32>, vector<8x32xf32> -> vector<8x32xf32>
    %252 = arith.addf %251, %248 : vector<8x32xf32>
    %c0_130 = arith.constant 0 : index
    %c0_131 = arith.constant 0 : index
    %253 = vector.load %arg14[%c0_130, %c0_131] : memref<128x32xf32, #tpu.memory_space<vmem>>, vector<8x32xf32>
    %254 = arith.addf %253, %249 : vector<8x32xf32>
    %255 = arith.negf %254 : vector<8x32xf32>
    %256 = math.exp %255 : vector<8x32xf32>
    %cst_132 = arith.constant 1.000000e+00 : f32
    %257 = vector.broadcast %cst_132 : f32 to vector<8x32xf32>
    %258 = arith.addf %257, %256 : vector<8x32xf32>
    %259 = arith.divf %257, %258 : vector<8x32xf32>
    %c0_133 = arith.constant 0 : index
    %c0_134 = arith.constant 0 : index
    %260 = vector.load %arg15[%c0_133, %c0_134] : memref<128x32xf32, #tpu.memory_space<vmem>>, vector<8x32xf32>
    %261 = arith.addf %260, %250 : vector<8x32xf32>
    %262 = arith.negf %261 : vector<8x32xf32>
    %263 = math.exp %262 : vector<8x32xf32>
    %cst_135 = arith.constant 1.000000e+00 : f32
    %264 = vector.broadcast %cst_135 : f32 to vector<8x32xf32>
    %265 = arith.addf %264, %263 : vector<8x32xf32>
    %266 = arith.divf %264, %265 : vector<8x32xf32>
    %c0_136 = arith.constant 0 : index
    %c0_137 = arith.constant 0 : index
    %267 = vector.load %arg16[%c0_136, %c0_137] : memref<128x32xf32, #tpu.memory_space<vmem>>, vector<8x32xf32>
    %268 = arith.mulf %259, %252 : vector<8x32xf32>
    %269 = arith.addf %267, %268 : vector<8x32xf32>
    %270 = math.tanh %269 : vector<8x32xf32>
    %cst_138 = arith.constant 1.000000e+00 : f32
    %271 = vector.broadcast %cst_138 : f32 to vector<8x32xf32>
    %272 = arith.subf %271, %266 : vector<8x32xf32>
    %273 = arith.mulf %272, %270 : vector<8x32xf32>
    %274 = arith.mulf %266, %242 : vector<8x32xf32>
    %275 = arith.addf %273, %274 : vector<8x32xf32>
    %cst_139 = arith.constant dense<0.000000e+00> : vector<8x32xf32>
    %276 = tpu.matmul %275, %243, %cst_139 {dimension_numbers = #tpu.dot_dimension_numbers<[1], [0], [0], [1], [0, 0, 1, 1], [], []>} : vector<8x32xf32>, vector<32x32xf32>, vector<8x32xf32> -> vector<8x32xf32>
    %cst_140 = arith.constant dense<0.000000e+00> : vector<8x32xf32>
    %277 = tpu.matmul %275, %244, %cst_140 {dimension_numbers = #tpu.dot_dimension_numbers<[1], [0], [0], [1], [0, 0, 1, 1], [], []>} : vector<8x32xf32>, vector<32x32xf32>, vector<8x32xf32> -> vector<8x32xf32>
    %cst_141 = arith.constant dense<0.000000e+00> : vector<8x32xf32>
    %278 = tpu.matmul %275, %245, %cst_141 {dimension_numbers = #tpu.dot_dimension_numbers<[1], [0], [0], [1], [0, 0, 1, 1], [], []>} : vector<8x32xf32>, vector<32x32xf32>, vector<8x32xf32> -> vector<8x32xf32>
    %279 = arith.addf %278, %248 : vector<8x32xf32>
    %c16_142 = arith.constant 16 : index
    %c0_143 = arith.constant 0 : index
    %280 = vector.load %arg14[%c16_142, %c0_143] : memref<128x32xf32, #tpu.memory_space<vmem>>, vector<8x32xf32>
    %281 = arith.addf %280, %276 : vector<8x32xf32>
    %282 = arith.negf %281 : vector<8x32xf32>
    %283 = math.exp %282 : vector<8x32xf32>
    %cst_144 = arith.constant 1.000000e+00 : f32
    %284 = vector.broadcast %cst_144 : f32 to vector<8x32xf32>
    %285 = arith.addf %284, %283 : vector<8x32xf32>
    %286 = arith.divf %284, %285 : vector<8x32xf32>
    %c16_145 = arith.constant 16 : index
    %c0_146 = arith.constant 0 : index
    %287 = vector.load %arg15[%c16_145, %c0_146] : memref<128x32xf32, #tpu.memory_space<vmem>>, vector<8x32xf32>
    %288 = arith.addf %287, %277 : vector<8x32xf32>
    %289 = arith.negf %288 : vector<8x32xf32>
    %290 = math.exp %289 : vector<8x32xf32>
    %cst_147 = arith.constant 1.000000e+00 : f32
    %291 = vector.broadcast %cst_147 : f32 to vector<8x32xf32>
    %292 = arith.addf %291, %290 : vector<8x32xf32>
    %293 = arith.divf %291, %292 : vector<8x32xf32>
    %c16_148 = arith.constant 16 : index
    %c0_149 = arith.constant 0 : index
    %294 = vector.load %arg16[%c16_148, %c0_149] : memref<128x32xf32, #tpu.memory_space<vmem>>, vector<8x32xf32>
    %295 = arith.mulf %286, %279 : vector<8x32xf32>
    %296 = arith.addf %294, %295 : vector<8x32xf32>
    %297 = math.tanh %296 : vector<8x32xf32>
    %cst_150 = arith.constant 1.000000e+00 : f32
    %298 = vector.broadcast %cst_150 : f32 to vector<8x32xf32>
    %299 = arith.subf %298, %293 : vector<8x32xf32>
    %300 = arith.mulf %299, %297 : vector<8x32xf32>
    %301 = arith.mulf %293, %275 : vector<8x32xf32>
    %302 = arith.addf %300, %301 : vector<8x32xf32>
    %cst_151 = arith.constant dense<0.000000e+00> : vector<8x32xf32>
    %303 = tpu.matmul %302, %243, %cst_151 {dimension_numbers = #tpu.dot_dimension_numbers<[1], [0], [0], [1], [0, 0, 1, 1], [], []>} : vector<8x32xf32>, vector<32x32xf32>, vector<8x32xf32> -> vector<8x32xf32>
    %cst_152 = arith.constant dense<0.000000e+00> : vector<8x32xf32>
    %304 = tpu.matmul %302, %244, %cst_152 {dimension_numbers = #tpu.dot_dimension_numbers<[1], [0], [0], [1], [0, 0, 1, 1], [], []>} : vector<8x32xf32>, vector<32x32xf32>, vector<8x32xf32> -> vector<8x32xf32>
    %cst_153 = arith.constant dense<0.000000e+00> : vector<8x32xf32>
    %305 = tpu.matmul %302, %245, %cst_153 {dimension_numbers = #tpu.dot_dimension_numbers<[1], [0], [0], [1], [0, 0, 1, 1], [], []>} : vector<8x32xf32>, vector<32x32xf32>, vector<8x32xf32> -> vector<8x32xf32>
    %306 = arith.addf %305, %248 : vector<8x32xf32>
    %c32_154 = arith.constant 32 : index
    %c0_155 = arith.constant 0 : index
    %307 = vector.load %arg14[%c32_154, %c0_155] : memref<128x32xf32, #tpu.memory_space<vmem>>, vector<8x32xf32>
    %308 = arith.addf %307, %303 : vector<8x32xf32>
    %309 = arith.negf %308 : vector<8x32xf32>
    %310 = math.exp %309 : vector<8x32xf32>
    %cst_156 = arith.constant 1.000000e+00 : f32
    %311 = vector.broadcast %cst_156 : f32 to vector<8x32xf32>
    %312 = arith.addf %311, %310 : vector<8x32xf32>
    %313 = arith.divf %311, %312 : vector<8x32xf32>
    %c32_157 = arith.constant 32 : index
    %c0_158 = arith.constant 0 : index
    %314 = vector.load %arg15[%c32_157, %c0_158] : memref<128x32xf32, #tpu.memory_space<vmem>>, vector<8x32xf32>
    %315 = arith.addf %314, %304 : vector<8x32xf32>
    %316 = arith.negf %315 : vector<8x32xf32>
    %317 = math.exp %316 : vector<8x32xf32>
    %cst_159 = arith.constant 1.000000e+00 : f32
    %318 = vector.broadcast %cst_159 : f32 to vector<8x32xf32>
    %319 = arith.addf %318, %317 : vector<8x32xf32>
    %320 = arith.divf %318, %319 : vector<8x32xf32>
    %c32_160 = arith.constant 32 : index
    %c0_161 = arith.constant 0 : index
    %321 = vector.load %arg16[%c32_160, %c0_161] : memref<128x32xf32, #tpu.memory_space<vmem>>, vector<8x32xf32>
    %322 = arith.mulf %313, %306 : vector<8x32xf32>
    %323 = arith.addf %321, %322 : vector<8x32xf32>
    %324 = math.tanh %323 : vector<8x32xf32>
    %cst_162 = arith.constant 1.000000e+00 : f32
    %325 = vector.broadcast %cst_162 : f32 to vector<8x32xf32>
    %326 = arith.subf %325, %320 : vector<8x32xf32>
    %327 = arith.mulf %326, %324 : vector<8x32xf32>
    %328 = arith.mulf %320, %302 : vector<8x32xf32>
    %329 = arith.addf %327, %328 : vector<8x32xf32>
    %cst_163 = arith.constant dense<0.000000e+00> : vector<8x32xf32>
    %330 = tpu.matmul %329, %243, %cst_163 {dimension_numbers = #tpu.dot_dimension_numbers<[1], [0], [0], [1], [0, 0, 1, 1], [], []>} : vector<8x32xf32>, vector<32x32xf32>, vector<8x32xf32> -> vector<8x32xf32>
    %cst_164 = arith.constant dense<0.000000e+00> : vector<8x32xf32>
    %331 = tpu.matmul %329, %244, %cst_164 {dimension_numbers = #tpu.dot_dimension_numbers<[1], [0], [0], [1], [0, 0, 1, 1], [], []>} : vector<8x32xf32>, vector<32x32xf32>, vector<8x32xf32> -> vector<8x32xf32>
    %cst_165 = arith.constant dense<0.000000e+00> : vector<8x32xf32>
    %332 = tpu.matmul %329, %245, %cst_165 {dimension_numbers = #tpu.dot_dimension_numbers<[1], [0], [0], [1], [0, 0, 1, 1], [], []>} : vector<8x32xf32>, vector<32x32xf32>, vector<8x32xf32> -> vector<8x32xf32>
    %333 = arith.addf %332, %248 : vector<8x32xf32>
    %c48_166 = arith.constant 48 : index
    %c0_167 = arith.constant 0 : index
    %334 = vector.load %arg14[%c48_166, %c0_167] : memref<128x32xf32, #tpu.memory_space<vmem>>, vector<8x32xf32>
    %335 = arith.addf %334, %330 : vector<8x32xf32>
    %336 = arith.negf %335 : vector<8x32xf32>
    %337 = math.exp %336 : vector<8x32xf32>
    %cst_168 = arith.constant 1.000000e+00 : f32
    %338 = vector.broadcast %cst_168 : f32 to vector<8x32xf32>
    %339 = arith.addf %338, %337 : vector<8x32xf32>
    %340 = arith.divf %338, %339 : vector<8x32xf32>
    %c48_169 = arith.constant 48 : index
    %c0_170 = arith.constant 0 : index
    %341 = vector.load %arg15[%c48_169, %c0_170] : memref<128x32xf32, #tpu.memory_space<vmem>>, vector<8x32xf32>
    %342 = arith.addf %341, %331 : vector<8x32xf32>
    %343 = arith.negf %342 : vector<8x32xf32>
    %344 = math.exp %343 : vector<8x32xf32>
    %cst_171 = arith.constant 1.000000e+00 : f32
    %345 = vector.broadcast %cst_171 : f32 to vector<8x32xf32>
    %346 = arith.addf %345, %344 : vector<8x32xf32>
    %347 = arith.divf %345, %346 : vector<8x32xf32>
    %c48_172 = arith.constant 48 : index
    %c0_173 = arith.constant 0 : index
    %348 = vector.load %arg16[%c48_172, %c0_173] : memref<128x32xf32, #tpu.memory_space<vmem>>, vector<8x32xf32>
    %349 = arith.mulf %340, %333 : vector<8x32xf32>
    %350 = arith.addf %348, %349 : vector<8x32xf32>
    %351 = math.tanh %350 : vector<8x32xf32>
    %cst_174 = arith.constant 1.000000e+00 : f32
    %352 = vector.broadcast %cst_174 : f32 to vector<8x32xf32>
    %353 = arith.subf %352, %347 : vector<8x32xf32>
    %354 = arith.mulf %353, %351 : vector<8x32xf32>
    %355 = arith.mulf %347, %329 : vector<8x32xf32>
    %356 = arith.addf %354, %355 : vector<8x32xf32>
    %cst_175 = arith.constant dense<0.000000e+00> : vector<8x32xf32>
    %357 = tpu.matmul %356, %243, %cst_175 {dimension_numbers = #tpu.dot_dimension_numbers<[1], [0], [0], [1], [0, 0, 1, 1], [], []>} : vector<8x32xf32>, vector<32x32xf32>, vector<8x32xf32> -> vector<8x32xf32>
    %cst_176 = arith.constant dense<0.000000e+00> : vector<8x32xf32>
    %358 = tpu.matmul %356, %244, %cst_176 {dimension_numbers = #tpu.dot_dimension_numbers<[1], [0], [0], [1], [0, 0, 1, 1], [], []>} : vector<8x32xf32>, vector<32x32xf32>, vector<8x32xf32> -> vector<8x32xf32>
    %cst_177 = arith.constant dense<0.000000e+00> : vector<8x32xf32>
    %359 = tpu.matmul %356, %245, %cst_177 {dimension_numbers = #tpu.dot_dimension_numbers<[1], [0], [0], [1], [0, 0, 1, 1], [], []>} : vector<8x32xf32>, vector<32x32xf32>, vector<8x32xf32> -> vector<8x32xf32>
    %360 = arith.addf %359, %248 : vector<8x32xf32>
    %c64_178 = arith.constant 64 : index
    %c0_179 = arith.constant 0 : index
    %361 = vector.load %arg14[%c64_178, %c0_179] : memref<128x32xf32, #tpu.memory_space<vmem>>, vector<8x32xf32>
    %362 = arith.addf %361, %357 : vector<8x32xf32>
    %363 = arith.negf %362 : vector<8x32xf32>
    %364 = math.exp %363 : vector<8x32xf32>
    %cst_180 = arith.constant 1.000000e+00 : f32
    %365 = vector.broadcast %cst_180 : f32 to vector<8x32xf32>
    %366 = arith.addf %365, %364 : vector<8x32xf32>
    %367 = arith.divf %365, %366 : vector<8x32xf32>
    %c64_181 = arith.constant 64 : index
    %c0_182 = arith.constant 0 : index
    %368 = vector.load %arg15[%c64_181, %c0_182] : memref<128x32xf32, #tpu.memory_space<vmem>>, vector<8x32xf32>
    %369 = arith.addf %368, %358 : vector<8x32xf32>
    %370 = arith.negf %369 : vector<8x32xf32>
    %371 = math.exp %370 : vector<8x32xf32>
    %cst_183 = arith.constant 1.000000e+00 : f32
    %372 = vector.broadcast %cst_183 : f32 to vector<8x32xf32>
    %373 = arith.addf %372, %371 : vector<8x32xf32>
    %374 = arith.divf %372, %373 : vector<8x32xf32>
    %c64_184 = arith.constant 64 : index
    %c0_185 = arith.constant 0 : index
    %375 = vector.load %arg16[%c64_184, %c0_185] : memref<128x32xf32, #tpu.memory_space<vmem>>, vector<8x32xf32>
    %376 = arith.mulf %367, %360 : vector<8x32xf32>
    %377 = arith.addf %375, %376 : vector<8x32xf32>
    %378 = math.tanh %377 : vector<8x32xf32>
    %cst_186 = arith.constant 1.000000e+00 : f32
    %379 = vector.broadcast %cst_186 : f32 to vector<8x32xf32>
    %380 = arith.subf %379, %374 : vector<8x32xf32>
    %381 = arith.mulf %380, %378 : vector<8x32xf32>
    %382 = arith.mulf %374, %356 : vector<8x32xf32>
    %383 = arith.addf %381, %382 : vector<8x32xf32>
    %cst_187 = arith.constant dense<0.000000e+00> : vector<8x32xf32>
    %384 = tpu.matmul %383, %243, %cst_187 {dimension_numbers = #tpu.dot_dimension_numbers<[1], [0], [0], [1], [0, 0, 1, 1], [], []>} : vector<8x32xf32>, vector<32x32xf32>, vector<8x32xf32> -> vector<8x32xf32>
    %cst_188 = arith.constant dense<0.000000e+00> : vector<8x32xf32>
    %385 = tpu.matmul %383, %244, %cst_188 {dimension_numbers = #tpu.dot_dimension_numbers<[1], [0], [0], [1], [0, 0, 1, 1], [], []>} : vector<8x32xf32>, vector<32x32xf32>, vector<8x32xf32> -> vector<8x32xf32>
    %cst_189 = arith.constant dense<0.000000e+00> : vector<8x32xf32>
    %386 = tpu.matmul %383, %245, %cst_189 {dimension_numbers = #tpu.dot_dimension_numbers<[1], [0], [0], [1], [0, 0, 1, 1], [], []>} : vector<8x32xf32>, vector<32x32xf32>, vector<8x32xf32> -> vector<8x32xf32>
    %387 = arith.addf %386, %248 : vector<8x32xf32>
    %c80_190 = arith.constant 80 : index
    %c0_191 = arith.constant 0 : index
    %388 = vector.load %arg14[%c80_190, %c0_191] : memref<128x32xf32, #tpu.memory_space<vmem>>, vector<8x32xf32>
    %389 = arith.addf %388, %384 : vector<8x32xf32>
    %390 = arith.negf %389 : vector<8x32xf32>
    %391 = math.exp %390 : vector<8x32xf32>
    %cst_192 = arith.constant 1.000000e+00 : f32
    %392 = vector.broadcast %cst_192 : f32 to vector<8x32xf32>
    %393 = arith.addf %392, %391 : vector<8x32xf32>
    %394 = arith.divf %392, %393 : vector<8x32xf32>
    %c80_193 = arith.constant 80 : index
    %c0_194 = arith.constant 0 : index
    %395 = vector.load %arg15[%c80_193, %c0_194] : memref<128x32xf32, #tpu.memory_space<vmem>>, vector<8x32xf32>
    %396 = arith.addf %395, %385 : vector<8x32xf32>
    %397 = arith.negf %396 : vector<8x32xf32>
    %398 = math.exp %397 : vector<8x32xf32>
    %cst_195 = arith.constant 1.000000e+00 : f32
    %399 = vector.broadcast %cst_195 : f32 to vector<8x32xf32>
    %400 = arith.addf %399, %398 : vector<8x32xf32>
    %401 = arith.divf %399, %400 : vector<8x32xf32>
    %c80_196 = arith.constant 80 : index
    %c0_197 = arith.constant 0 : index
    %402 = vector.load %arg16[%c80_196, %c0_197] : memref<128x32xf32, #tpu.memory_space<vmem>>, vector<8x32xf32>
    %403 = arith.mulf %394, %387 : vector<8x32xf32>
    %404 = arith.addf %402, %403 : vector<8x32xf32>
    %405 = math.tanh %404 : vector<8x32xf32>
    %cst_198 = arith.constant 1.000000e+00 : f32
    %406 = vector.broadcast %cst_198 : f32 to vector<8x32xf32>
    %407 = arith.subf %406, %401 : vector<8x32xf32>
    %408 = arith.mulf %407, %405 : vector<8x32xf32>
    %409 = arith.mulf %401, %383 : vector<8x32xf32>
    %410 = arith.addf %408, %409 : vector<8x32xf32>
    %cst_199 = arith.constant dense<0.000000e+00> : vector<8x32xf32>
    %411 = tpu.matmul %410, %243, %cst_199 {dimension_numbers = #tpu.dot_dimension_numbers<[1], [0], [0], [1], [0, 0, 1, 1], [], []>} : vector<8x32xf32>, vector<32x32xf32>, vector<8x32xf32> -> vector<8x32xf32>
    %cst_200 = arith.constant dense<0.000000e+00> : vector<8x32xf32>
    %412 = tpu.matmul %410, %244, %cst_200 {dimension_numbers = #tpu.dot_dimension_numbers<[1], [0], [0], [1], [0, 0, 1, 1], [], []>} : vector<8x32xf32>, vector<32x32xf32>, vector<8x32xf32> -> vector<8x32xf32>
    %cst_201 = arith.constant dense<0.000000e+00> : vector<8x32xf32>
    %413 = tpu.matmul %410, %245, %cst_201 {dimension_numbers = #tpu.dot_dimension_numbers<[1], [0], [0], [1], [0, 0, 1, 1], [], []>} : vector<8x32xf32>, vector<32x32xf32>, vector<8x32xf32> -> vector<8x32xf32>
    %414 = arith.addf %413, %248 : vector<8x32xf32>
    %c96_202 = arith.constant 96 : index
    %c0_203 = arith.constant 0 : index
    %415 = vector.load %arg14[%c96_202, %c0_203] : memref<128x32xf32, #tpu.memory_space<vmem>>, vector<8x32xf32>
    %416 = arith.addf %415, %411 : vector<8x32xf32>
    %417 = arith.negf %416 : vector<8x32xf32>
    %418 = math.exp %417 : vector<8x32xf32>
    %cst_204 = arith.constant 1.000000e+00 : f32
    %419 = vector.broadcast %cst_204 : f32 to vector<8x32xf32>
    %420 = arith.addf %419, %418 : vector<8x32xf32>
    %421 = arith.divf %419, %420 : vector<8x32xf32>
    %c96_205 = arith.constant 96 : index
    %c0_206 = arith.constant 0 : index
    %422 = vector.load %arg15[%c96_205, %c0_206] : memref<128x32xf32, #tpu.memory_space<vmem>>, vector<8x32xf32>
    %423 = arith.addf %422, %412 : vector<8x32xf32>
    %424 = arith.negf %423 : vector<8x32xf32>
    %425 = math.exp %424 : vector<8x32xf32>
    %cst_207 = arith.constant 1.000000e+00 : f32
    %426 = vector.broadcast %cst_207 : f32 to vector<8x32xf32>
    %427 = arith.addf %426, %425 : vector<8x32xf32>
    %428 = arith.divf %426, %427 : vector<8x32xf32>
    %c96_208 = arith.constant 96 : index
    %c0_209 = arith.constant 0 : index
    %429 = vector.load %arg16[%c96_208, %c0_209] : memref<128x32xf32, #tpu.memory_space<vmem>>, vector<8x32xf32>
    %430 = arith.mulf %421, %414 : vector<8x32xf32>
    %431 = arith.addf %429, %430 : vector<8x32xf32>
    %432 = math.tanh %431 : vector<8x32xf32>
    %cst_210 = arith.constant 1.000000e+00 : f32
    %433 = vector.broadcast %cst_210 : f32 to vector<8x32xf32>
    %434 = arith.subf %433, %428 : vector<8x32xf32>
    %435 = arith.mulf %434, %432 : vector<8x32xf32>
    %436 = arith.mulf %428, %410 : vector<8x32xf32>
    %437 = arith.addf %435, %436 : vector<8x32xf32>
    %cst_211 = arith.constant dense<0.000000e+00> : vector<8x32xf32>
    %438 = tpu.matmul %437, %243, %cst_211 {dimension_numbers = #tpu.dot_dimension_numbers<[1], [0], [0], [1], [0, 0, 1, 1], [], []>} : vector<8x32xf32>, vector<32x32xf32>, vector<8x32xf32> -> vector<8x32xf32>
    %cst_212 = arith.constant dense<0.000000e+00> : vector<8x32xf32>
    %439 = tpu.matmul %437, %244, %cst_212 {dimension_numbers = #tpu.dot_dimension_numbers<[1], [0], [0], [1], [0, 0, 1, 1], [], []>} : vector<8x32xf32>, vector<32x32xf32>, vector<8x32xf32> -> vector<8x32xf32>
    %cst_213 = arith.constant dense<0.000000e+00> : vector<8x32xf32>
    %440 = tpu.matmul %437, %245, %cst_213 {dimension_numbers = #tpu.dot_dimension_numbers<[1], [0], [0], [1], [0, 0, 1, 1], [], []>} : vector<8x32xf32>, vector<32x32xf32>, vector<8x32xf32> -> vector<8x32xf32>
    %441 = arith.addf %440, %248 : vector<8x32xf32>
    %c112_214 = arith.constant 112 : index
    %c0_215 = arith.constant 0 : index
    %442 = vector.load %arg14[%c112_214, %c0_215] : memref<128x32xf32, #tpu.memory_space<vmem>>, vector<8x32xf32>
    %443 = arith.addf %442, %438 : vector<8x32xf32>
    %444 = arith.negf %443 : vector<8x32xf32>
    %445 = math.exp %444 : vector<8x32xf32>
    %cst_216 = arith.constant 1.000000e+00 : f32
    %446 = vector.broadcast %cst_216 : f32 to vector<8x32xf32>
    %447 = arith.addf %446, %445 : vector<8x32xf32>
    %448 = arith.divf %446, %447 : vector<8x32xf32>
    %c112_217 = arith.constant 112 : index
    %c0_218 = arith.constant 0 : index
    %449 = vector.load %arg15[%c112_217, %c0_218] : memref<128x32xf32, #tpu.memory_space<vmem>>, vector<8x32xf32>
    %450 = arith.addf %449, %439 : vector<8x32xf32>
    %451 = arith.negf %450 : vector<8x32xf32>
    %452 = math.exp %451 : vector<8x32xf32>
    %cst_219 = arith.constant 1.000000e+00 : f32
    %453 = vector.broadcast %cst_219 : f32 to vector<8x32xf32>
    %454 = arith.addf %453, %452 : vector<8x32xf32>
    %455 = arith.divf %453, %454 : vector<8x32xf32>
    %c112_220 = arith.constant 112 : index
    %c0_221 = arith.constant 0 : index
    %456 = vector.load %arg16[%c112_220, %c0_221] : memref<128x32xf32, #tpu.memory_space<vmem>>, vector<8x32xf32>
    %457 = arith.mulf %448, %441 : vector<8x32xf32>
    %458 = arith.addf %456, %457 : vector<8x32xf32>
    %459 = math.tanh %458 : vector<8x32xf32>
    %cst_222 = arith.constant 1.000000e+00 : f32
    %460 = vector.broadcast %cst_222 : f32 to vector<8x32xf32>
    %461 = arith.subf %460, %455 : vector<8x32xf32>
    %462 = arith.mulf %461, %459 : vector<8x32xf32>
    %463 = arith.mulf %455, %437 : vector<8x32xf32>
    %464 = arith.addf %462, %463 : vector<8x32xf32>
    %c0_223 = arith.constant 0 : index
    %c0_224 = arith.constant 0 : index
    %465 = vector.load %arg7[%c0_223, %c0_224] : memref<32x32xf32, #tpu.memory_space<vmem>>, vector<32x32xf32>
    %c0_225 = arith.constant 0 : index
    %c0_226 = arith.constant 0 : index
    %466 = vector.load %arg8[%c0_225, %c0_226] : memref<32x32xf32, #tpu.memory_space<vmem>>, vector<32x32xf32>
    %c0_227 = arith.constant 0 : index
    %c0_228 = arith.constant 0 : index
    %467 = vector.load %arg9[%c0_227, %c0_228] : memref<32x32xf32, #tpu.memory_space<vmem>>, vector<32x32xf32>
    %c0_229 = arith.constant 0 : index
    %c0_230 = arith.constant 0 : index
    %468 = vector.load %arg10[%c0_229, %c0_230] : memref<1x32xf32, #tpu.memory_space<vmem>>, vector<1x32xf32>
    %469 = vector.shape_cast %468 : vector<1x32xf32> to vector<1x32xf32>
    %470 = vector.broadcast %469 : vector<1x32xf32> to vector<8x32xf32>
    %cst_231 = arith.constant dense<0.000000e+00> : vector<8x32xf32>
    %471 = tpu.matmul %464, %465, %cst_231 {dimension_numbers = #tpu.dot_dimension_numbers<[1], [0], [0], [1], [0, 0, 1, 1], [], []>} : vector<8x32xf32>, vector<32x32xf32>, vector<8x32xf32> -> vector<8x32xf32>
    %cst_232 = arith.constant dense<0.000000e+00> : vector<8x32xf32>
    %472 = tpu.matmul %464, %466, %cst_232 {dimension_numbers = #tpu.dot_dimension_numbers<[1], [0], [0], [1], [0, 0, 1, 1], [], []>} : vector<8x32xf32>, vector<32x32xf32>, vector<8x32xf32> -> vector<8x32xf32>
    %cst_233 = arith.constant dense<0.000000e+00> : vector<8x32xf32>
    %473 = tpu.matmul %464, %467, %cst_233 {dimension_numbers = #tpu.dot_dimension_numbers<[1], [0], [0], [1], [0, 0, 1, 1], [], []>} : vector<8x32xf32>, vector<32x32xf32>, vector<8x32xf32> -> vector<8x32xf32>
    %474 = arith.addf %473, %470 : vector<8x32xf32>
    %c8 = arith.constant 8 : index
    %c0_234 = arith.constant 0 : index
    %475 = vector.load %arg14[%c8, %c0_234] : memref<128x32xf32, #tpu.memory_space<vmem>>, vector<8x32xf32>
    %476 = arith.addf %475, %471 : vector<8x32xf32>
    %477 = arith.negf %476 : vector<8x32xf32>
    %478 = math.exp %477 : vector<8x32xf32>
    %cst_235 = arith.constant 1.000000e+00 : f32
    %479 = vector.broadcast %cst_235 : f32 to vector<8x32xf32>
    %480 = arith.addf %479, %478 : vector<8x32xf32>
    %481 = arith.divf %479, %480 : vector<8x32xf32>
    %c8_236 = arith.constant 8 : index
    %c0_237 = arith.constant 0 : index
    %482 = vector.load %arg15[%c8_236, %c0_237] : memref<128x32xf32, #tpu.memory_space<vmem>>, vector<8x32xf32>
    %483 = arith.addf %482, %472 : vector<8x32xf32>
    %484 = arith.negf %483 : vector<8x32xf32>
    %485 = math.exp %484 : vector<8x32xf32>
    %cst_238 = arith.constant 1.000000e+00 : f32
    %486 = vector.broadcast %cst_238 : f32 to vector<8x32xf32>
    %487 = arith.addf %486, %485 : vector<8x32xf32>
    %488 = arith.divf %486, %487 : vector<8x32xf32>
    %c8_239 = arith.constant 8 : index
    %c0_240 = arith.constant 0 : index
    %489 = vector.load %arg16[%c8_239, %c0_240] : memref<128x32xf32, #tpu.memory_space<vmem>>, vector<8x32xf32>
    %490 = arith.mulf %481, %474 : vector<8x32xf32>
    %491 = arith.addf %489, %490 : vector<8x32xf32>
    %492 = math.tanh %491 : vector<8x32xf32>
    %cst_241 = arith.constant 1.000000e+00 : f32
    %493 = vector.broadcast %cst_241 : f32 to vector<8x32xf32>
    %494 = arith.subf %493, %488 : vector<8x32xf32>
    %495 = arith.mulf %494, %492 : vector<8x32xf32>
    %496 = arith.mulf %488, %464 : vector<8x32xf32>
    %497 = arith.addf %495, %496 : vector<8x32xf32>
    %cst_242 = arith.constant dense<0.000000e+00> : vector<8x32xf32>
    %498 = tpu.matmul %497, %465, %cst_242 {dimension_numbers = #tpu.dot_dimension_numbers<[1], [0], [0], [1], [0, 0, 1, 1], [], []>} : vector<8x32xf32>, vector<32x32xf32>, vector<8x32xf32> -> vector<8x32xf32>
    %cst_243 = arith.constant dense<0.000000e+00> : vector<8x32xf32>
    %499 = tpu.matmul %497, %466, %cst_243 {dimension_numbers = #tpu.dot_dimension_numbers<[1], [0], [0], [1], [0, 0, 1, 1], [], []>} : vector<8x32xf32>, vector<32x32xf32>, vector<8x32xf32> -> vector<8x32xf32>
    %cst_244 = arith.constant dense<0.000000e+00> : vector<8x32xf32>
    %500 = tpu.matmul %497, %467, %cst_244 {dimension_numbers = #tpu.dot_dimension_numbers<[1], [0], [0], [1], [0, 0, 1, 1], [], []>} : vector<8x32xf32>, vector<32x32xf32>, vector<8x32xf32> -> vector<8x32xf32>
    %501 = arith.addf %500, %470 : vector<8x32xf32>
    %c24 = arith.constant 24 : index
    %c0_245 = arith.constant 0 : index
    %502 = vector.load %arg14[%c24, %c0_245] : memref<128x32xf32, #tpu.memory_space<vmem>>, vector<8x32xf32>
    %503 = arith.addf %502, %498 : vector<8x32xf32>
    %504 = arith.negf %503 : vector<8x32xf32>
    %505 = math.exp %504 : vector<8x32xf32>
    %cst_246 = arith.constant 1.000000e+00 : f32
    %506 = vector.broadcast %cst_246 : f32 to vector<8x32xf32>
    %507 = arith.addf %506, %505 : vector<8x32xf32>
    %508 = arith.divf %506, %507 : vector<8x32xf32>
    %c24_247 = arith.constant 24 : index
    %c0_248 = arith.constant 0 : index
    %509 = vector.load %arg15[%c24_247, %c0_248] : memref<128x32xf32, #tpu.memory_space<vmem>>, vector<8x32xf32>
    %510 = arith.addf %509, %499 : vector<8x32xf32>
    %511 = arith.negf %510 : vector<8x32xf32>
    %512 = math.exp %511 : vector<8x32xf32>
    %cst_249 = arith.constant 1.000000e+00 : f32
    %513 = vector.broadcast %cst_249 : f32 to vector<8x32xf32>
    %514 = arith.addf %513, %512 : vector<8x32xf32>
    %515 = arith.divf %513, %514 : vector<8x32xf32>
    %c24_250 = arith.constant 24 : index
    %c0_251 = arith.constant 0 : index
    %516 = vector.load %arg16[%c24_250, %c0_251] : memref<128x32xf32, #tpu.memory_space<vmem>>, vector<8x32xf32>
    %517 = arith.mulf %508, %501 : vector<8x32xf32>
    %518 = arith.addf %516, %517 : vector<8x32xf32>
    %519 = math.tanh %518 : vector<8x32xf32>
    %cst_252 = arith.constant 1.000000e+00 : f32
    %520 = vector.broadcast %cst_252 : f32 to vector<8x32xf32>
    %521 = arith.subf %520, %515 : vector<8x32xf32>
    %522 = arith.mulf %521, %519 : vector<8x32xf32>
    %523 = arith.mulf %515, %497 : vector<8x32xf32>
    %524 = arith.addf %522, %523 : vector<8x32xf32>
    %cst_253 = arith.constant dense<0.000000e+00> : vector<8x32xf32>
    %525 = tpu.matmul %524, %465, %cst_253 {dimension_numbers = #tpu.dot_dimension_numbers<[1], [0], [0], [1], [0, 0, 1, 1], [], []>} : vector<8x32xf32>, vector<32x32xf32>, vector<8x32xf32> -> vector<8x32xf32>
    %cst_254 = arith.constant dense<0.000000e+00> : vector<8x32xf32>
    %526 = tpu.matmul %524, %466, %cst_254 {dimension_numbers = #tpu.dot_dimension_numbers<[1], [0], [0], [1], [0, 0, 1, 1], [], []>} : vector<8x32xf32>, vector<32x32xf32>, vector<8x32xf32> -> vector<8x32xf32>
    %cst_255 = arith.constant dense<0.000000e+00> : vector<8x32xf32>
    %527 = tpu.matmul %524, %467, %cst_255 {dimension_numbers = #tpu.dot_dimension_numbers<[1], [0], [0], [1], [0, 0, 1, 1], [], []>} : vector<8x32xf32>, vector<32x32xf32>, vector<8x32xf32> -> vector<8x32xf32>
    %528 = arith.addf %527, %470 : vector<8x32xf32>
    %c40 = arith.constant 40 : index
    %c0_256 = arith.constant 0 : index
    %529 = vector.load %arg14[%c40, %c0_256] : memref<128x32xf32, #tpu.memory_space<vmem>>, vector<8x32xf32>
    %530 = arith.addf %529, %525 : vector<8x32xf32>
    %531 = arith.negf %530 : vector<8x32xf32>
    %532 = math.exp %531 : vector<8x32xf32>
    %cst_257 = arith.constant 1.000000e+00 : f32
    %533 = vector.broadcast %cst_257 : f32 to vector<8x32xf32>
    %534 = arith.addf %533, %532 : vector<8x32xf32>
    %535 = arith.divf %533, %534 : vector<8x32xf32>
    %c40_258 = arith.constant 40 : index
    %c0_259 = arith.constant 0 : index
    %536 = vector.load %arg15[%c40_258, %c0_259] : memref<128x32xf32, #tpu.memory_space<vmem>>, vector<8x32xf32>
    %537 = arith.addf %536, %526 : vector<8x32xf32>
    %538 = arith.negf %537 : vector<8x32xf32>
    %539 = math.exp %538 : vector<8x32xf32>
    %cst_260 = arith.constant 1.000000e+00 : f32
    %540 = vector.broadcast %cst_260 : f32 to vector<8x32xf32>
    %541 = arith.addf %540, %539 : vector<8x32xf32>
    %542 = arith.divf %540, %541 : vector<8x32xf32>
    %c40_261 = arith.constant 40 : index
    %c0_262 = arith.constant 0 : index
    %543 = vector.load %arg16[%c40_261, %c0_262] : memref<128x32xf32, #tpu.memory_space<vmem>>, vector<8x32xf32>
    %544 = arith.mulf %535, %528 : vector<8x32xf32>
    %545 = arith.addf %543, %544 : vector<8x32xf32>
    %546 = math.tanh %545 : vector<8x32xf32>
    %cst_263 = arith.constant 1.000000e+00 : f32
    %547 = vector.broadcast %cst_263 : f32 to vector<8x32xf32>
    %548 = arith.subf %547, %542 : vector<8x32xf32>
    %549 = arith.mulf %548, %546 : vector<8x32xf32>
    %550 = arith.mulf %542, %524 : vector<8x32xf32>
    %551 = arith.addf %549, %550 : vector<8x32xf32>
    %cst_264 = arith.constant dense<0.000000e+00> : vector<8x32xf32>
    %552 = tpu.matmul %551, %465, %cst_264 {dimension_numbers = #tpu.dot_dimension_numbers<[1], [0], [0], [1], [0, 0, 1, 1], [], []>} : vector<8x32xf32>, vector<32x32xf32>, vector<8x32xf32> -> vector<8x32xf32>
    %cst_265 = arith.constant dense<0.000000e+00> : vector<8x32xf32>
    %553 = tpu.matmul %551, %466, %cst_265 {dimension_numbers = #tpu.dot_dimension_numbers<[1], [0], [0], [1], [0, 0, 1, 1], [], []>} : vector<8x32xf32>, vector<32x32xf32>, vector<8x32xf32> -> vector<8x32xf32>
    %cst_266 = arith.constant dense<0.000000e+00> : vector<8x32xf32>
    %554 = tpu.matmul %551, %467, %cst_266 {dimension_numbers = #tpu.dot_dimension_numbers<[1], [0], [0], [1], [0, 0, 1, 1], [], []>} : vector<8x32xf32>, vector<32x32xf32>, vector<8x32xf32> -> vector<8x32xf32>
    %555 = arith.addf %554, %470 : vector<8x32xf32>
    %c56 = arith.constant 56 : index
    %c0_267 = arith.constant 0 : index
    %556 = vector.load %arg14[%c56, %c0_267] : memref<128x32xf32, #tpu.memory_space<vmem>>, vector<8x32xf32>
    %557 = arith.addf %556, %552 : vector<8x32xf32>
    %558 = arith.negf %557 : vector<8x32xf32>
    %559 = math.exp %558 : vector<8x32xf32>
    %cst_268 = arith.constant 1.000000e+00 : f32
    %560 = vector.broadcast %cst_268 : f32 to vector<8x32xf32>
    %561 = arith.addf %560, %559 : vector<8x32xf32>
    %562 = arith.divf %560, %561 : vector<8x32xf32>
    %c56_269 = arith.constant 56 : index
    %c0_270 = arith.constant 0 : index
    %563 = vector.load %arg15[%c56_269, %c0_270] : memref<128x32xf32, #tpu.memory_space<vmem>>, vector<8x32xf32>
    %564 = arith.addf %563, %553 : vector<8x32xf32>
    %565 = arith.negf %564 : vector<8x32xf32>
    %566 = math.exp %565 : vector<8x32xf32>
    %cst_271 = arith.constant 1.000000e+00 : f32
    %567 = vector.broadcast %cst_271 : f32 to vector<8x32xf32>
    %568 = arith.addf %567, %566 : vector<8x32xf32>
    %569 = arith.divf %567, %568 : vector<8x32xf32>
    %c56_272 = arith.constant 56 : index
    %c0_273 = arith.constant 0 : index
    %570 = vector.load %arg16[%c56_272, %c0_273] : memref<128x32xf32, #tpu.memory_space<vmem>>, vector<8x32xf32>
    %571 = arith.mulf %562, %555 : vector<8x32xf32>
    %572 = arith.addf %570, %571 : vector<8x32xf32>
    %573 = math.tanh %572 : vector<8x32xf32>
    %cst_274 = arith.constant 1.000000e+00 : f32
    %574 = vector.broadcast %cst_274 : f32 to vector<8x32xf32>
    %575 = arith.subf %574, %569 : vector<8x32xf32>
    %576 = arith.mulf %575, %573 : vector<8x32xf32>
    %577 = arith.mulf %569, %551 : vector<8x32xf32>
    %578 = arith.addf %576, %577 : vector<8x32xf32>
    %cst_275 = arith.constant dense<0.000000e+00> : vector<8x32xf32>
    %579 = tpu.matmul %578, %465, %cst_275 {dimension_numbers = #tpu.dot_dimension_numbers<[1], [0], [0], [1], [0, 0, 1, 1], [], []>} : vector<8x32xf32>, vector<32x32xf32>, vector<8x32xf32> -> vector<8x32xf32>
    %cst_276 = arith.constant dense<0.000000e+00> : vector<8x32xf32>
    %580 = tpu.matmul %578, %466, %cst_276 {dimension_numbers = #tpu.dot_dimension_numbers<[1], [0], [0], [1], [0, 0, 1, 1], [], []>} : vector<8x32xf32>, vector<32x32xf32>, vector<8x32xf32> -> vector<8x32xf32>
    %cst_277 = arith.constant dense<0.000000e+00> : vector<8x32xf32>
    %581 = tpu.matmul %578, %467, %cst_277 {dimension_numbers = #tpu.dot_dimension_numbers<[1], [0], [0], [1], [0, 0, 1, 1], [], []>} : vector<8x32xf32>, vector<32x32xf32>, vector<8x32xf32> -> vector<8x32xf32>
    %582 = arith.addf %581, %470 : vector<8x32xf32>
    %c72 = arith.constant 72 : index
    %c0_278 = arith.constant 0 : index
    %583 = vector.load %arg14[%c72, %c0_278] : memref<128x32xf32, #tpu.memory_space<vmem>>, vector<8x32xf32>
    %584 = arith.addf %583, %579 : vector<8x32xf32>
    %585 = arith.negf %584 : vector<8x32xf32>
    %586 = math.exp %585 : vector<8x32xf32>
    %cst_279 = arith.constant 1.000000e+00 : f32
    %587 = vector.broadcast %cst_279 : f32 to vector<8x32xf32>
    %588 = arith.addf %587, %586 : vector<8x32xf32>
    %589 = arith.divf %587, %588 : vector<8x32xf32>
    %c72_280 = arith.constant 72 : index
    %c0_281 = arith.constant 0 : index
    %590 = vector.load %arg15[%c72_280, %c0_281] : memref<128x32xf32, #tpu.memory_space<vmem>>, vector<8x32xf32>
    %591 = arith.addf %590, %580 : vector<8x32xf32>
    %592 = arith.negf %591 : vector<8x32xf32>
    %593 = math.exp %592 : vector<8x32xf32>
    %cst_282 = arith.constant 1.000000e+00 : f32
    %594 = vector.broadcast %cst_282 : f32 to vector<8x32xf32>
    %595 = arith.addf %594, %593 : vector<8x32xf32>
    %596 = arith.divf %594, %595 : vector<8x32xf32>
    %c72_283 = arith.constant 72 : index
    %c0_284 = arith.constant 0 : index
    %597 = vector.load %arg16[%c72_283, %c0_284] : memref<128x32xf32, #tpu.memory_space<vmem>>, vector<8x32xf32>
    %598 = arith.mulf %589, %582 : vector<8x32xf32>
    %599 = arith.addf %597, %598 : vector<8x32xf32>
    %600 = math.tanh %599 : vector<8x32xf32>
    %cst_285 = arith.constant 1.000000e+00 : f32
    %601 = vector.broadcast %cst_285 : f32 to vector<8x32xf32>
    %602 = arith.subf %601, %596 : vector<8x32xf32>
    %603 = arith.mulf %602, %600 : vector<8x32xf32>
    %604 = arith.mulf %596, %578 : vector<8x32xf32>
    %605 = arith.addf %603, %604 : vector<8x32xf32>
    %cst_286 = arith.constant dense<0.000000e+00> : vector<8x32xf32>
    %606 = tpu.matmul %605, %465, %cst_286 {dimension_numbers = #tpu.dot_dimension_numbers<[1], [0], [0], [1], [0, 0, 1, 1], [], []>} : vector<8x32xf32>, vector<32x32xf32>, vector<8x32xf32> -> vector<8x32xf32>
    %cst_287 = arith.constant dense<0.000000e+00> : vector<8x32xf32>
    %607 = tpu.matmul %605, %466, %cst_287 {dimension_numbers = #tpu.dot_dimension_numbers<[1], [0], [0], [1], [0, 0, 1, 1], [], []>} : vector<8x32xf32>, vector<32x32xf32>, vector<8x32xf32> -> vector<8x32xf32>
    %cst_288 = arith.constant dense<0.000000e+00> : vector<8x32xf32>
    %608 = tpu.matmul %605, %467, %cst_288 {dimension_numbers = #tpu.dot_dimension_numbers<[1], [0], [0], [1], [0, 0, 1, 1], [], []>} : vector<8x32xf32>, vector<32x32xf32>, vector<8x32xf32> -> vector<8x32xf32>
    %609 = arith.addf %608, %470 : vector<8x32xf32>
    %c88 = arith.constant 88 : index
    %c0_289 = arith.constant 0 : index
    %610 = vector.load %arg14[%c88, %c0_289] : memref<128x32xf32, #tpu.memory_space<vmem>>, vector<8x32xf32>
    %611 = arith.addf %610, %606 : vector<8x32xf32>
    %612 = arith.negf %611 : vector<8x32xf32>
    %613 = math.exp %612 : vector<8x32xf32>
    %cst_290 = arith.constant 1.000000e+00 : f32
    %614 = vector.broadcast %cst_290 : f32 to vector<8x32xf32>
    %615 = arith.addf %614, %613 : vector<8x32xf32>
    %616 = arith.divf %614, %615 : vector<8x32xf32>
    %c88_291 = arith.constant 88 : index
    %c0_292 = arith.constant 0 : index
    %617 = vector.load %arg15[%c88_291, %c0_292] : memref<128x32xf32, #tpu.memory_space<vmem>>, vector<8x32xf32>
    %618 = arith.addf %617, %607 : vector<8x32xf32>
    %619 = arith.negf %618 : vector<8x32xf32>
    %620 = math.exp %619 : vector<8x32xf32>
    %cst_293 = arith.constant 1.000000e+00 : f32
    %621 = vector.broadcast %cst_293 : f32 to vector<8x32xf32>
    %622 = arith.addf %621, %620 : vector<8x32xf32>
    %623 = arith.divf %621, %622 : vector<8x32xf32>
    %c88_294 = arith.constant 88 : index
    %c0_295 = arith.constant 0 : index
    %624 = vector.load %arg16[%c88_294, %c0_295] : memref<128x32xf32, #tpu.memory_space<vmem>>, vector<8x32xf32>
    %625 = arith.mulf %616, %609 : vector<8x32xf32>
    %626 = arith.addf %624, %625 : vector<8x32xf32>
    %627 = math.tanh %626 : vector<8x32xf32>
    %cst_296 = arith.constant 1.000000e+00 : f32
    %628 = vector.broadcast %cst_296 : f32 to vector<8x32xf32>
    %629 = arith.subf %628, %623 : vector<8x32xf32>
    %630 = arith.mulf %629, %627 : vector<8x32xf32>
    %631 = arith.mulf %623, %605 : vector<8x32xf32>
    %632 = arith.addf %630, %631 : vector<8x32xf32>
    %cst_297 = arith.constant dense<0.000000e+00> : vector<8x32xf32>
    %633 = tpu.matmul %632, %465, %cst_297 {dimension_numbers = #tpu.dot_dimension_numbers<[1], [0], [0], [1], [0, 0, 1, 1], [], []>} : vector<8x32xf32>, vector<32x32xf32>, vector<8x32xf32> -> vector<8x32xf32>
    %cst_298 = arith.constant dense<0.000000e+00> : vector<8x32xf32>
    %634 = tpu.matmul %632, %466, %cst_298 {dimension_numbers = #tpu.dot_dimension_numbers<[1], [0], [0], [1], [0, 0, 1, 1], [], []>} : vector<8x32xf32>, vector<32x32xf32>, vector<8x32xf32> -> vector<8x32xf32>
    %cst_299 = arith.constant dense<0.000000e+00> : vector<8x32xf32>
    %635 = tpu.matmul %632, %467, %cst_299 {dimension_numbers = #tpu.dot_dimension_numbers<[1], [0], [0], [1], [0, 0, 1, 1], [], []>} : vector<8x32xf32>, vector<32x32xf32>, vector<8x32xf32> -> vector<8x32xf32>
    %636 = arith.addf %635, %470 : vector<8x32xf32>
    %c104 = arith.constant 104 : index
    %c0_300 = arith.constant 0 : index
    %637 = vector.load %arg14[%c104, %c0_300] : memref<128x32xf32, #tpu.memory_space<vmem>>, vector<8x32xf32>
    %638 = arith.addf %637, %633 : vector<8x32xf32>
    %639 = arith.negf %638 : vector<8x32xf32>
    %640 = math.exp %639 : vector<8x32xf32>
    %cst_301 = arith.constant 1.000000e+00 : f32
    %641 = vector.broadcast %cst_301 : f32 to vector<8x32xf32>
    %642 = arith.addf %641, %640 : vector<8x32xf32>
    %643 = arith.divf %641, %642 : vector<8x32xf32>
    %c104_302 = arith.constant 104 : index
    %c0_303 = arith.constant 0 : index
    %644 = vector.load %arg15[%c104_302, %c0_303] : memref<128x32xf32, #tpu.memory_space<vmem>>, vector<8x32xf32>
    %645 = arith.addf %644, %634 : vector<8x32xf32>
    %646 = arith.negf %645 : vector<8x32xf32>
    %647 = math.exp %646 : vector<8x32xf32>
    %cst_304 = arith.constant 1.000000e+00 : f32
    %648 = vector.broadcast %cst_304 : f32 to vector<8x32xf32>
    %649 = arith.addf %648, %647 : vector<8x32xf32>
    %650 = arith.divf %648, %649 : vector<8x32xf32>
    %c104_305 = arith.constant 104 : index
    %c0_306 = arith.constant 0 : index
    %651 = vector.load %arg16[%c104_305, %c0_306] : memref<128x32xf32, #tpu.memory_space<vmem>>, vector<8x32xf32>
    %652 = arith.mulf %643, %636 : vector<8x32xf32>
    %653 = arith.addf %651, %652 : vector<8x32xf32>
    %654 = math.tanh %653 : vector<8x32xf32>
    %cst_307 = arith.constant 1.000000e+00 : f32
    %655 = vector.broadcast %cst_307 : f32 to vector<8x32xf32>
    %656 = arith.subf %655, %650 : vector<8x32xf32>
    %657 = arith.mulf %656, %654 : vector<8x32xf32>
    %658 = arith.mulf %650, %632 : vector<8x32xf32>
    %659 = arith.addf %657, %658 : vector<8x32xf32>
    %cst_308 = arith.constant dense<0.000000e+00> : vector<8x32xf32>
    %660 = tpu.matmul %659, %465, %cst_308 {dimension_numbers = #tpu.dot_dimension_numbers<[1], [0], [0], [1], [0, 0, 1, 1], [], []>} : vector<8x32xf32>, vector<32x32xf32>, vector<8x32xf32> -> vector<8x32xf32>
    %cst_309 = arith.constant dense<0.000000e+00> : vector<8x32xf32>
    %661 = tpu.matmul %659, %466, %cst_309 {dimension_numbers = #tpu.dot_dimension_numbers<[1], [0], [0], [1], [0, 0, 1, 1], [], []>} : vector<8x32xf32>, vector<32x32xf32>, vector<8x32xf32> -> vector<8x32xf32>
    %cst_310 = arith.constant dense<0.000000e+00> : vector<8x32xf32>
    %662 = tpu.matmul %659, %467, %cst_310 {dimension_numbers = #tpu.dot_dimension_numbers<[1], [0], [0], [1], [0, 0, 1, 1], [], []>} : vector<8x32xf32>, vector<32x32xf32>, vector<8x32xf32> -> vector<8x32xf32>
    %663 = arith.addf %662, %470 : vector<8x32xf32>
    %c120 = arith.constant 120 : index
    %c0_311 = arith.constant 0 : index
    %664 = vector.load %arg14[%c120, %c0_311] : memref<128x32xf32, #tpu.memory_space<vmem>>, vector<8x32xf32>
    %665 = arith.addf %664, %660 : vector<8x32xf32>
    %666 = arith.negf %665 : vector<8x32xf32>
    %667 = math.exp %666 : vector<8x32xf32>
    %cst_312 = arith.constant 1.000000e+00 : f32
    %668 = vector.broadcast %cst_312 : f32 to vector<8x32xf32>
    %669 = arith.addf %668, %667 : vector<8x32xf32>
    %670 = arith.divf %668, %669 : vector<8x32xf32>
    %c120_313 = arith.constant 120 : index
    %c0_314 = arith.constant 0 : index
    %671 = vector.load %arg15[%c120_313, %c0_314] : memref<128x32xf32, #tpu.memory_space<vmem>>, vector<8x32xf32>
    %672 = arith.addf %671, %661 : vector<8x32xf32>
    %673 = arith.negf %672 : vector<8x32xf32>
    %674 = math.exp %673 : vector<8x32xf32>
    %cst_315 = arith.constant 1.000000e+00 : f32
    %675 = vector.broadcast %cst_315 : f32 to vector<8x32xf32>
    %676 = arith.addf %675, %674 : vector<8x32xf32>
    %677 = arith.divf %675, %676 : vector<8x32xf32>
    %c120_316 = arith.constant 120 : index
    %c0_317 = arith.constant 0 : index
    %678 = vector.load %arg16[%c120_316, %c0_317] : memref<128x32xf32, #tpu.memory_space<vmem>>, vector<8x32xf32>
    %679 = arith.mulf %670, %663 : vector<8x32xf32>
    %680 = arith.addf %678, %679 : vector<8x32xf32>
    %681 = math.tanh %680 : vector<8x32xf32>
    %cst_318 = arith.constant 1.000000e+00 : f32
    %682 = vector.broadcast %cst_318 : f32 to vector<8x32xf32>
    %683 = arith.subf %682, %677 : vector<8x32xf32>
    %684 = arith.mulf %683, %681 : vector<8x32xf32>
    %685 = arith.mulf %677, %659 : vector<8x32xf32>
    %686 = arith.addf %684, %685 : vector<8x32xf32>
    %687 = arith.subf %464, %686 : vector<8x32xf32>
    %688 = math.absf %687 : vector<8x32xf32>
    %c0_319 = arith.constant 0 : index
    %c0_320 = arith.constant 0 : index
    %689 = vector.load %arg11[%c0_319, %c0_320] : memref<32x2xf32, #tpu.memory_space<vmem>>, vector<32x2xf32>
    %cst_321 = arith.constant dense<0.000000e+00> : vector<8x2xf32>
    %690 = tpu.matmul %688, %689, %cst_321 {dimension_numbers = #tpu.dot_dimension_numbers<[1], [0], [0], [1], [0, 0, 1, 1], [], []>} : vector<8x32xf32>, vector<32x2xf32>, vector<8x2xf32> -> vector<8x2xf32>
    %c0_322 = arith.constant 0 : index
    %c0_323 = arith.constant 0 : index
    %691 = vector.load %arg12[%c0_322, %c0_323] : memref<1x2xf32, #tpu.memory_space<vmem>>, vector<1x2xf32>
    %692 = vector.broadcast %691 : vector<1x2xf32> to vector<8x2xf32>
    %693 = arith.addf %690, %692 : vector<8x2xf32>
    %cst_324 = arith.constant dense<0xFF800000> : vector<8xf32>
    %694 = vector.multi_reduction <maximumf>, %693, %cst_324 [1] : vector<8x2xf32> to vector<8xf32>
    %695 = vector.shape_cast %694 : vector<8xf32> to vector<8x1xf32>
    %696 = vector.broadcast %695 : vector<8x1xf32> to vector<8x2xf32>
    %697 = arith.subf %693, %696 : vector<8x2xf32>
    %698 = math.exp %697 : vector<8x2xf32>
    %cst_325 = arith.constant dense<0.000000e+00> : vector<8xf32>
    %699 = vector.multi_reduction <add>, %698, %cst_325 [1] : vector<8x2xf32> to vector<8xf32>
    %700 = vector.shape_cast %699 : vector<8xf32> to vector<8x1xf32>
    %701 = vector.broadcast %700 : vector<8x1xf32> to vector<8x2xf32>
    %702 = arith.divf %698, %701 : vector<8x2xf32>
    %c0_326 = arith.constant 0 : index
    %c0_327 = arith.constant 0 : index
    %703 = vector.load %arg13[%c0_326, %c0_327] : memref<8x2xf32, #tpu.memory_space<vmem>>, vector<8x2xf32>
    tpu.vector_store %arg13[%c0_326, %c0_327], %702 {strides = array<i32>} : memref<8x2xf32, #tpu.memory_space<vmem>>, vector<8x2xf32>,
    return
  }
}

</mosaic_0001>

<llo_original>
// kernel: matcher_forward.1
$region0: #{matcher_forward.1}
  #allocation0 [shape = 'u32[]', space=smem, size = 0x4, offset = 0x4, fixed_abs, tag = 'smem constant byte address 0x4 - core index']
  #allocation1 [shape = 'u32[72,128]{1,0:T(1,128)}', space=vmem, size = 0x9000, scoped, tag = 'internal scratch']
  #allocation2 [shape = 'f32[128,32]{1,0:T(8,128)}', space=vmem, size = 0x10000, scoped, tag = 'scratch operand']
  #allocation3 [shape = 'f32[128,32]{1,0:T(8,128)}', space=vmem, size = 0x10000, scoped, tag = 'scratch operand']
  #allocation4 [shape = 'f32[128,32]{1,0:T(8,128)}', space=vmem, size = 0x10000, scoped, tag = 'scratch operand']
  %s0 = inlined_call_operand.vmem [shape: f32[128,32], index: 0, kind: input, shape index: {}]
  %s1 = inlined_call_operand.vmem [shape: f32[32,32], index: 1, kind: input, shape index: {}]
  %s2 = inlined_call_operand.vmem [shape: f32[32,32], index: 2, kind: input, shape index: {}]
  %s3 = inlined_call_operand.vmem [shape: f32[32,32], index: 3, kind: input, shape index: {}]
  %s4 = inlined_call_operand.vmem [shape: f32[1,32], index: 4, kind: input, shape index: {}]
  %s5 = inlined_call_operand.vmem [shape: f32[1,32], index: 5, kind: input, shape index: {}]
  %s6 = inlined_call_operand.vmem [shape: f32[1,32], index: 6, kind: input, shape index: {}]
  %s7 = inlined_call_operand.vmem [shape: f32[32,32], index: 7, kind: input, shape index: {}]
  %s8 = inlined_call_operand.vmem [shape: f32[32,32], index: 8, kind: input, shape index: {}]
  %s9 = inlined_call_operand.vmem [shape: f32[32,32], index: 9, kind: input, shape index: {}]
  %s10 = inlined_call_operand.vmem [shape: f32[1,32], index: 10, kind: input, shape index: {}]
  %s11 = inlined_call_operand.vmem [shape: f32[32,2], index: 11, kind: input, shape index: {}]
  %s12 = inlined_call_operand.vmem [shape: f32[1,2], index: 12, kind: input, shape index: {}]
  %s13 = inlined_call_operand.vmem [shape: f32[8,2], index: 13, kind: output, shape index: {}]
  %s14 = sld [smem:[#allocation0]]
  $region62: #{matcher_forward.1} parent=0
    _
  %s16 = ssub.s32 1, %s14
  %s17 = scalar_select 0, %s16, %s14
  // Predicated region
  $region2: #{matcher_forward.1} parent=0 // pred_check
    _
  $region3: #{matcher_forward.1} parent=0 // pred_check_branch
    %19 = sbr.rel (0) target = $region5
  $region4: #{matcher_forward.1} parent=0 // pred_region
    _
  $region5: #{matcher_forward.1} parent=0 // pred_fallthru
    _
  // Predicated region
  $region6: #{matcher_forward.1} parent=0 // pred_check
    _
  $region7: #{matcher_forward.1} parent=0 // pred_check_branch
    %21 = sbr.rel (0) target = $region9
  $region8: #{matcher_forward.1} parent=0 // pred_region
    _
  $region9: #{matcher_forward.1} parent=0 // pred_fallthru
    _
  // Predicated region
  $region10: #{matcher_forward.1} parent=0 // pred_check
    _
  $region11: #{matcher_forward.1} parent=0 // pred_check_branch
    %23 = sbr.rel (0) target = $region13
  $region12: #{matcher_forward.1} parent=0 // pred_region
    _
  $region13: #{matcher_forward.1} parent=0 // pred_fallthru
    _
  // Predicated region
  $region14: #{matcher_forward.1} parent=0 // pred_check
    _
  $region15: #{matcher_forward.1} parent=0 // pred_check_branch
    %25 = sbr.rel (0) target = $region17
  $region16: #{matcher_forward.1} parent=0 // pred_region
    _
  $region17: #{matcher_forward.1} parent=0 // pred_fallthru
    _
  // Predicated region
  $region18: #{matcher_forward.1} parent=0 // pred_check
    _
  $region19: #{matcher_forward.1} parent=0 // pred_check_branch
    %27 = sbr.rel (0) target = $region21
  $region20: #{matcher_forward.1} parent=0 // pred_region
    _
  $region21: #{matcher_forward.1} parent=0 // pred_fallthru
    _
  // Predicated region
  $region22: #{matcher_forward.1} parent=0 // pred_check
    _
  $region23: #{matcher_forward.1} parent=0 // pred_check_branch
    %29 = sbr.rel (0) target = $region25
  $region24: #{matcher_forward.1} parent=0 // pred_region
    _
  $region25: #{matcher_forward.1} parent=0 // pred_fallthru
    _
  // Predicated region
  $region26: #{matcher_forward.1} parent=0 // pred_check
    _
  $region27: #{matcher_forward.1} parent=0 // pred_check_branch
    %31 = sbr.rel (0) target = $region29
  $region28: #{matcher_forward.1} parent=0 // pred_region
    _
  $region29: #{matcher_forward.1} parent=0 // pred_fallthru
    _
  // Predicated region
  $region30: #{matcher_forward.1} parent=0 // pred_check
    _
  $region31: #{matcher_forward.1} parent=0 // pred_check_branch
    %33 = sbr.rel (0) target = $region33
  $region32: #{matcher_forward.1} parent=0 // pred_region
    _
  $region33: #{matcher_forward.1} parent=0 // pred_fallthru
    _
  // Predicated region
  $region34: #{matcher_forward.1} parent=0 // pred_check
    _
  $region35: #{matcher_forward.1} parent=0 // pred_check_branch
    %35 = sbr.rel (0) target = $region37
  $region36: #{matcher_forward.1} parent=0 // pred_region
    _
  $region37: #{matcher_forward.1} parent=0 // pred_fallthru
    _
  // Predicated region
  $region38: #{matcher_forward.1} parent=0 // pred_check
    _
  $region39: #{matcher_forward.1} parent=0 // pred_check_branch
    %37 = sbr.rel (0) target = $region41
  $region40: #{matcher_forward.1} parent=0 // pred_region
    _
  $region41: #{matcher_forward.1} parent=0 // pred_fallthru
    _
  // Predicated region
  $region42: #{matcher_forward.1} parent=0 // pred_check
    _
  $region43: #{matcher_forward.1} parent=0 // pred_check_branch
    %39 = sbr.rel (0) target = $region45
  $region44: #{matcher_forward.1} parent=0 // pred_region
    _
  $region45: #{matcher_forward.1} parent=0 // pred_fallthru
    _
  // Predicated region
  $region46: #{matcher_forward.1} parent=0 // pred_check
    _
  $region47: #{matcher_forward.1} parent=0 // pred_check_branch
    %41 = sbr.rel (0) target = $region49
  $region48: #{matcher_forward.1} parent=0 // pred_region
    _
  $region49: #{matcher_forward.1} parent=0 // pred_fallthru
    _
  // Predicated region
  $region50: #{matcher_forward.1} parent=0 // pred_check
    _
  $region51: #{matcher_forward.1} parent=0 // pred_check_branch
    %43 = sbr.rel (0) target = $region53
  $region52: #{matcher_forward.1} parent=0 // pred_region
    _
  $region53: #{matcher_forward.1} parent=0 // pred_fallthru
    _
  %v44 = vld [vmem:[%s0] sm:$0xff]
  %v45 = vld [vmem:[%s0 + $0x8] sm:$0xff]
  %v46 = vld [vmem:[%s0 + $0x10] sm:$0xff]
  %v47 = vld [vmem:[%s0 + $0x18] sm:$0xff]
  %v48 = vld [vmem:[%s0 + $0x20] sm:$0xff]
  %v49 = vld [vmem:[%s0 + $0x28] sm:$0xff]
  %v50 = vld [vmem:[%s0 + $0x30] sm:$0xff]
  %v51 = vld [vmem:[%s0 + $0x38] sm:$0xff]
  %v52 = vld [vmem:[%s0 + $0x40] sm:$0xff]
  %v53 = vld [vmem:[%s0 + $0x48] sm:$0xff]
  %v54 = vld [vmem:[%s0 + $0x50] sm:$0xff]
  %v55 = vld [vmem:[%s0 + $0x58] sm:$0xff]
  %v56 = vld [vmem:[%s0 + $0x60] sm:$0xff]
  %v57 = vld [vmem:[%s0 + $0x68] sm:$0xff]
  %v58 = vld [vmem:[%s0 + $0x70] sm:$0xff]
  %v59 = vld [vmem:[%s0 + $0x78] sm:$0xff]
  %v60 = vld [vmem:[%s1] sm:$0xff]
  %v61 = vld [vmem:[%s1 + $0x8] sm:$0xff]
  %v62 = vld [vmem:[%s1 + $0x10] sm:$0xff]
  %v63 = vld [vmem:[%s1 + $0x18] sm:$0xff]
  %v64 = vld [vmem:[%s4] sm:$0x1]
  %v66 = vperm.slane %v64, 0
  %vm68 = vcmask 261120
  %v70 = vsel %vm68, %v44, 0
  %v73 = vsel %vm68, %v45, 0
  %v76 = vsel %vm68, %v46, 0
  %v79 = vsel %vm68, %v47, 0
  %v82 = vsel %vm68, %v48, 0
  %v85 = vsel %vm68, %v49, 0
  %v88 = vsel %vm68, %v50, 0
  %v91 = vsel %vm68, %v51, 0
  %v94 = vsel %vm68, %v52, 0
  %v97 = vsel %vm68, %v53, 0
  %v100 = vsel %vm68, %v54, 0
  %v103 = vsel %vm68, %v55, 0
  %v106 = vsel %vm68, %v56, 0
  %v109 = vsel %vm68, %v57, 0
  %v112 = vsel %vm68, %v58, 0
  %v115 = vsel %vm68, %v59, 0
  %117 = vmatpush.msra.mxu0 0.0
  %118 = vmatpush.msra.mxu0 0.0
  %119 = vmatpush.msra.mxu0 0.0
  %120 = vmatpush.msra.mxu0 0.0
  %121 = vmatpush.msra.mxu0 0.0
  %122 = vmatpush.msra.mxu0 0.0
  %123 = vmatpush.msra.mxu0 0.0
  %124 = vmatpush.msra.mxu0 0.0
  %125 = vmatpush.msra.mxu0 0.0
  %126 = vmatpush.msra.mxu0 0.0
  %127 = vmatpush.msra.mxu0 0.0
  %128 = vmatpush.msra.mxu0 0.0
  %129 = vmatpush.msra.mxu0 %v63
  %130 = vmatpush.msra.mxu0 %v62
  %131 = vmatpush.msra.mxu0 %v61
  %132 = vmatpush.msra.mxu0 %v60
  %133 = vmatmul.f32.gmra.mxu0 %v70
  %v134 = vpop.f32.mrf.mxu0
  %v135 = vadd.f32 %v66, %v134
  %136 = vmatmul.f32.gmra.mxu0 %v73
  %v137 = vpop.f32.mrf.mxu0
  %v138 = vadd.f32 %v66, %v137
  %139 = vmatmul.f32.gmra.mxu0 %v76
  %v140 = vpop.f32.mrf.mxu0
  %v141 = vadd.f32 %v66, %v140
  %142 = vmatmul.f32.gmra.mxu0 %v79
  %v143 = vpop.f32.mrf.mxu0
  %v144 = vadd.f32 %v66, %v143
  %145 = vmatmul.f32.gmra.mxu0 %v82
  %v146 = vpop.f32.mrf.mxu0
  %v147 = vadd.f32 %v66, %v146
  %148 = vmatmul.f32.gmra.mxu0 %v85
  %v149 = vpop.f32.mrf.mxu0
  %v150 = vadd.f32 %v66, %v149
  %151 = vmatmul.f32.gmra.mxu0 %v88
  %v152 = vpop.f32.mrf.mxu0
  %v153 = vadd.f32 %v66, %v152
  %154 = vmatmul.f32.gmra.mxu0 %v91
  %v155 = vpop.f32.mrf.mxu0
  %v156 = vadd.f32 %v66, %v155
  %157 = vmatmul.f32.gmra.mxu0 %v94
  %v158 = vpop.f32.mrf.mxu0
  %v159 = vadd.f32 %v66, %v158
  %160 = vmatmul.f32.gmra.mxu0 %v97
  %v161 = vpop.f32.mrf.mxu0
  %v162 = vadd.f32 %v66, %v161
  %163 = vmatmul.f32.gmra.mxu0 %v100
  %v164 = vpop.f32.mrf.mxu0
  %v165 = vadd.f32 %v66, %v164
  %166 = vmatmul.f32.gmra.mxu0 %v103
  %v167 = vpop.f32.mrf.mxu0
  %v168 = vadd.f32 %v66, %v167
  %169 = vmatmul.f32.gmra.mxu0 %v106
  %v170 = vpop.f32.mrf.mxu0
  %v171 = vadd.f32 %v66, %v170
  %172 = vmatmul.f32.gmra.mxu0 %v109
  %v173 = vpop.f32.mrf.mxu0
  %v174 = vadd.f32 %v66, %v173
  %175 = vmatmul.f32.gmra.mxu0 %v112
  %v176 = vpop.f32.mrf.mxu0
  %v177 = vadd.f32 %v66, %v176
  %178 = vmatmul.f32.gmra.mxu0 %v115
  %v179 = vpop.f32.mrf.mxu0
  %v180 = vadd.f32 %v66, %v179
  %181 = vdwg.mxu0
  %182 = vst.msk [vmem:[#allocation2] sm:$0xff] %vm68, %v135
  %183 = vst.msk [vmem:[#allocation2 + $0x8] sm:$0xff] %vm68, %v138
  %184 = vst.msk [vmem:[#allocation2 + $0x10] sm:$0xff] %vm68, %v141
  %185 = vst.msk [vmem:[#allocation2 + $0x18] sm:$0xff] %vm68, %v144
  %186 = vst.msk [vmem:[#allocation2 + $0x20] sm:$0xff] %vm68, %v147
  %187 = vst.msk [vmem:[#allocation2 + $0x28] sm:$0xff] %vm68, %v150
  %188 = vst.msk [vmem:[#allocation2 + $0x30] sm:$0xff] %vm68, %v153
  %189 = vst.msk [vmem:[#allocation2 + $0x38] sm:$0xff] %vm68, %v156
  %190 = vst.msk [vmem:[#allocation2 + $0x40] sm:$0xff] %vm68, %v159
  %191 = vst.msk [vmem:[#allocation2 + $0x48] sm:$0xff] %vm68, %v162
  %192 = vst.msk [vmem:[#allocation2 + $0x50] sm:$0xff] %vm68, %v165
  %193 = vst.msk [vmem:[#allocation2 + $0x58] sm:$0xff] %vm68, %v168
  %194 = vst.msk [vmem:[#allocation2 + $0x60] sm:$0xff] %vm68, %v171
  %195 = vst.msk [vmem:[#allocation2 + $0x68] sm:$0xff] %vm68, %v174
  %196 = vst.msk [vmem:[#allocation2 + $0x70] sm:$0xff] %vm68, %v177
  %197 = vst.msk [vmem:[#allocation2 + $0x78] sm:$0xff] %vm68, %v180
  %v198 = vld [vmem:[%s2] sm:$0xff]
  %v199 = vld [vmem:[%s2 + $0x8] sm:$0xff]
  %v200 = vld [vmem:[%s2 + $0x10] sm:$0xff]
  %v201 = vld [vmem:[%s2 + $0x18] sm:$0xff]
  %v202 = vld [vmem:[%s5] sm:$0x1]
  %v204 = vperm.slane %v202, 0
  %206 = vmatpush.msra.mxu0 0.0
  %207 = vmatpush.msra.mxu0 0.0
  %208 = vmatpush.msra.mxu0 0.0
  %209 = vmatpush.msra.mxu0 0.0
  %210 = vmatpush.msra.mxu0 0.0
  %211 = vmatpush.msra.mxu0 0.0
  %212 = vmatpush.msra.mxu0 0.0
  %213 = vmatpush.msra.mxu0 0.0
  %214 = vmatpush.msra.mxu0 0.0
  %215 = vmatpush.msra.mxu0 0.0
  %216 = vmatpush.msra.mxu0 0.0
  %217 = vmatpush.msra.mxu0 0.0
  %218 = vmatpush.msra.mxu0 %v201
  %219 = vmatpush.msra.mxu0 %v200
  %220 = vmatpush.msra.mxu0 %v199
  %221 = vmatpush.msra.mxu0 %v198
  %222 = vmatmul.f32.gmra.mxu0 %v70
  %v223 = vpop.f32.mrf.mxu0
  %v224 = vadd.f32 %v204, %v223
  %225 = vmatmul.f32.gmra.mxu0 %v73
  %v226 = vpop.f32.mrf.mxu0
  %v227 = vadd.f32 %v204, %v226
  %228 = vmatmul.f32.gmra.mxu0 %v76
  %v229 = vpop.f32.mrf.mxu0
  %v230 = vadd.f32 %v204, %v229
  %231 = vmatmul.f32.gmra.mxu0 %v79
  %v232 = vpop.f32.mrf.mxu0
  %v233 = vadd.f32 %v204, %v232
  %234 = vmatmul.f32.gmra.mxu0 %v82
  %v235 = vpop.f32.mrf.mxu0
  %v236 = vadd.f32 %v204, %v235
  %237 = vmatmul.f32.gmra.mxu0 %v85
  %v238 = vpop.f32.mrf.mxu0
  %v239 = vadd.f32 %v204, %v238
  %240 = vmatmul.f32.gmra.mxu0 %v88
  %v241 = vpop.f32.mrf.mxu0
  %v242 = vadd.f32 %v204, %v241
  %243 = vmatmul.f32.gmra.mxu0 %v91
  %v244 = vpop.f32.mrf.mxu0
  %v245 = vadd.f32 %v204, %v244
  %246 = vmatmul.f32.gmra.mxu0 %v94
  %v247 = vpop.f32.mrf.mxu0
  %v248 = vadd.f32 %v204, %v247
  %249 = vmatmul.f32.gmra.mxu0 %v97
  %v250 = vpop.f32.mrf.mxu0
  %v251 = vadd.f32 %v204, %v250
  %252 = vmatmul.f32.gmra.mxu0 %v100
  %v253 = vpop.f32.mrf.mxu0
  %v254 = vadd.f32 %v204, %v253
  %255 = vmatmul.f32.gmra.mxu0 %v103
  %v256 = vpop.f32.mrf.mxu0
  %v257 = vadd.f32 %v204, %v256
  %258 = vmatmul.f32.gmra.mxu0 %v106
  %v259 = vpop.f32.mrf.mxu0
  %v260 = vadd.f32 %v204, %v259
  %261 = vmatmul.f32.gmra.mxu0 %v109
  %v262 = vpop.f32.mrf.mxu0
  %v263 = vadd.f32 %v204, %v262
  %264 = vmatmul.f32.gmra.mxu0 %v112
  %v265 = vpop.f32.mrf.mxu0
  %v266 = vadd.f32 %v204, %v265
  %267 = vmatmul.f32.gmra.mxu0 %v115
  %v268 = vpop.f32.mrf.mxu0
  %v269 = vadd.f32 %v204, %v268
  %270 = vdwg.mxu0
  %271 = vst.msk [vmem:[#allocation3] sm:$0xff] %vm68, %v224
  %272 = vst.msk [vmem:[#allocation3 + $0x8] sm:$0xff] %vm68, %v227
  %273 = vst.msk [vmem:[#allocation3 + $0x10] sm:$0xff] %vm68, %v230
  %274 = vst.msk [vmem:[#allocation3 + $0x18] sm:$0xff] %vm68, %v233
  %275 = vst.msk [vmem:[#allocation3 + $0x20] sm:$0xff] %vm68, %v236
  %276 = vst.msk [vmem:[#allocation3 + $0x28] sm:$0xff] %vm68, %v239
  %277 = vst.msk [vmem:[#allocation3 + $0x30] sm:$0xff] %vm68, %v242
  %278 = vst.msk [vmem:[#allocation3 + $0x38] sm:$0xff] %vm68, %v245
  %279 = vst.msk [vmem:[#allocation3 + $0x40] sm:$0xff] %vm68, %v248
  %280 = vst.msk [vmem:[#allocation3 + $0x48] sm:$0xff] %vm68, %v251
  %281 = vst.msk [vmem:[#allocation3 + $0x50] sm:$0xff] %vm68, %v254
  %282 = vst.msk [vmem:[#allocation3 + $0x58] sm:$0xff] %vm68, %v257
  %283 = vst.msk [vmem:[#allocation3 + $0x60] sm:$0xff] %vm68, %v260
  %284 = vst.msk [vmem:[#allocation3 + $0x68] sm:$0xff] %vm68, %v263
  %285 = vst.msk [vmem:[#allocation3 + $0x70] sm:$0xff] %vm68, %v266
  %286 = vst.msk [vmem:[#allocation3 + $0x78] sm:$0xff] %vm68, %v269
  %v287 = vld [vmem:[%s3] sm:$0xff]
  %v288 = vld [vmem:[%s3 + $0x8] sm:$0xff]
  %v289 = vld [vmem:[%s3 + $0x10] sm:$0xff]
  %v290 = vld [vmem:[%s3 + $0x18] sm:$0xff]
  %v291 = vld [vmem:[%s6] sm:$0x1]
  %v293 = vperm.slane %v291, 0
  %295 = vmatpush.msra.mxu0 0.0
  %296 = vmatpush.msra.mxu0 0.0
  %297 = vmatpush.msra.mxu0 0.0
  %298 = vmatpush.msra.mxu0 0.0
  %299 = vmatpush.msra.mxu0 0.0
  %300 = vmatpush.msra.mxu0 0.0
  %301 = vmatpush.msra.mxu0 0.0
  %302 = vmatpush.msra.mxu0 0.0
  %303 = vmatpush.msra.mxu0 0.0
  %304 = vmatpush.msra.mxu0 0.0
  %305 = vmatpush.msra.mxu0 0.0
  %306 = vmatpush.msra.mxu0 0.0
  %307 = vmatpush.msra.mxu0 %v290
  %308 = vmatpush.msra.mxu0 %v289
  %309 = vmatpush.msra.mxu0 %v288
  %310 = vmatpush.msra.mxu0 %v287
  %311 = vmatmul.f32.gmra.mxu0 %v70
  %v312 = vpop.f32.mrf.mxu0
  %v313 = vadd.f32 %v293, %v312
  %314 = vmatmul.f32.gmra.mxu0 %v73
  %v315 = vpop.f32.mrf.mxu0
  %v316 = vadd.f32 %v293, %v315
  %317 = vmatmul.f32.gmra.mxu0 %v76
  %v318 = vpop.f32.mrf.mxu0
  %v319 = vadd.f32 %v293, %v318
  %320 = vmatmul.f32.gmra.mxu0 %v79
  %v321 = vpop.f32.mrf.mxu0
  %v322 = vadd.f32 %v293, %v321
  %323 = vmatmul.f32.gmra.mxu0 %v82
  %v324 = vpop.f32.mrf.mxu0
  %v325 = vadd.f32 %v293, %v324
  %326 = vmatmul.f32.gmra.mxu0 %v85
  %v327 = vpop.f32.mrf.mxu0
  %v328 = vadd.f32 %v293, %v327
  %329 = vmatmul.f32.gmra.mxu0 %v88
  %v330 = vpop.f32.mrf.mxu0
  %v331 = vadd.f32 %v293, %v330
  %332 = vmatmul.f32.gmra.mxu0 %v91
  %v333 = vpop.f32.mrf.mxu0
  %v334 = vadd.f32 %v293, %v333
  %335 = vmatmul.f32.gmra.mxu0 %v94
  %v336 = vpop.f32.mrf.mxu0
  %v337 = vadd.f32 %v293, %v336
  %338 = vmatmul.f32.gmra.mxu0 %v97
  %v339 = vpop.f32.mrf.mxu0
  %v340 = vadd.f32 %v293, %v339
  %341 = vmatmul.f32.gmra.mxu0 %v100
  %v342 = vpop.f32.mrf.mxu0
  %v343 = vadd.f32 %v293, %v342
  %344 = vmatmul.f32.gmra.mxu0 %v103
  %v345 = vpop.f32.mrf.mxu0
  %v346 = vadd.f32 %v293, %v345
  %347 = vmatmul.f32.gmra.mxu0 %v106
  %v348 = vpop.f32.mrf.mxu0
  %v349 = vadd.f32 %v293, %v348
  %350 = vmatmul.f32.gmra.mxu0 %v109
  %v351 = vpop.f32.mrf.mxu0
  %v352 = vadd.f32 %v293, %v351
  %353 = vmatmul.f32.gmra.mxu0 %v112
  %v354 = vpop.f32.mrf.mxu0
  %v355 = vadd.f32 %v293, %v354
  %356 = vmatmul.f32.gmra.mxu0 %v115
  %v357 = vpop.f32.mrf.mxu0
  %v358 = vadd.f32 %v293, %v357
  %359 = vdwg.mxu0
  %360 = vst.msk [vmem:[#allocation4] sm:$0xff] %vm68, %v313
  %361 = vst.msk [vmem:[#allocation4 + $0x8] sm:$0xff] %vm68, %v316
  %362 = vst.msk [vmem:[#allocation4 + $0x10] sm:$0xff] %vm68, %v319
  %363 = vst.msk [vmem:[#allocation4 + $0x18] sm:$0xff] %vm68, %v322
  %364 = vst.msk [vmem:[#allocation4 + $0x20] sm:$0xff] %vm68, %v325
  %365 = vst.msk [vmem:[#allocation4 + $0x28] sm:$0xff] %vm68, %v328
  %366 = vst.msk [vmem:[#allocation4 + $0x30] sm:$0xff] %vm68, %v331
  %367 = vst.msk [vmem:[#allocation4 + $0x38] sm:$0xff] %vm68, %v334
  %368 = vst.msk [vmem:[#allocation4 + $0x40] sm:$0xff] %vm68, %v337
  %369 = vst.msk [vmem:[#allocation4 + $0x48] sm:$0xff] %vm68, %v340
  %370 = vst.msk [vmem:[#allocation4 + $0x50] sm:$0xff] %vm68, %v343
  %371 = vst.msk [vmem:[#allocation4 + $0x58] sm:$0xff] %vm68, %v346
  %372 = vst.msk [vmem:[#allocation4 + $0x60] sm:$0xff] %vm68, %v349
  %373 = vst.msk [vmem:[#allocation4 + $0x68] sm:$0xff] %vm68, %v352
  %374 = vst.msk [vmem:[#allocation4 + $0x70] sm:$0xff] %vm68, %v355
  %375 = vst.msk [vmem:[#allocation4 + $0x78] sm:$0xff] %vm68, %v358
  %v376 = vld [vmem:[%s7] sm:$0xff]
  %v377 = vld [vmem:[%s7 + $0x8] sm:$0xff]
  %v378 = vld [vmem:[%s7 + $0x10] sm:$0xff]
  %v379 = vld [vmem:[%s7 + $0x18] sm:$0xff]
  %v380 = vld [vmem:[%s8] sm:$0xff]
  %v381 = vld [vmem:[%s8 + $0x8] sm:$0xff]
  %v382 = vld [vmem:[%s8 + $0x10] sm:$0xff]
  %v383 = vld [vmem:[%s8 + $0x18] sm:$0xff]
  %v384 = vld [vmem:[%s9] sm:$0xff]
  %v385 = vld [vmem:[%s9 + $0x8] sm:$0xff]
  %v386 = vld [vmem:[%s9 + $0x10] sm:$0xff]
  %v387 = vld [vmem:[%s9 + $0x18] sm:$0xff]
  %v388 = vld [vmem:[%s10] sm:$0x1]
  %v390 = vperm.slane %v388, 0
  %v393 = vsel %vm68, 0.0, 0
  %395 = vmatpush.msra.mxu0 0.0
  %396 = vmatpush.msra.mxu0 0.0
  %397 = vmatpush.msra.mxu0 0.0
  %398 = vmatpush.msra.mxu0 0.0
  %399 = vmatpush.msra.mxu0 0.0
  %400 = vmatpush.msra.mxu0 0.0
  %401 = vmatpush.msra.mxu0 0.0
  %402 = vmatpush.msra.mxu0 0.0
  %403 = vmatpush.msra.mxu0 0.0
  %404 = vmatpush.msra.mxu0 0.0
  %405 = vmatpush.msra.mxu0 0.0
  %406 = vmatpush.msra.mxu0 0.0
  %407 = vmatpush.msra.mxu0 %v379
  %408 = vmatpush.msra.mxu0 %v378
  %409 = vmatpush.msra.mxu0 %v377
  %410 = vmatpush.msra.mxu0 %v376
  %411 = vmatmul.f32.gmra.mxu0 %v393
  %v412 = vpop.f32.mrf.mxu0
  %v413 = vadd.f32 0.0, %v412
  %414 = vmatmul.f32.gmra.mxu0 %v393
  %v415 = vpop.f32.mrf.mxu0
  %v416 = vadd.f32 0.0, %v415
  %417 = vdwg.mxu0
  %418 = vmatpush.msra.mxu0 0.0
  %419 = vmatpush.msra.mxu0 0.0
  %420 = vmatpush.msra.mxu0 0.0
  %421 = vmatpush.msra.mxu0 0.0
  %422 = vmatpush.msra.mxu0 0.0
  %423 = vmatpush.msra.mxu0 0.0
  %424 = vmatpush.msra.mxu0 0.0
  %425 = vmatpush.msra.mxu0 0.0
  %426 = vmatpush.msra.mxu0 0.0
  %427 = vmatpush.msra.mxu0 0.0
  %428 = vmatpush.msra.mxu0 0.0
  %429 = vmatpush.msra.mxu0 0.0
  %430 = vmatpush.msra.mxu0 %v383
  %431 = vmatpush.msra.mxu0 %v382
  %432 = vmatpush.msra.mxu0 %v381
  %433 = vmatpush.msra.mxu0 %v380
  %434 = vmatmul.f32.gmra.mxu0 %v393
  %v435 = vpop.f32.mrf.mxu0
  %v436 = vadd.f32 0.0, %v435
  %437 = vmatmul.f32.gmra.mxu0 %v393
  %v438 = vpop.f32.mrf.mxu0
  %v439 = vadd.f32 0.0, %v438
  %440 = vdwg.mxu0
  %441 = vmatpush.msra.mxu0 0.0
  %442 = vmatpush.msra.mxu0 0.0
  %443 = vmatpush.msra.mxu0 0.0
  %444 = vmatpush.msra.mxu0 0.0
  %445 = vmatpush.msra.mxu0 0.0
  %446 = vmatpush.msra.mxu0 0.0
  %447 = vmatpush.msra.mxu0 0.0
  %448 = vmatpush.msra.mxu0 0.0
  %449 = vmatpush.msra.mxu0 0.0
  %450 = vmatpush.msra.mxu0 0.0
  %451 = vmatpush.msra.mxu0 0.0
  %452 = vmatpush.msra.mxu0 0.0
  %453 = vmatpush.msra.mxu0 %v387
  %454 = vmatpush.msra.mxu0 %v386
  %455 = vmatpush.msra.mxu0 %v385
  %456 = vmatpush.msra.mxu0 %v384
  %457 = vmatmul.f32.gmra.mxu0 %v393
  %v458 = vpop.f32.mrf.mxu0
  %v459 = vadd.f32 %v390, %v458
  %460 = vmatmul.f32.gmra.mxu0 %v393
  %v461 = vpop.f32.mrf.mxu0
  %v462 = vadd.f32 %v390, %v461
  %463 = vdwg.mxu0
  %v464 = vld [vmem:[#allocation2] sm:$0xff]
  %v465 = vld [vmem:[#allocation2 + $0x8] sm:$0xff]
  %v466 = vadd.f32 %v464, %v413
  %v467 = vadd.f32 %v465, %v416
  %v468 = vxor.u32 %v466, 2147483648
  %v469 = vxor.u32 %v467, 2147483648
  %v470 = vmul.f32 %v468, 1.442695
  %v471 = vpow.pop %v470
  %v472 = vmul.f32 %v469, 1.442695
  %v473 = vpow.pop %v472
  %v474 = vadd.f32 %v471, 1.0
  %v475 = vadd.f32 %v473, 1.0
  %v476 = vrcp.pop %v474
  %v477 = vmul.f32 %v474, %v476
  %v478 = vsub.f32 1.0, %v477
  %v479 = vmul.f32 %v476, %v478
  %v480 = vadd.f32 %v476, %v479
  %vm481 = vweird.f32 %v474
  %vm482 = vweird.f32 %v476
  %vm483 = vmor %vm481, %vm482
  %v484 = vsel %vm483, %v476, %v480
  %v485 = vand.u32 2147483647, %v474
  %vm486 = vcmp.eq.f32.partialorder %v485, 8.507059e+37
  %v487 = vand.u32 %v474, 2147483648
  %v488 = vor.u32 1.1754944e-38, %v487
  %v489 = vsel %vm486, %v488, %v484
  %v490 = vmul.f32 1.0, %v489
  %v491 = vrcp.pop %v475
  %v492 = vmul.f32 %v475, %v491
  %v493 = vsub.f32 1.0, %v492
  %v494 = vmul.f32 %v491, %v493
  %v495 = vadd.f32 %v491, %v494
  %vm496 = vweird.f32 %v475
  %vm497 = vweird.f32 %v491
  %vm498 = vmor %vm496, %vm497
  %v499 = vsel %vm498, %v491, %v495
  %v500 = vand.u32 2147483647, %v475
  %vm501 = vcmp.eq.f32.partialorder %v500, 8.507059e+37
  %v502 = vand.u32 %v475, 2147483648
  %v503 = vor.u32 1.1754944e-38, %v502
  %v504 = vsel %vm501, %v503, %v499
  %v505 = vmul.f32 1.0, %v504
  %v506 = vld [vmem:[#allocation3] sm:$0xff]
  %v507 = vld [vmem:[#allocation3 + $0x8] sm:$0xff]
  %v508 = vadd.f32 %v506, %v436
  %v509 = vadd.f32 %v507, %v439
  %v510 = vxor.u32 %v508, 2147483648
  %v511 = vxor.u32 %v509, 2147483648
  %v512 = vmul.f32 %v510, 1.442695
  %v513 = vpow.pop %v512
  %v514 = vmul.f32 %v511, 1.442695
  %v515 = vpow.pop %v514
  %v516 = vadd.f32 %v513, 1.0
  %v517 = vadd.f32 %v515, 1.0
  %v518 = vrcp.pop %v516
  %v519 = vmul.f32 %v516, %v518
  %v520 = vsub.f32 1.0, %v519
  %v521 = vmul.f32 %v518, %v520
  %v522 = vadd.f32 %v518, %v521
  %vm523 = vweird.f32 %v516
  %vm524 = vweird.f32 %v518
  %vm525 = vmor %vm523, %vm524
  %v526 = vsel %vm525, %v518, %v522
  %v527 = vand.u32 2147483647, %v516
  %vm528 = vcmp.eq.f32.partialorder %v527, 8.507059e+37
  %v529 = vand.u32 %v516, 2147483648
  %v530 = vor.u32 1.1754944e-38, %v529
  %v531 = vsel %vm528, %v530, %v526
  %v532 = vmul.f32 1.0, %v531
  %v533 = vrcp.pop %v517
  %v534 = vmul.f32 %v517, %v533
  %v535 = vsub.f32 1.0, %v534
  %v536 = vmul.f32 %v533, %v535
  %v537 = vadd.f32 %v533, %v536
  %vm538 = vweird.f32 %v517
  %vm539 = vweird.f32 %v533
  %vm540 = vmor %vm538, %vm539
  %v541 = vsel %vm540, %v533, %v537
  %v542 = vand.u32 2147483647, %v517
  %vm543 = vcmp.eq.f32.partialorder %v542, 8.507059e+37
  %v544 = vand.u32 %v517, 2147483648
  %v545 = vor.u32 1.1754944e-38, %v544
  %v546 = vsel %vm543, %v545, %v541
  %v547 = vmul.f32 1.0, %v546
  %v548 = vld [vmem:[#allocation4] sm:$0xff]
  %v549 = vld [vmem:[#allocation4 + $0x8] sm:$0xff]
  %v550 = vmul.f32 %v490, %v459
  %v551 = vmul.f32 %v505, %v462
  %v552 = vadd.f32 %v548, %v550
  %v553 = vadd.f32 %v549, %v551
  %v554 = vtanh.pop %v552
  %v555 = vtanh.pop %v553
  %v556 = vsub.f32 1.0, %v532
  %v557 = vsub.f32 1.0, %v547
  %v558 = vmul.f32 %v556, %v554
  %v559 = vmul.f32 %v557, %v555
  %v560 = vmul.f32 %v532, 0.0
  %v561 = vmul.f32 %v547, 0.0
  %v562 = vadd.f32 %v558, %v560
  %v563 = vadd.f32 %v559, %v561
  %v565 = vsel %vm68, %v562, 0
  %v568 = vsel %vm68, %v563, 0
  %570 = vmatpush.msra.mxu0 0.0
  %571 = vmatpush.msra.mxu0 0.0
  %572 = vmatpush.msra.mxu0 0.0
  %573 = vmatpush.msra.mxu0 0.0
  %574 = vmatpush.msra.mxu0 0.0
  %575 = vmatpush.msra.mxu0 0.0
  %576 = vmatpush.msra.mxu0 0.0
  %577 = vmatpush.msra.mxu0 0.0
  %578 = vmatpush.msra.mxu0 0.0
  %579 = vmatpush.msra.mxu0 0.0
  %580 = vmatpush.msra.mxu0 0.0
  %581 = vmatpush.msra.mxu0 0.0
  %582 = vmatpush.msra.mxu0 %v379
  %583 = vmatpush.msra.mxu0 %v378
  %584 = vmatpush.msra.mxu0 %v377
  %585 = vmatpush.msra.mxu0 %v376
  %586 = vmatmul.f32.gmra.mxu0 %v565
  %v587 = vpop.f32.mrf.mxu0
  %v588 = vadd.f32 0.0, %v587
  %589 = vmatmul.f32.gmra.mxu0 %v568
  %v590 = vpop.f32.mrf.mxu0
  %v591 = vadd.f32 0.0, %v590
  %592 = vdwg.mxu0
  %593 = vmatpush.msra.mxu0 0.0
  %594 = vmatpush.msra.mxu0 0.0
  %595 = vmatpush.msra.mxu0 0.0
  %596 = vmatpush.msra.mxu0 0.0
  %597 = vmatpush.msra.mxu0 0.0
  %598 = vmatpush.msra.mxu0 0.0
  %599 = vmatpush.msra.mxu0 0.0
  %600 = vmatpush.msra.mxu0 0.0
  %601 = vmatpush.msra.mxu0 0.0
  %602 = vmatpush.msra.mxu0 0.0
  %603 = vmatpush.msra.mxu0 0.0
  %604 = vmatpush.msra.mxu0 0.0
  %605 = vmatpush.msra.mxu0 %v383
  %606 = vmatpush.msra.mxu0 %v382
  %607 = vmatpush.msra.mxu0 %v381
  %608 = vmatpush.msra.mxu0 %v380
  %609 = vmatmul.f32.gmra.mxu0 %v565
  %v610 = vpop.f32.mrf.mxu0
  %v611 = vadd.f32 0.0, %v610
  %612 = vmatmul.f32.gmra.mxu0 %v568
  %v613 = vpop.f32.mrf.mxu0
  %v614 = vadd.f32 0.0, %v613
  %615 = vdwg.mxu0
  %616 = vmatpush.msra.mxu0 0.0
  %617 = vmatpush.msra.mxu0 0.0
  %618 = vmatpush.msra.mxu0 0.0
  %619 = vmatpush.msra.mxu0 0.0
  %620 = vmatpush.msra.mxu0 0.0
  %621 = vmatpush.msra.mxu0 0.0
  %622 = vmatpush.msra.mxu0 0.0
  %623 = vmatpush.msra.mxu0 0.0
  %624 = vmatpush.msra.mxu0 0.0
  %625 = vmatpush.msra.mxu0 0.0
  %626 = vmatpush.msra.mxu0 0.0
  %627 = vmatpush.msra.mxu0 0.0
  %628 = vmatpush.msra.mxu0 %v387
  %629 = vmatpush.msra.mxu0 %v386
  %630 = vmatpush.msra.mxu0 %v385
  %631 = vmatpush.msra.mxu0 %v384
  %632 = vmatmul.f32.gmra.mxu0 %v565
  %v633 = vpop.f32.mrf.mxu0
  %v634 = vadd.f32 %v390, %v633
  %635 = vmatmul.f32.gmra.mxu0 %v568
  %v636 = vpop.f32.mrf.mxu0
  %v637 = vadd.f32 %v390, %v636
  %638 = vdwg.mxu0
  %v639 = vld [vmem:[#allocation2 + $0x10] sm:$0xff]
  %v640 = vld [vmem:[#allocation2 + $0x18] sm:$0xff]
  %v641 = vadd.f32 %v639, %v588
  %v642 = vadd.f32 %v640, %v591
  %v643 = vxor.u32 %v641, 2147483648
  %v644 = vxor.u32 %v642, 2147483648
  %v645 = vmul.f32 %v643, 1.442695
  %v646 = vpow.pop %v645
  %v647 = vmul.f32 %v644, 1.442695
  %v648 = vpow.pop %v647
  %v649 = vadd.f32 %v646, 1.0
  %v650 = vadd.f32 %v648, 1.0
  %v651 = vrcp.pop %v649
  %v652 = vmul.f32 %v649, %v651
  %v653 = vsub.f32 1.0, %v652
  %v654 = vmul.f32 %v651, %v653
  %v655 = vadd.f32 %v651, %v654
  %vm656 = vweird.f32 %v649
  %vm657 = vweird.f32 %v651
  %vm658 = vmor %vm656, %vm657
  %v659 = vsel %vm658, %v651, %v655
  %v660 = vand.u32 2147483647, %v649
  %vm661 = vcmp.eq.f32.partialorder %v660, 8.507059e+37
  %v662 = vand.u32 %v649, 2147483648
  %v663 = vor.u32 1.1754944e-38, %v662
  %v664 = vsel %vm661, %v663, %v659
  %v665 = vmul.f32 1.0, %v664
  %v666 = vrcp.pop %v650
  %v667 = vmul.f32 %v650, %v666
  %v668 = vsub.f32 1.0, %v667
  %v669 = vmul.f32 %v666, %v668
  %v670 = vadd.f32 %v666, %v669
  %vm671 = vweird.f32 %v650
  %vm672 = vweird.f32 %v666
  %vm673 = vmor %vm671, %vm672
  %v674 = vsel %vm673, %v666, %v670
  %v675 = vand.u32 2147483647, %v650
  %vm676 = vcmp.eq.f32.partialorder %v675, 8.507059e+37
  %v677 = vand.u32 %v650, 2147483648
  %v678 = vor.u32 1.1754944e-38, %v677
  %v679 = vsel %vm676, %v678, %v674
  %v680 = vmul.f32 1.0, %v679
  %v681 = vld [vmem:[#allocation3 + $0x10] sm:$0xff]
  %v682 = vld [vmem:[#allocation3 + $0x18] sm:$0xff]
  %v683 = vadd.f32 %v681, %v611
  %v684 = vadd.f32 %v682, %v614
  %v685 = vxor.u32 %v683, 2147483648
  %v686 = vxor.u32 %v684, 2147483648
  %v687 = vmul.f32 %v685, 1.442695
  %v688 = vpow.pop %v687
  %v689 = vmul.f32 %v686, 1.442695
  %v690 = vpow.pop %v689
  %v691 = vadd.f32 %v688, 1.0
  %v692 = vadd.f32 %v690, 1.0
  %v693 = vrcp.pop %v691
  %v694 = vmul.f32 %v691, %v693
  %v695 = vsub.f32 1.0, %v694
  %v696 = vmul.f32 %v693, %v695
  %v697 = vadd.f32 %v693, %v696
  %vm698 = vweird.f32 %v691
  %vm699 = vweird.f32 %v693
  %vm700 = vmor %vm698, %vm699
  %v701 = vsel %vm700, %v693, %v697
  %v702 = vand.u32 2147483647, %v691
  %vm703 = vcmp.eq.f32.partialorder %v702, 8.507059e+37
  %v704 = vand.u32 %v691, 2147483648
  %v705 = vor.u32 1.1754944e-38, %v704
  %v706 = vsel %vm703, %v705, %v701
  %v707 = vmul.f32 1.0, %v706
  %v708 = vrcp.pop %v692
  %v709 = vmul.f32 %v692, %v708
  %v710 = vsub.f32 1.0, %v709
  %v711 = vmul.f32 %v708, %v710
  %v712 = vadd.f32 %v708, %v711
  %vm713 = vweird.f32 %v692
  %vm714 = vweird.f32 %v708
  %vm715 = vmor %vm713, %vm714
  %v716 = vsel %vm715, %v708, %v712
  %v717 = vand.u32 2147483647, %v692
  %vm718 = vcmp.eq.f32.partialorder %v717, 8.507059e+37
  %v719 = vand.u32 %v692, 2147483648
  %v720 = vor.u32 1.1754944e-38, %v719
  %v721 = vsel %vm718, %v720, %v716
  %v722 = vmul.f32 1.0, %v721
  %v723 = vld [vmem:[#allocation4 + $0x10] sm:$0xff]
  %v724 = vld [vmem:[#allocation4 + $0x18] sm:$0xff]
  %v725 = vmul.f32 %v665, %v634
  %v726 = vmul.f32 %v680, %v637
  %v727 = vadd.f32 %v723, %v725
  %v728 = vadd.f32 %v724, %v726
  %v729 = vtanh.pop %v727
  %v730 = vtanh.pop %v728
  %v731 = vsub.f32 1.0, %v707
  %v732 = vsub.f32 1.0, %v722
  %v733 = vmul.f32 %v731, %v729
  %v734 = vmul.f32 %v732, %v730
  %v735 = vmul.f32 %v707, %v562
  %v736 = vmul.f32 %v722, %v563
  %v737 = vadd.f32 %v733, %v735
  %v738 = vadd.f32 %v734, %v736
  %v740 = vsel %vm68, %v737, 0
  %v743 = vsel %vm68, %v738, 0
  %745 = vmatpush.msra.mxu0 0.0
  %746 = vmatpush.msra.mxu0 0.0
  %747 = vmatpush.msra.mxu0 0.0
  %748 = vmatpush.msra.mxu0 0.0
  %749 = vmatpush.msra.mxu0 0.0
  %750 = vmatpush.msra.mxu0 0.0
  %751 = vmatpush.msra.mxu0 0.0
  %752 = vmatpush.msra.mxu0 0.0
  %753 = vmatpush.msra.mxu0 0.0
  %754 = vmatpush.msra.mxu0 0.0
  %755 = vmatpush.msra.mxu0 0.0
  %756 = vmatpush.msra.mxu0 0.0
  %757 = vmatpush.msra.mxu0 %v379
  %758 = vmatpush.msra.mxu0 %v378
  %759 = vmatpush.msra.mxu0 %v377
  %760 = vmatpush.msra.mxu0 %v376
  %761 = vmatmul.f32.gmra.mxu0 %v740
  %v762 = vpop.f32.mrf.mxu0
  %v763 = vadd.f32 0.0, %v762
  %764 = vmatmul.f32.gmra.mxu0 %v743
  %v765 = vpop.f32.mrf.mxu0
  %v766 = vadd.f32 0.0, %v765
  %767 = vdwg.mxu0
  %768 = vmatpush.msra.mxu0 0.0
  %769 = vmatpush.msra.mxu0 0.0
  %770 = vmatpush.msra.mxu0 0.0
  %771 = vmatpush.msra.mxu0 0.0
  %772 = vmatpush.msra.mxu0 0.0
  %773 = vmatpush.msra.mxu0 0.0
  %774 = vmatpush.msra.mxu0 0.0
  %775 = vmatpush.msra.mxu0 0.0
  %776 = vmatpush.msra.mxu0 0.0
  %777 = vmatpush.msra.mxu0 0.0
  %778 = vmatpush.msra.mxu0 0.0
  %779 = vmatpush.msra.mxu0 0.0
  %780 = vmatpush.msra.mxu0 %v383
  %781 = vmatpush.msra.mxu0 %v382
  %782 = vmatpush.msra.mxu0 %v381
  %783 = vmatpush.msra.mxu0 %v380
  %784 = vmatmul.f32.gmra.mxu0 %v740
  %v785 = vpop.f32.mrf.mxu0
  %v786 = vadd.f32 0.0, %v785
  %787 = vmatmul.f32.gmra.mxu0 %v743
  %v788 = vpop.f32.mrf.mxu0
  %v789 = vadd.f32 0.0, %v788
  %790 = vdwg.mxu0
  %791 = vmatpush.msra.mxu0 0.0
  %792 = vmatpush.msra.mxu0 0.0
  %793 = vmatpush.msra.mxu0 0.0
  %794 = vmatpush.msra.mxu0 0.0
  %795 = vmatpush.msra.mxu0 0.0
  %796 = vmatpush.msra.mxu0 0.0
  %797 = vmatpush.msra.mxu0 0.0
  %798 = vmatpush.msra.mxu0 0.0
  %799 = vmatpush.msra.mxu0 0.0
  %800 = vmatpush.msra.mxu0 0.0
  %801 = vmatpush.msra.mxu0 0.0
  %802 = vmatpush.msra.mxu0 0.0
  %803 = vmatpush.msra.mxu0 %v387
  %804 = vmatpush.msra.mxu0 %v386
  %805 = vmatpush.msra.mxu0 %v385
  %806 = vmatpush.msra.mxu0 %v384
  %807 = vmatmul.f32.gmra.mxu0 %v740
  %v808 = vpop.f32.mrf.mxu0
  %v809 = vadd.f32 %v390, %v808
  %810 = vmatmul.f32.gmra.mxu0 %v743
  %v811 = vpop.f32.mrf.mxu0
  %v812 = vadd.f32 %v390, %v811
  %813 = vdwg.mxu0
  %v814 = vld [vmem:[#allocation2 + $0x20] sm:$0xff]
  %v815 = vld [vmem:[#allocation2 + $0x28] sm:$0xff]
  %v816 = vadd.f32 %v814, %v763
  %v817 = vadd.f32 %v815, %v766
  %v818 = vxor.u32 %v816, 2147483648
  %v819 = vxor.u32 %v817, 2147483648
  %v820 = vmul.f32 %v818, 1.442695
  %v821 = vpow.pop %v820
  %v822 = vmul.f32 %v819, 1.442695
  %v823 = vpow.pop %v822
  %v824 = vadd.f32 %v821, 1.0
  %v825 = vadd.f32 %v823, 1.0
  %v826 = vrcp.pop %v824
  %v827 = vmul.f32 %v824, %v826
  %v828 = vsub.f32 1.0, %v827
  %v829 = vmul.f32 %v826, %v828
  %v830 = vadd.f32 %v826, %v829
  %vm831 = vweird.f32 %v824
  %vm832 = vweird.f32 %v826
  %vm833 = vmor %vm831, %vm832
  %v834 = vsel %vm833, %v826, %v830
  %v835 = vand.u32 2147483647, %v824
  %vm836 = vcmp.eq.f32.partialorder %v835, 8.507059e+37
  %v837 = vand.u32 %v824, 2147483648
  %v838 = vor.u32 1.1754944e-38, %v837
  %v839 = vsel %vm836, %v838, %v834
  %v840 = vmul.f32 1.0, %v839
  %v841 = vrcp.pop %v825
  %v842 = vmul.f32 %v825, %v841
  %v843 = vsub.f32 1.0, %v842
  %v844 = vmul.f32 %v841, %v843
  %v845 = vadd.f32 %v841, %v844
  %vm846 = vweird.f32 %v825
  %vm847 = vweird.f32 %v841
  %vm848 = vmor %vm846, %vm847
  %v849 = vsel %vm848, %v841, %v845
  %v850 = vand.u32 2147483647, %v825
  %vm851 = vcmp.eq.f32.partialorder %v850, 8.507059e+37
  %v852 = vand.u32 %v825, 2147483648
  %v853 = vor.u32 1.1754944e-38, %v852
  %v854 = vsel %vm851, %v853, %v849
  %v855 = vmul.f32 1.0, %v854
  %v856 = vld [vmem:[#allocation3 + $0x20] sm:$0xff]
  %v857 = vld [vmem:[#allocation3 + $0x28] sm:$0xff]
  %v858 = vadd.f32 %v856, %v786
  %v859 = vadd.f32 %v857, %v789
  %v860 = vxor.u32 %v858, 2147483648
  %v861 = vxor.u32 %v859, 2147483648
  %v862 = vmul.f32 %v860, 1.442695
  %v863 = vpow.pop %v862
  %v864 = vmul.f32 %v861, 1.442695
  %v865 = vpow.pop %v864
  %v866 = vadd.f32 %v863, 1.0
  %v867 = vadd.f32 %v865, 1.0
  %v868 = vrcp.pop %v866
  %v869 = vmul.f32 %v866, %v868
  %v870 = vsub.f32 1.0, %v869
  %v871 = vmul.f32 %v868, %v870
  %v872 = vadd.f32 %v868, %v871
  %vm873 = vweird.f32 %v866
  %vm874 = vweird.f32 %v868
  %vm875 = vmor %vm873, %vm874
  %v876 = vsel %vm875, %v868, %v872
  %v877 = vand.u32 2147483647, %v866
  %vm878 = vcmp.eq.f32.partialorder %v877, 8.507059e+37
  %v879 = vand.u32 %v866, 2147483648
  %v880 = vor.u32 1.1754944e-38, %v879
  %v881 = vsel %vm878, %v880, %v876
  %v882 = vmul.f32 1.0, %v881
  %v883 = vrcp.pop %v867
  %v884 = vmul.f32 %v867, %v883
  %v885 = vsub.f32 1.0, %v884
  %v886 = vmul.f32 %v883, %v885
  %v887 = vadd.f32 %v883, %v886
  %vm888 = vweird.f32 %v867
  %vm889 = vweird.f32 %v883
  %vm890 = vmor %vm888, %vm889
  %v891 = vsel %vm890, %v883, %v887
  %v892 = vand.u32 2147483647, %v867
  %vm893 = vcmp.eq.f32.partialorder %v892, 8.507059e+37
  %v894 = vand.u32 %v867, 2147483648
  %v895 = vor.u32 1.1754944e-38, %v894
  %v896 = vsel %vm893, %v895, %v891
  %v897 = vmul.f32 1.0, %v896
  %v898 = vld [vmem:[#allocation4 + $0x20] sm:$0xff]
  %v899 = vld [vmem:[#allocation4 + $0x28] sm:$0xff]
  %v900 = vmul.f32 %v840, %v809
  %v901 = vmul.f32 %v855, %v812
  %v902 = vadd.f32 %v898, %v900
  %v903 = vadd.f32 %v899, %v901
  %v904 = vtanh.pop %v902
  %v905 = vtanh.pop %v903
  %v906 = vsub.f32 1.0, %v882
  %v907 = vsub.f32 1.0, %v897
  %v908 = vmul.f32 %v906, %v904
  %v909 = vmul.f32 %v907, %v905
  %v910 = vmul.f32 %v882, %v737
  %v911 = vmul.f32 %v897, %v738
  %v912 = vadd.f32 %v908, %v910
  %v913 = vadd.f32 %v909, %v911
  %v915 = vsel %vm68, %v912, 0
  %v918 = vsel %vm68, %v913, 0
  %920 = vmatpush.msra.mxu0 0.0
  %921 = vmatpush.msra.mxu0 0.0
  %922 = vmatpush.msra.mxu0 0.0
  %923 = vmatpush.msra.mxu0 0.0
  %924 = vmatpush.msra.mxu0 0.0
  %925 = vmatpush.msra.mxu0 0.0
  %926 = vmatpush.msra.mxu0 0.0
  %927 = vmatpush.msra.mxu0 0.0
  %928 = vmatpush.msra.mxu0 0.0
  %929 = vmatpush.msra.mxu0 0.0
  %930 = vmatpush.msra.mxu0 0.0
  %931 = vmatpush.msra.mxu0 0.0
  %932 = vmatpush.msra.mxu0 %v379
  %933 = vmatpush.msra.mxu0 %v378
  %934 = vmatpush.msra.mxu0 %v377
  %935 = vmatpush.msra.mxu0 %v376
  %936 = vmatmul.f32.gmra.mxu0 %v915
  %v937 = vpop.f32.mrf.mxu0
  %v938 = vadd.f32 0.0, %v937
  %939 = vmatmul.f32.gmra.mxu0 %v918
  %v940 = vpop.f32.mrf.mxu0
  %v941 = vadd.f32 0.0, %v940
  %942 = vdwg.mxu0
  %943 = vmatpush.msra.mxu0 0.0
  %944 = vmatpush.msra.mxu0 0.0
  %945 = vmatpush.msra.mxu0 0.0
  %946 = vmatpush.msra.mxu0 0.0
  %947 = vmatpush.msra.mxu0 0.0
  %948 = vmatpush.msra.mxu0 0.0
  %949 = vmatpush.msra.mxu0 0.0
  %950 = vmatpush.msra.mxu0 0.0
  %951 = vmatpush.msra.mxu0 0.0
  %952 = vmatpush.msra.mxu0 0.0
  %953 = vmatpush.msra.mxu0 0.0
  %954 = vmatpush.msra.mxu0 0.0
  %955 = vmatpush.msra.mxu0 %v383
  %956 = vmatpush.msra.mxu0 %v382
  %957 = vmatpush.msra.mxu0 %v381
  %958 = vmatpush.msra.mxu0 %v380
  %959 = vmatmul.f32.gmra.mxu0 %v915
  %v960 = vpop.f32.mrf.mxu0
  %v961 = vadd.f32 0.0, %v960
  %962 = vmatmul.f32.gmra.mxu0 %v918
  %v963 = vpop.f32.mrf.mxu0
  %v964 = vadd.f32 0.0, %v963
  %965 = vdwg.mxu0
  %966 = vmatpush.msra.mxu0 0.0
  %967 = vmatpush.msra.mxu0 0.0
  %968 = vmatpush.msra.mxu0 0.0
  %969 = vmatpush.msra.mxu0 0.0
  %970 = vmatpush.msra.mxu0 0.0
  %971 = vmatpush.msra.mxu0 0.0
  %972 = vmatpush.msra.mxu0 0.0
  %973 = vmatpush.msra.mxu0 0.0
  %974 = vmatpush.msra.mxu0 0.0
  %975 = vmatpush.msra.mxu0 0.0
  %976 = vmatpush.msra.mxu0 0.0
  %977 = vmatpush.msra.mxu0 0.0
  %978 = vmatpush.msra.mxu0 %v387
  %979 = vmatpush.msra.mxu0 %v386
  %980 = vmatpush.msra.mxu0 %v385
  %981 = vmatpush.msra.mxu0 %v384
  %982 = vmatmul.f32.gmra.mxu0 %v915
  %v983 = vpop.f32.mrf.mxu0
  %v984 = vadd.f32 %v390, %v983
  %985 = vmatmul.f32.gmra.mxu0 %v918
  %v986 = vpop.f32.mrf.mxu0
  %v987 = vadd.f32 %v390, %v986
  %988 = vdwg.mxu0
  %v989 = vld [vmem:[#allocation2 + $0x30] sm:$0xff]
  %v990 = vld [vmem:[#allocation2 + $0x38] sm:$0xff]
  %v991 = vadd.f32 %v989, %v938
  %v992 = vadd.f32 %v990, %v941
  %v993 = vxor.u32 %v991, 2147483648
  %v994 = vxor.u32 %v992, 2147483648
  %v995 = vmul.f32 %v993, 1.442695
  %v996 = vpow.pop %v995
  %v997 = vmul.f32 %v994, 1.442695
  %v998 = vpow.pop %v997
  %v999 = vadd.f32 %v996, 1.0
  %v1000 = vadd.f32 %v998, 1.0
  %v1001 = vrcp.pop %v999
  %v1002 = vmul.f32 %v999, %v1001
  %v1003 = vsub.f32 1.0, %v1002
  %v1004 = vmul.f32 %v1001, %v1003
  %v1005 = vadd.f32 %v1001, %v1004
  %vm1006 = vweird.f32 %v999
  %vm1007 = vweird.f32 %v1001
  %vm1008 = vmor %vm1006, %vm1007
  %v1009 = vsel %vm1008, %v1001, %v1005
  %v1010 = vand.u32 2147483647, %v999
  %vm1011 = vcmp.eq.f32.partialorder %v1010, 8.507059e+37
  %v1012 = vand.u32 %v999, 2147483648
  %v1013 = vor.u32 1.1754944e-38, %v1012
  %v1014 = vsel %vm1011, %v1013, %v1009
  %v1015 = vmul.f32 1.0, %v1014
  %v1016 = vrcp.pop %v1000
  %v1017 = vmul.f32 %v1000, %v1016
  %v1018 = vsub.f32 1.0, %v1017
  %v1019 = vmul.f32 %v1016, %v1018
  %v1020 = vadd.f32 %v1016, %v1019
  %vm1021 = vweird.f32 %v1000
  %vm1022 = vweird.f32 %v1016
  %vm1023 = vmor %vm1021, %vm1022
  %v1024 = vsel %vm1023, %v1016, %v1020
  %v1025 = vand.u32 2147483647, %v1000
  %vm1026 = vcmp.eq.f32.partialorder %v1025, 8.507059e+37
  %v1027 = vand.u32 %v1000, 2147483648
  %v1028 = vor.u32 1.1754944e-38, %v1027
  %v1029 = vsel %vm1026, %v1028, %v1024
  %v1030 = vmul.f32 1.0, %v1029
  %v1031 = vld [vmem:[#allocation3 + $0x30] sm:$0xff]
  %v1032 = vld [vmem:[#allocation3 + $0x38] sm:$0xff]
  %v1033 = vadd.f32 %v1031, %v961
  %v1034 = vadd.f32 %v1032, %v964
  %v1035 = vxor.u32 %v1033, 2147483648
  %v1036 = vxor.u32 %v1034, 2147483648
  %v1037 = vmul.f32 %v1035, 1.442695
  %v1038 = vpow.pop %v1037
  %v1039 = vmul.f32 %v1036, 1.442695
  %v1040 = vpow.pop %v1039
  %v1041 = vadd.f32 %v1038, 1.0
  %v1042 = vadd.f32 %v1040, 1.0
  %v1043 = vrcp.pop %v1041
  %v1044 = vmul.f32 %v1041, %v1043
  %v1045 = vsub.f32 1.0, %v1044
  %v1046 = vmul.f32 %v1043, %v1045
  %v1047 = vadd.f32 %v1043, %v1046
  %vm1048 = vweird.f32 %v1041
  %vm1049 = vweird.f32 %v1043
  %vm1050 = vmor %vm1048, %vm1049
  %v1051 = vsel %vm1050, %v1043, %v1047
  %v1052 = vand.u32 2147483647, %v1041
  %vm1053 = vcmp.eq.f32.partialorder %v1052, 8.507059e+37
  %v1054 = vand.u32 %v1041, 2147483648
  %v1055 = vor.u32 1.1754944e-38, %v1054
  %v1056 = vsel %vm1053, %v1055, %v1051
  %v1057 = vmul.f32 1.0, %v1056
  %v1058 = vrcp.pop %v1042
  %v1059 = vmul.f32 %v1042, %v1058
  %v1060 = vsub.f32 1.0, %v1059
  %v1061 = vmul.f32 %v1058, %v1060
  %v1062 = vadd.f32 %v1058, %v1061
  %vm1063 = vweird.f32 %v1042
  %vm1064 = vweird.f32 %v1058
  %vm1065 = vmor %vm1063, %vm1064
  %v1066 = vsel %vm1065, %v1058, %v1062
  %v1067 = vand.u32 2147483647, %v1042
  %vm1068 = vcmp.eq.f32.partialorder %v1067, 8.507059e+37
  %v1069 = vand.u32 %v1042, 2147483648
  %v1070 = vor.u32 1.1754944e-38, %v1069
  %v1071 = vsel %vm1068, %v1070, %v1066
  %v1072 = vmul.f32 1.0, %v1071
  %v1073 = vld [vmem:[#allocation4 + $0x30] sm:$0xff]
  %v1074 = vld [vmem:[#allocation4 + $0x38] sm:$0xff]
  %v1075 = vmul.f32 %v1015, %v984
  %v1076 = vmul.f32 %v1030, %v987
  %v1077 = vadd.f32 %v1073, %v1075
  %v1078 = vadd.f32 %v1074, %v1076
  %v1079 = vtanh.pop %v1077
  %v1080 = vtanh.pop %v1078
  %v1081 = vsub.f32 1.0, %v1057
  %v1082 = vsub.f32 1.0, %v1072
  %v1083 = vmul.f32 %v1081, %v1079
  %v1084 = vmul.f32 %v1082, %v1080
  %v1085 = vmul.f32 %v1057, %v912
  %v1086 = vmul.f32 %v1072, %v913
  %v1087 = vadd.f32 %v1083, %v1085
  %v1088 = vadd.f32 %v1084, %v1086
  %v1090 = vsel %vm68, %v1087, 0
  %v1093 = vsel %vm68, %v1088, 0
  %1095 = vmatpush.msra.mxu0 0.0
  %1096 = vmatpush.msra.mxu0 0.0
  %1097 = vmatpush.msra.mxu0 0.0
  %1098 = vmatpush.msra.mxu0 0.0
  %1099 = vmatpush.msra.mxu0 0.0
  %1100 = vmatpush.msra.mxu0 0.0
  %1101 = vmatpush.msra.mxu0 0.0
  %1102 = vmatpush.msra.mxu0 0.0
  %1103 = vmatpush.msra.mxu0 0.0
  %1104 = vmatpush.msra.mxu0 0.0
  %1105 = vmatpush.msra.mxu0 0.0
  %1106 = vmatpush.msra.mxu0 0.0
  %1107 = vmatpush.msra.mxu0 %v379
  %1108 = vmatpush.msra.mxu0 %v378
  %1109 = vmatpush.msra.mxu0 %v377
  %1110 = vmatpush.msra.mxu0 %v376
  %1111 = vmatmul.f32.gmra.mxu0 %v1090
  %v1112 = vpop.f32.mrf.mxu0
  %v1113 = vadd.f32 0.0, %v1112
  %1114 = vmatmul.f32.gmra.mxu0 %v1093
  %v1115 = vpop.f32.mrf.mxu0
  %v1116 = vadd.f32 0.0, %v1115
  %1117 = vdwg.mxu0
  %1118 = vmatpush.msra.mxu0 0.0
  %1119 = vmatpush.msra.mxu0 0.0
  %1120 = vmatpush.msra.mxu0 0.0
  %1121 = vmatpush.msra.mxu0 0.0
  %1122 = vmatpush.msra.mxu0 0.0
  %1123 = vmatpush.msra.mxu0 0.0
  %1124 = vmatpush.msra.mxu0 0.0
  %1125 = vmatpush.msra.mxu0 0.0
  %1126 = vmatpush.msra.mxu0 0.0
  %1127 = vmatpush.msra.mxu0 0.0
  %1128 = vmatpush.msra.mxu0 0.0
  %1129 = vmatpush.msra.mxu0 0.0
  %1130 = vmatpush.msra.mxu0 %v383
  %1131 = vmatpush.msra.mxu0 %v382
  %1132 = vmatpush.msra.mxu0 %v381
  %1133 = vmatpush.msra.mxu0 %v380
  %1134 = vmatmul.f32.gmra.mxu0 %v1090
  %v1135 = vpop.f32.mrf.mxu0
  %v1136 = vadd.f32 0.0, %v1135
  %1137 = vmatmul.f32.gmra.mxu0 %v1093
  %v1138 = vpop.f32.mrf.mxu0
  %v1139 = vadd.f32 0.0, %v1138
  %1140 = vdwg.mxu0
  %1141 = vmatpush.msra.mxu0 0.0
  %1142 = vmatpush.msra.mxu0 0.0
  %1143 = vmatpush.msra.mxu0 0.0
  %1144 = vmatpush.msra.mxu0 0.0
  %1145 = vmatpush.msra.mxu0 0.0
  %1146 = vmatpush.msra.mxu0 0.0
  %1147 = vmatpush.msra.mxu0 0.0
  %1148 = vmatpush.msra.mxu0 0.0
  %1149 = vmatpush.msra.mxu0 0.0
  %1150 = vmatpush.msra.mxu0 0.0
  %1151 = vmatpush.msra.mxu0 0.0
  %1152 = vmatpush.msra.mxu0 0.0
  %1153 = vmatpush.msra.mxu0 %v387
  %1154 = vmatpush.msra.mxu0 %v386
  %1155 = vmatpush.msra.mxu0 %v385
  %1156 = vmatpush.msra.mxu0 %v384
  %1157 = vmatmul.f32.gmra.mxu0 %v1090
  %v1158 = vpop.f32.mrf.mxu0
  %v1159 = vadd.f32 %v390, %v1158
  %1160 = vmatmul.f32.gmra.mxu0 %v1093
  %v1161 = vpop.f32.mrf.mxu0
  %v1162 = vadd.f32 %v390, %v1161
  %1163 = vdwg.mxu0
  %v1164 = vld [vmem:[#allocation2 + $0x40] sm:$0xff]
  %v1165 = vld [vmem:[#allocation2 + $0x48] sm:$0xff]
  %v1166 = vadd.f32 %v1164, %v1113
  %v1167 = vadd.f32 %v1165, %v1116
  %v1168 = vxor.u32 %v1166, 2147483648
  %v1169 = vxor.u32 %v1167, 2147483648
  %v1170 = vmul.f32 %v1168, 1.442695
  %v1171 = vpow.pop %v1170
  %v1172 = vmul.f32 %v1169, 1.442695
  %v1173 = vpow.pop %v1172
  %v1174 = vadd.f32 %v1171, 1.0
  %v1175 = vadd.f32 %v1173, 1.0
  %v1176 = vrcp.pop %v1174
  %v1177 = vmul.f32 %v1174, %v1176
  %v1178 = vsub.f32 1.0, %v1177
  %v1179 = vmul.f32 %v1176, %v1178
  %v1180 = vadd.f32 %v1176, %v1179
  %vm1181 = vweird.f32 %v1174
  %vm1182 = vweird.f32 %v1176
  %vm1183 = vmor %vm1181, %vm1182
  %v1184 = vsel %vm1183, %v1176, %v1180
  %v1185 = vand.u32 2147483647, %v1174
  %vm1186 = vcmp.eq.f32.partialorder %v1185, 8.507059e+37
  %v1187 = vand.u32 %v1174, 2147483648
  %v1188 = vor.u32 1.1754944e-38, %v1187
  %v1189 = vsel %vm1186, %v1188, %v1184
  %v1190 = vmul.f32 1.0, %v1189
  %v1191 = vrcp.pop %v1175
  %v1192 = vmul.f32 %v1175, %v1191
  %v1193 = vsub.f32 1.0, %v1192
  %v1194 = vmul.f32 %v1191, %v1193
  %v1195 = vadd.f32 %v1191, %v1194
  %vm1196 = vweird.f32 %v1175
  %vm1197 = vweird.f32 %v1191
  %vm1198 = vmor %vm1196, %vm1197
  %v1199 = vsel %vm1198, %v1191, %v1195
  %v1200 = vand.u32 2147483647, %v1175
  %vm1201 = vcmp.eq.f32.partialorder %v1200, 8.507059e+37
  %v1202 = vand.u32 %v1175, 2147483648
  %v1203 = vor.u32 1.1754944e-38, %v1202
  %v1204 = vsel %vm1201, %v1203, %v1199
  %v1205 = vmul.f32 1.0, %v1204
  %v1206 = vld [vmem:[#allocation3 + $0x40] sm:$0xff]
  %v1207 = vld [vmem:[#allocation3 + $0x48] sm:$0xff]
  %v1208 = vadd.f32 %v1206, %v1136
  %v1209 = vadd.f32 %v1207, %v1139
  %v1210 = vxor.u32 %v1208, 2147483648
  %v1211 = vxor.u32 %v1209, 2147483648
  %v1212 = vmul.f32 %v1210, 1.442695
  %v1213 = vpow.pop %v1212
  %v1214 = vmul.f32 %v1211, 1.442695
  %v1215 = vpow.pop %v1214
  %v1216 = vadd.f32 %v1213, 1.0
  %v1217 = vadd.f32 %v1215, 1.0
  %v1218 = vrcp.pop %v1216
  %v1219 = vmul.f32 %v1216, %v1218
  %v1220 = vsub.f32 1.0, %v1219
  %v1221 = vmul.f32 %v1218, %v1220
  %v1222 = vadd.f32 %v1218, %v1221
  %vm1223 = vweird.f32 %v1216
  %vm1224 = vweird.f32 %v1218
  %vm1225 = vmor %vm1223, %vm1224
  %v1226 = vsel %vm1225, %v1218, %v1222
  %v1227 = vand.u32 2147483647, %v1216
  %vm1228 = vcmp.eq.f32.partialorder %v1227, 8.507059e+37
  %v1229 = vand.u32 %v1216, 2147483648
  %v1230 = vor.u32 1.1754944e-38, %v1229
  %v1231 = vsel %vm1228, %v1230, %v1226
  %v1232 = vmul.f32 1.0, %v1231
  %v1233 = vrcp.pop %v1217
  %v1234 = vmul.f32 %v1217, %v1233
  %v1235 = vsub.f32 1.0, %v1234
  %v1236 = vmul.f32 %v1233, %v1235
  %v1237 = vadd.f32 %v1233, %v1236
  %vm1238 = vweird.f32 %v1217
  %vm1239 = vweird.f32 %v1233
  %vm1240 = vmor %vm1238, %vm1239
  %v1241 = vsel %vm1240, %v1233, %v1237
  %v1242 = vand.u32 2147483647, %v1217
  %vm1243 = vcmp.eq.f32.partialorder %v1242, 8.507059e+37
  %v1244 = vand.u32 %v1217, 2147483648
  %v1245 = vor.u32 1.1754944e-38, %v1244
  %v1246 = vsel %vm1243, %v1245, %v1241
  %v1247 = vmul.f32 1.0, %v1246
  %v1248 = vld [vmem:[#allocation4 + $0x40] sm:$0xff]
  %v1249 = vld [vmem:[#allocation4 + $0x48] sm:$0xff]
  %v1250 = vmul.f32 %v1190, %v1159
  %v1251 = vmul.f32 %v1205, %v1162
  %v1252 = vadd.f32 %v1248, %v1250
  %v1253 = vadd.f32 %v1249, %v1251
  %v1254 = vtanh.pop %v1252
  %v1255 = vtanh.pop %v1253
  %v1256 = vsub.f32 1.0, %v1232
  %v1257 = vsub.f32 1.0, %v1247
  %v1258 = vmul.f32 %v1256, %v1254
  %v1259 = vmul.f32 %v1257, %v1255
  %v1260 = vmul.f32 %v1232, %v1087
  %v1261 = vmul.f32 %v1247, %v1088
  %v1262 = vadd.f32 %v1258, %v1260
  %v1263 = vadd.f32 %v1259, %v1261
  %v1265 = vsel %vm68, %v1262, 0
  %v1268 = vsel %vm68, %v1263, 0
  %1270 = vmatpush.msra.mxu0 0.0
  %1271 = vmatpush.msra.mxu0 0.0
  %1272 = vmatpush.msra.mxu0 0.0
  %1273 = vmatpush.msra.mxu0 0.0
  %1274 = vmatpush.msra.mxu0 0.0
  %1275 = vmatpush.msra.mxu0 0.0
  %1276 = vmatpush.msra.mxu0 0.0
  %1277 = vmatpush.msra.mxu0 0.0
  %1278 = vmatpush.msra.mxu0 0.0
  %1279 = vmatpush.msra.mxu0 0.0
  %1280 = vmatpush.msra.mxu0 0.0
  %1281 = vmatpush.msra.mxu0 0.0
  %1282 = vmatpush.msra.mxu0 %v379
  %1283 = vmatpush.msra.mxu0 %v378
  %1284 = vmatpush.msra.mxu0 %v377
  %1285 = vmatpush.msra.mxu0 %v376
  %1286 = vmatmul.f32.gmra.mxu0 %v1265
  %v1287 = vpop.f32.mrf.mxu0
  %v1288 = vadd.f32 0.0, %v1287
  %1289 = vmatmul.f32.gmra.mxu0 %v1268
  %v1290 = vpop.f32.mrf.mxu0
  %v1291 = vadd.f32 0.0, %v1290
  %1292 = vdwg.mxu0
  %1293 = vmatpush.msra.mxu0 0.0
  %1294 = vmatpush.msra.mxu0 0.0
  %1295 = vmatpush.msra.mxu0 0.0
  %1296 = vmatpush.msra.mxu0 0.0
  %1297 = vmatpush.msra.mxu0 0.0
  %1298 = vmatpush.msra.mxu0 0.0
  %1299 = vmatpush.msra.mxu0 0.0
  %1300 = vmatpush.msra.mxu0 0.0
  %1301 = vmatpush.msra.mxu0 0.0
  %1302 = vmatpush.msra.mxu0 0.0
  %1303 = vmatpush.msra.mxu0 0.0
  %1304 = vmatpush.msra.mxu0 0.0
  %1305 = vmatpush.msra.mxu0 %v383
  %1306 = vmatpush.msra.mxu0 %v382
  %1307 = vmatpush.msra.mxu0 %v381
  %1308 = vmatpush.msra.mxu0 %v380
  %1309 = vmatmul.f32.gmra.mxu0 %v1265
  %v1310 = vpop.f32.mrf.mxu0
  %v1311 = vadd.f32 0.0, %v1310
  %1312 = vmatmul.f32.gmra.mxu0 %v1268
  %v1313 = vpop.f32.mrf.mxu0
  %v1314 = vadd.f32 0.0, %v1313
  %1315 = vdwg.mxu0
  %1316 = vmatpush.msra.mxu0 0.0
  %1317 = vmatpush.msra.mxu0 0.0
  %1318 = vmatpush.msra.mxu0 0.0
  %1319 = vmatpush.msra.mxu0 0.0
  %1320 = vmatpush.msra.mxu0 0.0
  %1321 = vmatpush.msra.mxu0 0.0
  %1322 = vmatpush.msra.mxu0 0.0
  %1323 = vmatpush.msra.mxu0 0.0
  %1324 = vmatpush.msra.mxu0 0.0
  %1325 = vmatpush.msra.mxu0 0.0
  %1326 = vmatpush.msra.mxu0 0.0
  %1327 = vmatpush.msra.mxu0 0.0
  %1328 = vmatpush.msra.mxu0 %v387
  %1329 = vmatpush.msra.mxu0 %v386
  %1330 = vmatpush.msra.mxu0 %v385
  %1331 = vmatpush.msra.mxu0 %v384
  %1332 = vmatmul.f32.gmra.mxu0 %v1265
  %v1333 = vpop.f32.mrf.mxu0
  %v1334 = vadd.f32 %v390, %v1333
  %1335 = vmatmul.f32.gmra.mxu0 %v1268
  %v1336 = vpop.f32.mrf.mxu0
  %v1337 = vadd.f32 %v390, %v1336
  %1338 = vdwg.mxu0
  %v1339 = vld [vmem:[#allocation2 + $0x50] sm:$0xff]
  %v1340 = vld [vmem:[#allocation2 + $0x58] sm:$0xff]
  %v1341 = vadd.f32 %v1339, %v1288
  %v1342 = vadd.f32 %v1340, %v1291
  %v1343 = vxor.u32 %v1341, 2147483648
  %v1344 = vxor.u32 %v1342, 2147483648
  %v1345 = vmul.f32 %v1343, 1.442695
  %v1346 = vpow.pop %v1345
  %v1347 = vmul.f32 %v1344, 1.442695
  %v1348 = vpow.pop %v1347
  %v1349 = vadd.f32 %v1346, 1.0
  %v1350 = vadd.f32 %v1348, 1.0
  %v1351 = vrcp.pop %v1349
  %v1352 = vmul.f32 %v1349, %v1351
  %v1353 = vsub.f32 1.0, %v1352
  %v1354 = vmul.f32 %v1351, %v1353
  %v1355 = vadd.f32 %v1351, %v1354
  %vm1356 = vweird.f32 %v1349
  %vm1357 = vweird.f32 %v1351
  %vm1358 = vmor %vm1356, %vm1357
  %v1359 = vsel %vm1358, %v1351, %v1355
  %v1360 = vand.u32 2147483647, %v1349
  %vm1361 = vcmp.eq.f32.partialorder %v1360, 8.507059e+37
  %v1362 = vand.u32 %v1349, 2147483648
  %v1363 = vor.u32 1.1754944e-38, %v1362
  %v1364 = vsel %vm1361, %v1363, %v1359
  %v1365 = vmul.f32 1.0, %v1364
  %v1366 = vrcp.pop %v1350
  %v1367 = vmul.f32 %v1350, %v1366
  %v1368 = vsub.f32 1.0, %v1367
  %v1369 = vmul.f32 %v1366, %v1368
  %v1370 = vadd.f32 %v1366, %v1369
  %vm1371 = vweird.f32 %v1350
  %vm1372 = vweird.f32 %v1366
  %vm1373 = vmor %vm1371, %vm1372
  %v1374 = vsel %vm1373, %v1366, %v1370
  %v1375 = vand.u32 2147483647, %v1350
  %vm1376 = vcmp.eq.f32.partialorder %v1375, 8.507059e+37
  %v1377 = vand.u32 %v1350, 2147483648
  %v1378 = vor.u32 1.1754944e-38, %v1377
  %v1379 = vsel %vm1376, %v1378, %v1374
  %v1380 = vmul.f32 1.0, %v1379
  %v1381 = vld [vmem:[#allocation3 + $0x50] sm:$0xff]
  %v1382 = vld [vmem:[#allocation3 + $0x58] sm:$0xff]
  %v1383 = vadd.f32 %v1381, %v1311
  %v1384 = vadd.f32 %v1382, %v1314
  %v1385 = vxor.u32 %v1383, 2147483648
  %v1386 = vxor.u32 %v1384, 2147483648
  %v1387 = vmul.f32 %v1385, 1.442695
  %v1388 = vpow.pop %v1387
  %v1389 = vmul.f32 %v1386, 1.442695
  %v1390 = vpow.pop %v1389
  %v1391 = vadd.f32 %v1388, 1.0
  %v1392 = vadd.f32 %v1390, 1.0
  %v1393 = vrcp.pop %v1391
  %v1394 = vmul.f32 %v1391, %v1393
  %v1395 = vsub.f32 1.0, %v1394
  %v1396 = vmul.f32 %v1393, %v1395
  %v1397 = vadd.f32 %v1393, %v1396
  %vm1398 = vweird.f32 %v1391
  %vm1399 = vweird.f32 %v1393
  %vm1400 = vmor %vm1398, %vm1399
  %v1401 = vsel %vm1400, %v1393, %v1397
  %v1402 = vand.u32 2147483647, %v1391
  %vm1403 = vcmp.eq.f32.partialorder %v1402, 8.507059e+37
  %v1404 = vand.u32 %v1391, 2147483648
  %v1405 = vor.u32 1.1754944e-38, %v1404
  %v1406 = vsel %vm1403, %v1405, %v1401
  %v1407 = vmul.f32 1.0, %v1406
  %v1408 = vrcp.pop %v1392
  %v1409 = vmul.f32 %v1392, %v1408
  %v1410 = vsub.f32 1.0, %v1409
  %v1411 = vmul.f32 %v1408, %v1410
  %v1412 = vadd.f32 %v1408, %v1411
  %vm1413 = vweird.f32 %v1392
  %vm1414 = vweird.f32 %v1408
  %vm1415 = vmor %vm1413, %vm1414
  %v1416 = vsel %vm1415, %v1408, %v1412
  %v1417 = vand.u32 2147483647, %v1392
  %vm1418 = vcmp.eq.f32.partialorder %v1417, 8.507059e+37
  %v1419 = vand.u32 %v1392, 2147483648
  %v1420 = vor.u32 1.1754944e-38, %v1419
  %v1421 = vsel %vm1418, %v1420, %v1416
  %v1422 = vmul.f32 1.0, %v1421
  %v1423 = vld [vmem:[#allocation4 + $0x50] sm:$0xff]
  %v1424 = vld [vmem:[#allocation4 + $0x58] sm:$0xff]
  %v1425 = vmul.f32 %v1365, %v1334
  %v1426 = vmul.f32 %v1380, %v1337
  %v1427 = vadd.f32 %v1423, %v1425
  %v1428 = vadd.f32 %v1424, %v1426
  %v1429 = vtanh.pop %v1427
  %v1430 = vtanh.pop %v1428
  %v1431 = vsub.f32 1.0, %v1407
  %v1432 = vsub.f32 1.0, %v1422
  %v1433 = vmul.f32 %v1431, %v1429
  %v1434 = vmul.f32 %v1432, %v1430
  %v1435 = vmul.f32 %v1407, %v1262
  %v1436 = vmul.f32 %v1422, %v1263
  %v1437 = vadd.f32 %v1433, %v1435
  %v1438 = vadd.f32 %v1434, %v1436
  %v1440 = vsel %vm68, %v1437, 0
  %v1443 = vsel %vm68, %v1438, 0
  %1445 = vmatpush.msra.mxu0 0.0
  %1446 = vmatpush.msra.mxu0 0.0
  %1447 = vmatpush.msra.mxu0 0.0
  %1448 = vmatpush.msra.mxu0 0.0
  %1449 = vmatpush.msra.mxu0 0.0
  %1450 = vmatpush.msra.mxu0 0.0
  %1451 = vmatpush.msra.mxu0 0.0
  %1452 = vmatpush.msra.mxu0 0.0
  %1453 = vmatpush.msra.mxu0 0.0
  %1454 = vmatpush.msra.mxu0 0.0
  %1455 = vmatpush.msra.mxu0 0.0
  %1456 = vmatpush.msra.mxu0 0.0
  %1457 = vmatpush.msra.mxu0 %v379
  %1458 = vmatpush.msra.mxu0 %v378
  %1459 = vmatpush.msra.mxu0 %v377
  %1460 = vmatpush.msra.mxu0 %v376
  %1461 = vmatmul.f32.gmra.mxu0 %v1440
  %v1462 = vpop.f32.mrf.mxu0
  %v1463 = vadd.f32 0.0, %v1462
  %1464 = vmatmul.f32.gmra.mxu0 %v1443
  %v1465 = vpop.f32.mrf.mxu0
  %v1466 = vadd.f32 0.0, %v1465
  %1467 = vdwg.mxu0
  %1468 = vmatpush.msra.mxu0 0.0
  %1469 = vmatpush.msra.mxu0 0.0
  %1470 = vmatpush.msra.mxu0 0.0
  %1471 = vmatpush.msra.mxu0 0.0
  %1472 = vmatpush.msra.mxu0 0.0
  %1473 = vmatpush.msra.mxu0 0.0
  %1474 = vmatpush.msra.mxu0 0.0
  %1475 = vmatpush.msra.mxu0 0.0
  %1476 = vmatpush.msra.mxu0 0.0
  %1477 = vmatpush.msra.mxu0 0.0
  %1478 = vmatpush.msra.mxu0 0.0
  %1479 = vmatpush.msra.mxu0 0.0
  %1480 = vmatpush.msra.mxu0 %v383
  %1481 = vmatpush.msra.mxu0 %v382
  %1482 = vmatpush.msra.mxu0 %v381
  %1483 = vmatpush.msra.mxu0 %v380
  %1484 = vmatmul.f32.gmra.mxu0 %v1440
  %v1485 = vpop.f32.mrf.mxu0
  %v1486 = vadd.f32 0.0, %v1485
  %1487 = vmatmul.f32.gmra.mxu0 %v1443
  %v1488 = vpop.f32.mrf.mxu0
  %v1489 = vadd.f32 0.0, %v1488
  %1490 = vdwg.mxu0
  %1491 = vmatpush.msra.mxu0 0.0
  %1492 = vmatpush.msra.mxu0 0.0
  %1493 = vmatpush.msra.mxu0 0.0
  %1494 = vmatpush.msra.mxu0 0.0
  %1495 = vmatpush.msra.mxu0 0.0
  %1496 = vmatpush.msra.mxu0 0.0
  %1497 = vmatpush.msra.mxu0 0.0
  %1498 = vmatpush.msra.mxu0 0.0
  %1499 = vmatpush.msra.mxu0 0.0
  %1500 = vmatpush.msra.mxu0 0.0
  %1501 = vmatpush.msra.mxu0 0.0
  %1502 = vmatpush.msra.mxu0 0.0
  %1503 = vmatpush.msra.mxu0 %v387
  %1504 = vmatpush.msra.mxu0 %v386
  %1505 = vmatpush.msra.mxu0 %v385
  %1506 = vmatpush.msra.mxu0 %v384
  %1507 = vmatmul.f32.gmra.mxu0 %v1440
  %v1508 = vpop.f32.mrf.mxu0
  %v1509 = vadd.f32 %v390, %v1508
  %1510 = vmatmul.f32.gmra.mxu0 %v1443
  %v1511 = vpop.f32.mrf.mxu0
  %v1512 = vadd.f32 %v390, %v1511
  %1513 = vdwg.mxu0
  %v1514 = vld [vmem:[#allocation2 + $0x60] sm:$0xff]
  %v1515 = vld [vmem:[#allocation2 + $0x68] sm:$0xff]
  %v1516 = vadd.f32 %v1514, %v1463
  %v1517 = vadd.f32 %v1515, %v1466
  %v1518 = vxor.u32 %v1516, 2147483648
  %v1519 = vxor.u32 %v1517, 2147483648
  %v1520 = vmul.f32 %v1518, 1.442695
  %v1521 = vpow.pop %v1520
  %v1522 = vmul.f32 %v1519, 1.442695
  %v1523 = vpow.pop %v1522
  %v1524 = vadd.f32 %v1521, 1.0
  %v1525 = vadd.f32 %v1523, 1.0
  %v1526 = vrcp.pop %v1524
  %v1527 = vmul.f32 %v1524, %v1526
  %v1528 = vsub.f32 1.0, %v1527
  %v1529 = vmul.f32 %v1526, %v1528
  %v1530 = vadd.f32 %v1526, %v1529
  %vm1531 = vweird.f32 %v1524
  %vm1532 = vweird.f32 %v1526
  %vm1533 = vmor %vm1531, %vm1532
  %v1534 = vsel %vm1533, %v1526, %v1530
  %v1535 = vand.u32 2147483647, %v1524
  %vm1536 = vcmp.eq.f32.partialorder %v1535, 8.507059e+37
  %v1537 = vand.u32 %v1524, 2147483648
  %v1538 = vor.u32 1.1754944e-38, %v1537
  %v1539 = vsel %vm1536, %v1538, %v1534
  %v1540 = vmul.f32 1.0, %v1539
  %v1541 = vrcp.pop %v1525
  %v1542 = vmul.f32 %v1525, %v1541
  %v1543 = vsub.f32 1.0, %v1542
  %v1544 = vmul.f32 %v1541, %v1543
  %v1545 = vadd.f32 %v1541, %v1544
  %vm1546 = vweird.f32 %v1525
  %vm1547 = vweird.f32 %v1541
  %vm1548 = vmor %vm1546, %vm1547
  %v1549 = vsel %vm1548, %v1541, %v1545
  %v1550 = vand.u32 2147483647, %v1525
  %vm1551 = vcmp.eq.f32.partialorder %v1550, 8.507059e+37
  %v1552 = vand.u32 %v1525, 2147483648
  %v1553 = vor.u32 1.1754944e-38, %v1552
  %v1554 = vsel %vm1551, %v1553, %v1549
  %v1555 = vmul.f32 1.0, %v1554
  %v1556 = vld [vmem:[#allocation3 + $0x60] sm:$0xff]
  %v1557 = vld [vmem:[#allocation3 + $0x68] sm:$0xff]
  %v1558 = vadd.f32 %v1556, %v1486
  %v1559 = vadd.f32 %v1557, %v1489
  %v1560 = vxor.u32 %v1558, 2147483648
  %v1561 = vxor.u32 %v1559, 2147483648
  %v1562 = vmul.f32 %v1560, 1.442695
  %v1563 = vpow.pop %v1562
  %v1564 = vmul.f32 %v1561, 1.442695
  %v1565 = vpow.pop %v1564
  %v1566 = vadd.f32 %v1563, 1.0
  %v1567 = vadd.f32 %v1565, 1.0
  %v1568 = vrcp.pop %v1566
  %v1569 = vmul.f32 %v1566, %v1568
  %v1570 = vsub.f32 1.0, %v1569
  %v1571 = vmul.f32 %v1568, %v1570
  %v1572 = vadd.f32 %v1568, %v1571
  %vm1573 = vweird.f32 %v1566
  %vm1574 = vweird.f32 %v1568
  %vm1575 = vmor %vm1573, %vm1574
  %v1576 = vsel %vm1575, %v1568, %v1572
  %v1577 = vand.u32 2147483647, %v1566
  %vm1578 = vcmp.eq.f32.partialorder %v1577, 8.507059e+37
  %v1579 = vand.u32 %v1566, 2147483648
  %v1580 = vor.u32 1.1754944e-38, %v1579
  %v1581 = vsel %vm1578, %v1580, %v1576
  %v1582 = vmul.f32 1.0, %v1581
  %v1583 = vrcp.pop %v1567
  %v1584 = vmul.f32 %v1567, %v1583
  %v1585 = vsub.f32 1.0, %v1584
  %v1586 = vmul.f32 %v1583, %v1585
  %v1587 = vadd.f32 %v1583, %v1586
  %vm1588 = vweird.f32 %v1567
  %vm1589 = vweird.f32 %v1583
  %vm1590 = vmor %vm1588, %vm1589
  %v1591 = vsel %vm1590, %v1583, %v1587
  %v1592 = vand.u32 2147483647, %v1567
  %vm1593 = vcmp.eq.f32.partialorder %v1592, 8.507059e+37
  %v1594 = vand.u32 %v1567, 2147483648
  %v1595 = vor.u32 1.1754944e-38, %v1594
  %v1596 = vsel %vm1593, %v1595, %v1591
  %v1597 = vmul.f32 1.0, %v1596
  %v1598 = vld [vmem:[#allocation4 + $0x60] sm:$0xff]
  %v1599 = vld [vmem:[#allocation4 + $0x68] sm:$0xff]
  %v1600 = vmul.f32 %v1540, %v1509
  %v1601 = vmul.f32 %v1555, %v1512
  %v1602 = vadd.f32 %v1598, %v1600
  %v1603 = vadd.f32 %v1599, %v1601
  %v1604 = vtanh.pop %v1602
  %v1605 = vtanh.pop %v1603
  %v1606 = vsub.f32 1.0, %v1582
  %v1607 = vsub.f32 1.0, %v1597
  %v1608 = vmul.f32 %v1606, %v1604
  %v1609 = vmul.f32 %v1607, %v1605
  %v1610 = vmul.f32 %v1582, %v1437
  %v1611 = vmul.f32 %v1597, %v1438
  %v1612 = vadd.f32 %v1608, %v1610
  %v1613 = vadd.f32 %v1609, %v1611
  %v1615 = vsel %vm68, %v1612, 0
  %v1618 = vsel %vm68, %v1613, 0
  %1620 = vmatpush.msra.mxu0 0.0
  %1621 = vmatpush.msra.mxu0 0.0
  %1622 = vmatpush.msra.mxu0 0.0
  %1623 = vmatpush.msra.mxu0 0.0
  %1624 = vmatpush.msra.mxu0 0.0
  %1625 = vmatpush.msra.mxu0 0.0
  %1626 = vmatpush.msra.mxu0 0.0
  %1627 = vmatpush.msra.mxu0 0.0
  %1628 = vmatpush.msra.mxu0 0.0
  %1629 = vmatpush.msra.mxu0 0.0
  %1630 = vmatpush.msra.mxu0 0.0
  %1631 = vmatpush.msra.mxu0 0.0
  %1632 = vmatpush.msra.mxu0 %v379
  %1633 = vmatpush.msra.mxu0 %v378
  %1634 = vmatpush.msra.mxu0 %v377
  %1635 = vmatpush.msra.mxu0 %v376
  %1636 = vmatmul.f32.gmra.mxu0 %v1615
  %v1637 = vpop.f32.mrf.mxu0
  %1638 = vmatmul.f32.gmra.mxu0 %v1618
  %v1639 = vpop.f32.mrf.mxu0
  %v1640 = vadd.f32 0.0, %v1639
  %1641 = vdwg.mxu0
  %1642 = vmatpush.msra.mxu0 0.0
  %1643 = vmatpush.msra.mxu0 0.0
  %1644 = vmatpush.msra.mxu0 0.0
  %1645 = vmatpush.msra.mxu0 0.0
  %1646 = vmatpush.msra.mxu0 0.0
  %1647 = vmatpush.msra.mxu0 0.0
  %1648 = vmatpush.msra.mxu0 0.0
  %1649 = vmatpush.msra.mxu0 0.0
  %1650 = vmatpush.msra.mxu0 0.0
  %1651 = vmatpush.msra.mxu0 0.0
  %1652 = vmatpush.msra.mxu0 0.0
  %1653 = vmatpush.msra.mxu0 0.0
  %1654 = vmatpush.msra.mxu0 %v383
  %1655 = vmatpush.msra.mxu0 %v382
  %1656 = vmatpush.msra.mxu0 %v381
  %1657 = vmatpush.msra.mxu0 %v380
  %1658 = vmatmul.f32.gmra.mxu0 %v1615
  %v1659 = vpop.f32.mrf.mxu0
  %1660 = vmatmul.f32.gmra.mxu0 %v1618
  %v1661 = vpop.f32.mrf.mxu0
  %v1662 = vadd.f32 0.0, %v1661
  %1663 = vdwg.mxu0
  %1664 = vmatpush.msra.mxu0 0.0
  %1665 = vmatpush.msra.mxu0 0.0
  %1666 = vmatpush.msra.mxu0 0.0
  %1667 = vmatpush.msra.mxu0 0.0
  %1668 = vmatpush.msra.mxu0 0.0
  %1669 = vmatpush.msra.mxu0 0.0
  %1670 = vmatpush.msra.mxu0 0.0
  %1671 = vmatpush.msra.mxu0 0.0
  %1672 = vmatpush.msra.mxu0 0.0
  %1673 = vmatpush.msra.mxu0 0.0
  %1674 = vmatpush.msra.mxu0 0.0
  %1675 = vmatpush.msra.mxu0 0.0
  %1676 = vmatpush.msra.mxu0 %v387
  %1677 = vmatpush.msra.mxu0 %v386
  %1678 = vmatpush.msra.mxu0 %v385
  %1679 = vmatpush.msra.mxu0 %v384
  %1680 = vmatmul.f32.gmra.mxu0 %v1615
  %v1681 = vpop.f32.mrf.mxu0
  %1682 = vmatmul.f32.gmra.mxu0 %v1618
  %v1683 = vpop.f32.mrf.mxu0
  %v1684 = vadd.f32 %v390, %v1683
  %1685 = vdwg.mxu0
  %v1686 = vld [vmem:[#allocation2 + $0x78] sm:$0xff]
  %v1687 = vadd.f32 %v1686, %v1640
  %v1688 = vxor.u32 %v1687, 2147483648
  %v1689 = vmul.f32 %v1688, 1.442695
  %v1690 = vpow.pop %v1689
  %v1691 = vadd.f32 %v1690, 1.0
  %v1692 = vrcp.pop %v1691
  %v1693 = vmul.f32 %v1691, %v1692
  %v1694 = vsub.f32 1.0, %v1693
  %v1695 = vmul.f32 %v1692, %v1694
  %v1696 = vadd.f32 %v1692, %v1695
  %vm1697 = vweird.f32 %v1691
  %vm1698 = vweird.f32 %v1692
  %vm1699 = vmor %vm1697, %vm1698
  %v1700 = vsel %vm1699, %v1692, %v1696
  %v1701 = vand.u32 2147483647, %v1691
  %vm1702 = vcmp.eq.f32.partialorder %v1701, 8.507059e+37
  %v1703 = vand.u32 %v1691, 2147483648
  %v1704 = vor.u32 1.1754944e-38, %v1703
  %v1705 = vsel %vm1702, %v1704, %v1700
  %v1706 = vmul.f32 1.0, %v1705
  %v1707 = vld [vmem:[#allocation3 + $0x78] sm:$0xff]
  %v1708 = vadd.f32 %v1707, %v1662
  %v1709 = vxor.u32 %v1708, 2147483648
  %v1710 = vmul.f32 %v1709, 1.442695
  %v1711 = vpow.pop %v1710
  %v1712 = vadd.f32 %v1711, 1.0
  %v1713 = vrcp.pop %v1712
  %v1714 = vmul.f32 %v1712, %v1713
  %v1715 = vsub.f32 1.0, %v1714
  %v1716 = vmul.f32 %v1713, %v1715
  %v1717 = vadd.f32 %v1713, %v1716
  %vm1718 = vweird.f32 %v1712
  %vm1719 = vweird.f32 %v1713
  %vm1720 = vmor %vm1718, %vm1719
  %v1721 = vsel %vm1720, %v1713, %v1717
  %v1722 = vand.u32 2147483647, %v1712
  %vm1723 = vcmp.eq.f32.partialorder %v1722, 8.507059e+37
  %v1724 = vand.u32 %v1712, 2147483648
  %v1725 = vor.u32 1.1754944e-38, %v1724
  %v1726 = vsel %vm1723, %v1725, %v1721
  %v1727 = vmul.f32 1.0, %v1726
  %v1728 = vld [vmem:[#allocation4 + $0x78] sm:$0xff]
  %v1729 = vmul.f32 %v1706, %v1684
  %v1730 = vadd.f32 %v1728, %v1729
  %v1731 = vtanh.pop %v1730
  %v1732 = vsub.f32 1.0, %v1727
  %v1733 = vmul.f32 %v1732, %v1731
  %v1734 = vmul.f32 %v1727, %v1613
  %v1735 = vadd.f32 %v1733, %v1734
  %v1737 = vsel %vm68, %v1735, 0
  %1739 = vmatpush.msra.mxu0 0.0
  %1740 = vmatpush.msra.mxu0 0.0
  %1741 = vmatpush.msra.mxu0 0.0
  %1742 = vmatpush.msra.mxu0 0.0
  %1743 = vmatpush.msra.mxu0 0.0
  %1744 = vmatpush.msra.mxu0 0.0
  %1745 = vmatpush.msra.mxu0 0.0
  %1746 = vmatpush.msra.mxu0 0.0
  %1747 = vmatpush.msra.mxu0 0.0
  %1748 = vmatpush.msra.mxu0 0.0
  %1749 = vmatpush.msra.mxu0 0.0
  %1750 = vmatpush.msra.mxu0 0.0
  %1751 = vmatpush.msra.mxu0 %v379
  %1752 = vmatpush.msra.mxu0 %v378
  %1753 = vmatpush.msra.mxu0 %v377
  %1754 = vmatpush.msra.mxu0 %v376
  %1755 = vmatmul.f32.gmra.mxu0 %v1737
  %v1756 = vpop.f32.mrf.mxu0
  %v1757 = vadd.f32 0.0, %v1756
  %1758 = vdwg.mxu0
  %1759 = vmatpush.msra.mxu0 0.0
  %1760 = vmatpush.msra.mxu0 0.0
  %1761 = vmatpush.msra.mxu0 0.0
  %1762 = vmatpush.msra.mxu0 0.0
  %1763 = vmatpush.msra.mxu0 0.0
  %1764 = vmatpush.msra.mxu0 0.0
  %1765 = vmatpush.msra.mxu0 0.0
  %1766 = vmatpush.msra.mxu0 0.0
  %1767 = vmatpush.msra.mxu0 0.0
  %1768 = vmatpush.msra.mxu0 0.0
  %1769 = vmatpush.msra.mxu0 0.0
  %1770 = vmatpush.msra.mxu0 0.0
  %1771 = vmatpush.msra.mxu0 %v383
  %1772 = vmatpush.msra.mxu0 %v382
  %1773 = vmatpush.msra.mxu0 %v381
  %1774 = vmatpush.msra.mxu0 %v380
  %1775 = vmatmul.f32.gmra.mxu0 %v1737
  %v1776 = vpop.f32.mrf.mxu0
  %v1777 = vadd.f32 0.0, %v1776
  %1778 = vdwg.mxu0
  %1779 = vmatpush.msra.mxu0 0.0
  %1780 = vmatpush.msra.mxu0 0.0
  %1781 = vmatpush.msra.mxu0 0.0
  %1782 = vmatpush.msra.mxu0 0.0
  %1783 = vmatpush.msra.mxu0 0.0
  %1784 = vmatpush.msra.mxu0 0.0
  %1785 = vmatpush.msra.mxu0 0.0
  %1786 = vmatpush.msra.mxu0 0.0
  %1787 = vmatpush.msra.mxu0 0.0
  %1788 = vmatpush.msra.mxu0 0.0
  %1789 = vmatpush.msra.mxu0 0.0
  %1790 = vmatpush.msra.mxu0 0.0
  %1791 = vmatpush.msra.mxu0 %v387
  %1792 = vmatpush.msra.mxu0 %v386
  %1793 = vmatpush.msra.mxu0 %v385
  %1794 = vmatpush.msra.mxu0 %v384
  %1795 = vmatmul.f32.gmra.mxu0 %v1737
  %v1796 = vpop.f32.mrf.mxu0
  %v1797 = vadd.f32 %v390, %v1796
  %1798 = vdwg.mxu0
  %v1799 = vld [vmem:[#allocation2] sm:$0xff]
  %v1800 = vadd.f32 %v1799, %v1757
  %v1801 = vxor.u32 %v1800, 2147483648
  %v1802 = vmul.f32 %v1801, 1.442695
  %v1803 = vpow.pop %v1802
  %v1804 = vadd.f32 %v1803, 1.0
  %v1805 = vrcp.pop %v1804
  %v1806 = vmul.f32 %v1804, %v1805
  %v1807 = vsub.f32 1.0, %v1806
  %v1808 = vmul.f32 %v1805, %v1807
  %v1809 = vadd.f32 %v1805, %v1808
  %vm1810 = vweird.f32 %v1804
  %vm1811 = vweird.f32 %v1805
  %vm1812 = vmor %vm1810, %vm1811
  %v1813 = vsel %vm1812, %v1805, %v1809
  %v1814 = vand.u32 2147483647, %v1804
  %vm1815 = vcmp.eq.f32.partialorder %v1814, 8.507059e+37
  %v1816 = vand.u32 %v1804, 2147483648
  %v1817 = vor.u32 1.1754944e-38, %v1816
  %v1818 = vsel %vm1815, %v1817, %v1813
  %v1819 = vmul.f32 1.0, %v1818
  %v1820 = vld [vmem:[#allocation3] sm:$0xff]
  %v1821 = vadd.f32 %v1820, %v1777
  %v1822 = vxor.u32 %v1821, 2147483648
  %v1823 = vmul.f32 %v1822, 1.442695
  %v1824 = vpow.pop %v1823
  %v1825 = vadd.f32 %v1824, 1.0
  %v1826 = vrcp.pop %v1825
  %v1827 = vmul.f32 %v1825, %v1826
  %v1828 = vsub.f32 1.0, %v1827
  %v1829 = vmul.f32 %v1826, %v1828
  %v1830 = vadd.f32 %v1826, %v1829
  %vm1831 = vweird.f32 %v1825
  %vm1832 = vweird.f32 %v1826
  %vm1833 = vmor %vm1831, %vm1832
  %v1834 = vsel %vm1833, %v1826, %v1830
  %v1835 = vand.u32 2147483647, %v1825
  %vm1836 = vcmp.eq.f32.partialorder %v1835, 8.507059e+37
  %v1837 = vand.u32 %v1825, 2147483648
  %v1838 = vor.u32 1.1754944e-38, %v1837
  %v1839 = vsel %vm1836, %v1838, %v1834
  %v1840 = vmul.f32 1.0, %v1839
  %v1841 = vld [vmem:[#allocation4] sm:$0xff]
  %v1842 = vmul.f32 %v1819, %v1797
  %v1843 = vadd.f32 %v1841, %v1842
  %v1844 = vtanh.pop %v1843
  %v1845 = vsub.f32 1.0, %v1840
  %v1846 = vmul.f32 %v1845, %v1844
  %v1847 = vmul.f32 %v1840, %v1735
  %v1848 = vadd.f32 %v1846, %v1847
  %v1850 = vsel %vm68, %v1848, 0
  %1852 = vmatpush.msra.mxu0 0.0
  %1853 = vmatpush.msra.mxu0 0.0
  %1854 = vmatpush.msra.mxu0 0.0
  %1855 = vmatpush.msra.mxu0 0.0
  %1856 = vmatpush.msra.mxu0 0.0
  %1857 = vmatpush.msra.mxu0 0.0
  %1858 = vmatpush.msra.mxu0 0.0
  %1859 = vmatpush.msra.mxu0 0.0
  %1860 = vmatpush.msra.mxu0 0.0
  %1861 = vmatpush.msra.mxu0 0.0
  %1862 = vmatpush.msra.mxu0 0.0
  %1863 = vmatpush.msra.mxu0 0.0
  %1864 = vmatpush.msra.mxu0 %v379
  %1865 = vmatpush.msra.mxu0 %v378
  %1866 = vmatpush.msra.mxu0 %v377
  %1867 = vmatpush.msra.mxu0 %v376
  %1868 = vmatmul.f32.gmra.mxu0 %v1850
  %v1869 = vpop.f32.mrf.mxu0
  %v1870 = vadd.f32 0.0, %v1869
  %1871 = vdwg.mxu0
  %1872 = vmatpush.msra.mxu0 0.0
  %1873 = vmatpush.msra.mxu0 0.0
  %1874 = vmatpush.msra.mxu0 0.0
  %1875 = vmatpush.msra.mxu0 0.0
  %1876 = vmatpush.msra.mxu0 0.0
  %1877 = vmatpush.msra.mxu0 0.0
  %1878 = vmatpush.msra.mxu0 0.0
  %1879 = vmatpush.msra.mxu0 0.0
  %1880 = vmatpush.msra.mxu0 0.0
  %1881 = vmatpush.msra.mxu0 0.0
  %1882 = vmatpush.msra.mxu0 0.0
  %1883 = vmatpush.msra.mxu0 0.0
  %1884 = vmatpush.msra.mxu0 %v383
  %1885 = vmatpush.msra.mxu0 %v382
  %1886 = vmatpush.msra.mxu0 %v381
  %1887 = vmatpush.msra.mxu0 %v380
  %1888 = vmatmul.f32.gmra.mxu0 %v1850
  %v1889 = vpop.f32.mrf.mxu0
  %v1890 = vadd.f32 0.0, %v1889
  %1891 = vdwg.mxu0
  %1892 = vmatpush.msra.mxu0 0.0
  %1893 = vmatpush.msra.mxu0 0.0
  %1894 = vmatpush.msra.mxu0 0.0
  %1895 = vmatpush.msra.mxu0 0.0
  %1896 = vmatpush.msra.mxu0 0.0
  %1897 = vmatpush.msra.mxu0 0.0
  %1898 = vmatpush.msra.mxu0 0.0
  %1899 = vmatpush.msra.mxu0 0.0
  %1900 = vmatpush.msra.mxu0 0.0
  %1901 = vmatpush.msra.mxu0 0.0
  %1902 = vmatpush.msra.mxu0 0.0
  %1903 = vmatpush.msra.mxu0 0.0
  %1904 = vmatpush.msra.mxu0 %v387
  %1905 = vmatpush.msra.mxu0 %v386
  %1906 = vmatpush.msra.mxu0 %v385
  %1907 = vmatpush.msra.mxu0 %v384
  %1908 = vmatmul.f32.gmra.mxu0 %v1850
  %v1909 = vpop.f32.mrf.mxu0
  %v1910 = vadd.f32 %v390, %v1909
  %1911 = vdwg.mxu0
  %v1912 = vld [vmem:[#allocation2 + $0x10] sm:$0xff]
  %v1913 = vadd.f32 %v1912, %v1870
  %v1914 = vxor.u32 %v1913, 2147483648
  %v1915 = vmul.f32 %v1914, 1.442695
  %v1916 = vpow.pop %v1915
  %v1917 = vadd.f32 %v1916, 1.0
  %v1918 = vrcp.pop %v1917
  %v1919 = vmul.f32 %v1917, %v1918
  %v1920 = vsub.f32 1.0, %v1919
  %v1921 = vmul.f32 %v1918, %v1920
  %v1922 = vadd.f32 %v1918, %v1921
  %vm1923 = vweird.f32 %v1917
  %vm1924 = vweird.f32 %v1918
  %vm1925 = vmor %vm1923, %vm1924
  %v1926 = vsel %vm1925, %v1918, %v1922
  %v1927 = vand.u32 2147483647, %v1917
  %vm1928 = vcmp.eq.f32.partialorder %v1927, 8.507059e+37
  %v1929 = vand.u32 %v1917, 2147483648
  %v1930 = vor.u32 1.1754944e-38, %v1929
  %v1931 = vsel %vm1928, %v1930, %v1926
  %v1932 = vmul.f32 1.0, %v1931
  %v1933 = vld [vmem:[#allocation3 + $0x10] sm:$0xff]
  %v1934 = vadd.f32 %v1933, %v1890
  %v1935 = vxor.u32 %v1934, 2147483648
  %v1936 = vmul.f32 %v1935, 1.442695
  %v1937 = vpow.pop %v1936
  %v1938 = vadd.f32 %v1937, 1.0
  %v1939 = vrcp.pop %v1938
  %v1940 = vmul.f32 %v1938, %v1939
  %v1941 = vsub.f32 1.0, %v1940
  %v1942 = vmul.f32 %v1939, %v1941
  %v1943 = vadd.f32 %v1939, %v1942
  %vm1944 = vweird.f32 %v1938
  %vm1945 = vweird.f32 %v1939
  %vm1946 = vmor %vm1944, %vm1945
  %v1947 = vsel %vm1946, %v1939, %v1943
  %v1948 = vand.u32 2147483647, %v1938
  %vm1949 = vcmp.eq.f32.partialorder %v1948, 8.507059e+37
  %v1950 = vand.u32 %v1938, 2147483648
  %v1951 = vor.u32 1.1754944e-38, %v1950
  %v1952 = vsel %vm1949, %v1951, %v1947
  %v1953 = vmul.f32 1.0, %v1952
  %v1954 = vld [vmem:[#allocation4 + $0x10] sm:$0xff]
  %v1955 = vmul.f32 %v1932, %v1910
  %v1956 = vadd.f32 %v1954, %v1955
  %v1957 = vtanh.pop %v1956
  %v1958 = vsub.f32 1.0, %v1953
  %v1959 = vmul.f32 %v1958, %v1957
  %v1960 = vmul.f32 %v1953, %v1848
  %v1961 = vadd.f32 %v1959, %v1960
  %v1963 = vsel %vm68, %v1961, 0
  %1965 = vmatpush.msra.mxu0 0.0
  %1966 = vmatpush.msra.mxu0 0.0
  %1967 = vmatpush.msra.mxu0 0.0
  %1968 = vmatpush.msra.mxu0 0.0
  %1969 = vmatpush.msra.mxu0 0.0
  %1970 = vmatpush.msra.mxu0 0.0
  %1971 = vmatpush.msra.mxu0 0.0
  %1972 = vmatpush.msra.mxu0 0.0
  %1973 = vmatpush.msra.mxu0 0.0
  %1974 = vmatpush.msra.mxu0 0.0
  %1975 = vmatpush.msra.mxu0 0.0
  %1976 = vmatpush.msra.mxu0 0.0
  %1977 = vmatpush.msra.mxu0 %v379
  %1978 = vmatpush.msra.mxu0 %v378
  %1979 = vmatpush.msra.mxu0 %v377
  %1980 = vmatpush.msra.mxu0 %v376
  %1981 = vmatmul.f32.gmra.mxu0 %v1963
  %v1982 = vpop.f32.mrf.mxu0
  %v1983 = vadd.f32 0.0, %v1982
  %1984 = vdwg.mxu0
  %1985 = vmatpush.msra.mxu0 0.0
  %1986 = vmatpush.msra.mxu0 0.0
  %1987 = vmatpush.msra.mxu0 0.0
  %1988 = vmatpush.msra.mxu0 0.0
  %1989 = vmatpush.msra.mxu0 0.0
  %1990 = vmatpush.msra.mxu0 0.0
  %1991 = vmatpush.msra.mxu0 0.0
  %1992 = vmatpush.msra.mxu0 0.0
  %1993 = vmatpush.msra.mxu0 0.0
  %1994 = vmatpush.msra.mxu0 0.0
  %1995 = vmatpush.msra.mxu0 0.0
  %1996 = vmatpush.msra.mxu0 0.0
  %1997 = vmatpush.msra.mxu0 %v383
  %1998 = vmatpush.msra.mxu0 %v382
  %1999 = vmatpush.msra.mxu0 %v381
  %2000 = vmatpush.msra.mxu0 %v380
  %2001 = vmatmul.f32.gmra.mxu0 %v1963
  %v2002 = vpop.f32.mrf.mxu0
  %v2003 = vadd.f32 0.0, %v2002
  %2004 = vdwg.mxu0
  %2005 = vmatpush.msra.mxu0 0.0
  %2006 = vmatpush.msra.mxu0 0.0
  %2007 = vmatpush.msra.mxu0 0.0
  %2008 = vmatpush.msra.mxu0 0.0
  %2009 = vmatpush.msra.mxu0 0.0
  %2010 = vmatpush.msra.mxu0 0.0
  %2011 = vmatpush.msra.mxu0 0.0
  %2012 = vmatpush.msra.mxu0 0.0
  %2013 = vmatpush.msra.mxu0 0.0
  %2014 = vmatpush.msra.mxu0 0.0
  %2015 = vmatpush.msra.mxu0 0.0
  %2016 = vmatpush.msra.mxu0 0.0
  %2017 = vmatpush.msra.mxu0 %v387
  %2018 = vmatpush.msra.mxu0 %v386
  %2019 = vmatpush.msra.mxu0 %v385
  %2020 = vmatpush.msra.mxu0 %v384
  %2021 = vmatmul.f32.gmra.mxu0 %v1963
  %v2022 = vpop.f32.mrf.mxu0
  %v2023 = vadd.f32 %v390, %v2022
  %2024 = vdwg.mxu0
  %v2025 = vld [vmem:[#allocation2 + $0x20] sm:$0xff]
  %v2026 = vadd.f32 %v2025, %v1983
  %v2027 = vxor.u32 %v2026, 2147483648
  %v2028 = vmul.f32 %v2027, 1.442695
  %v2029 = vpow.pop %v2028
  %v2030 = vadd.f32 %v2029, 1.0
  %v2031 = vrcp.pop %v2030
  %v2032 = vmul.f32 %v2030, %v2031
  %v2033 = vsub.f32 1.0, %v2032
  %v2034 = vmul.f32 %v2031, %v2033
  %v2035 = vadd.f32 %v2031, %v2034
  %vm2036 = vweird.f32 %v2030
  %vm2037 = vweird.f32 %v2031
  %vm2038 = vmor %vm2036, %vm2037
  %v2039 = vsel %vm2038, %v2031, %v2035
  %v2040 = vand.u32 2147483647, %v2030
  %vm2041 = vcmp.eq.f32.partialorder %v2040, 8.507059e+37
  %v2042 = vand.u32 %v2030, 2147483648
  %v2043 = vor.u32 1.1754944e-38, %v2042
  %v2044 = vsel %vm2041, %v2043, %v2039
  %v2045 = vmul.f32 1.0, %v2044
  %v2046 = vld [vmem:[#allocation3 + $0x20] sm:$0xff]
  %v2047 = vadd.f32 %v2046, %v2003
  %v2048 = vxor.u32 %v2047, 2147483648
  %v2049 = vmul.f32 %v2048, 1.442695
  %v2050 = vpow.pop %v2049
  %v2051 = vadd.f32 %v2050, 1.0
  %v2052 = vrcp.pop %v2051
  %v2053 = vmul.f32 %v2051, %v2052
  %v2054 = vsub.f32 1.0, %v2053
  %v2055 = vmul.f32 %v2052, %v2054
  %v2056 = vadd.f32 %v2052, %v2055
  %vm2057 = vweird.f32 %v2051
  %vm2058 = vweird.f32 %v2052
  %vm2059 = vmor %vm2057, %vm2058
  %v2060 = vsel %vm2059, %v2052, %v2056
  %v2061 = vand.u32 2147483647, %v2051
  %vm2062 = vcmp.eq.f32.partialorder %v2061, 8.507059e+37
  %v2063 = vand.u32 %v2051, 2147483648
  %v2064 = vor.u32 1.1754944e-38, %v2063
  %v2065 = vsel %vm2062, %v2064, %v2060
  %v2066 = vmul.f32 1.0, %v2065
  %v2067 = vld [vmem:[#allocation4 + $0x20] sm:$0xff]
  %v2068 = vmul.f32 %v2045, %v2023
  %v2069 = vadd.f32 %v2067, %v2068
  %v2070 = vtanh.pop %v2069
  %v2071 = vsub.f32 1.0, %v2066
  %v2072 = vmul.f32 %v2071, %v2070
  %v2073 = vmul.f32 %v2066, %v1961
  %v2074 = vadd.f32 %v2072, %v2073
  %v2076 = vsel %vm68, %v2074, 0
  %2078 = vmatpush.msra.mxu0 0.0
  %2079 = vmatpush.msra.mxu0 0.0
  %2080 = vmatpush.msra.mxu0 0.0
  %2081 = vmatpush.msra.mxu0 0.0
  %2082 = vmatpush.msra.mxu0 0.0
  %2083 = vmatpush.msra.mxu0 0.0
  %2084 = vmatpush.msra.mxu0 0.0
  %2085 = vmatpush.msra.mxu0 0.0
  %2086 = vmatpush.msra.mxu0 0.0
  %2087 = vmatpush.msra.mxu0 0.0
  %2088 = vmatpush.msra.mxu0 0.0
  %2089 = vmatpush.msra.mxu0 0.0
  %2090 = vmatpush.msra.mxu0 %v379
  %2091 = vmatpush.msra.mxu0 %v378
  %2092 = vmatpush.msra.mxu0 %v377
  %2093 = vmatpush.msra.mxu0 %v376
  %2094 = vmatmul.f32.gmra.mxu0 %v2076
  %v2095 = vpop.f32.mrf.mxu0
  %v2096 = vadd.f32 0.0, %v2095
  %2097 = vdwg.mxu0
  %2098 = vmatpush.msra.mxu0 0.0
  %2099 = vmatpush.msra.mxu0 0.0
  %2100 = vmatpush.msra.mxu0 0.0
  %2101 = vmatpush.msra.mxu0 0.0
  %2102 = vmatpush.msra.mxu0 0.0
  %2103 = vmatpush.msra.mxu0 0.0
  %2104 = vmatpush.msra.mxu0 0.0
  %2105 = vmatpush.msra.mxu0 0.0
  %2106 = vmatpush.msra.mxu0 0.0
  %2107 = vmatpush.msra.mxu0 0.0
  %2108 = vmatpush.msra.mxu0 0.0
  %2109 = vmatpush.msra.mxu0 0.0
  %2110 = vmatpush.msra.mxu0 %v383
  %2111 = vmatpush.msra.mxu0 %v382
  %2112 = vmatpush.msra.mxu0 %v381
  %2113 = vmatpush.msra.mxu0 %v380
  %2114 = vmatmul.f32.gmra.mxu0 %v2076
  %v2115 = vpop.f32.mrf.mxu0
  %v2116 = vadd.f32 0.0, %v2115
  %2117 = vdwg.mxu0
  %2118 = vmatpush.msra.mxu0 0.0
  %2119 = vmatpush.msra.mxu0 0.0
  %2120 = vmatpush.msra.mxu0 0.0
  %2121 = vmatpush.msra.mxu0 0.0
  %2122 = vmatpush.msra.mxu0 0.0
  %2123 = vmatpush.msra.mxu0 0.0
  %2124 = vmatpush.msra.mxu0 0.0
  %2125 = vmatpush.msra.mxu0 0.0
  %2126 = vmatpush.msra.mxu0 0.0
  %2127 = vmatpush.msra.mxu0 0.0
  %2128 = vmatpush.msra.mxu0 0.0
  %2129 = vmatpush.msra.mxu0 0.0
  %2130 = vmatpush.msra.mxu0 %v387
  %2131 = vmatpush.msra.mxu0 %v386
  %2132 = vmatpush.msra.mxu0 %v385
  %2133 = vmatpush.msra.mxu0 %v384
  %2134 = vmatmul.f32.gmra.mxu0 %v2076
  %v2135 = vpop.f32.mrf.mxu0
  %v2136 = vadd.f32 %v390, %v2135
  %2137 = vdwg.mxu0
  %v2138 = vld [vmem:[#allocation2 + $0x30] sm:$0xff]
  %v2139 = vadd.f32 %v2138, %v2096
  %v2140 = vxor.u32 %v2139, 2147483648
  %v2141 = vmul.f32 %v2140, 1.442695
  %v2142 = vpow.pop %v2141
  %v2143 = vadd.f32 %v2142, 1.0
  %v2144 = vrcp.pop %v2143
  %v2145 = vmul.f32 %v2143, %v2144
  %v2146 = vsub.f32 1.0, %v2145
  %v2147 = vmul.f32 %v2144, %v2146
  %v2148 = vadd.f32 %v2144, %v2147
  %vm2149 = vweird.f32 %v2143
  %vm2150 = vweird.f32 %v2144
  %vm2151 = vmor %vm2149, %vm2150
  %v2152 = vsel %vm2151, %v2144, %v2148
  %v2153 = vand.u32 2147483647, %v2143
  %vm2154 = vcmp.eq.f32.partialorder %v2153, 8.507059e+37
  %v2155 = vand.u32 %v2143, 2147483648
  %v2156 = vor.u32 1.1754944e-38, %v2155
  %v2157 = vsel %vm2154, %v2156, %v2152
  %v2158 = vmul.f32 1.0, %v2157
  %v2159 = vld [vmem:[#allocation3 + $0x30] sm:$0xff]
  %v2160 = vadd.f32 %v2159, %v2116
  %v2161 = vxor.u32 %v2160, 2147483648
  %v2162 = vmul.f32 %v2161, 1.442695
  %v2163 = vpow.pop %v2162
  %v2164 = vadd.f32 %v2163, 1.0
  %v2165 = vrcp.pop %v2164
  %v2166 = vmul.f32 %v2164, %v2165
  %v2167 = vsub.f32 1.0, %v2166
  %v2168 = vmul.f32 %v2165, %v2167
  %v2169 = vadd.f32 %v2165, %v2168
  %vm2170 = vweird.f32 %v2164
  %vm2171 = vweird.f32 %v2165
  %vm2172 = vmor %vm2170, %vm2171
  %v2173 = vsel %vm2172, %v2165, %v2169
  %v2174 = vand.u32 2147483647, %v2164
  %vm2175 = vcmp.eq.f32.partialorder %v2174, 8.507059e+37
  %v2176 = vand.u32 %v2164, 2147483648
  %v2177 = vor.u32 1.1754944e-38, %v2176
  %v2178 = vsel %vm2175, %v2177, %v2173
  %v2179 = vmul.f32 1.0, %v2178
  %v2180 = vld [vmem:[#allocation4 + $0x30] sm:$0xff]
  %v2181 = vmul.f32 %v2158, %v2136
  %v2182 = vadd.f32 %v2180, %v2181
  %v2183 = vtanh.pop %v2182
  %v2184 = vsub.f32 1.0, %v2179
  %v2185 = vmul.f32 %v2184, %v2183
  %v2186 = vmul.f32 %v2179, %v2074
  %v2187 = vadd.f32 %v2185, %v2186
  %v2189 = vsel %vm68, %v2187, 0
  %2191 = vmatpush.msra.mxu0 0.0
  %2192 = vmatpush.msra.mxu0 0.0
  %2193 = vmatpush.msra.mxu0 0.0
  %2194 = vmatpush.msra.mxu0 0.0
  %2195 = vmatpush.msra.mxu0 0.0
  %2196 = vmatpush.msra.mxu0 0.0
  %2197 = vmatpush.msra.mxu0 0.0
  %2198 = vmatpush.msra.mxu0 0.0
  %2199 = vmatpush.msra.mxu0 0.0
  %2200 = vmatpush.msra.mxu0 0.0
  %2201 = vmatpush.msra.mxu0 0.0
  %2202 = vmatpush.msra.mxu0 0.0
  %2203 = vmatpush.msra.mxu0 %v379
  %2204 = vmatpush.msra.mxu0 %v378
  %2205 = vmatpush.msra.mxu0 %v377
  %2206 = vmatpush.msra.mxu0 %v376
  %2207 = vmatmul.f32.gmra.mxu0 %v2189
  %v2208 = vpop.f32.mrf.mxu0
  %v2209 = vadd.f32 0.0, %v2208
  %2210 = vdwg.mxu0
  %2211 = vmatpush.msra.mxu0 0.0
  %2212 = vmatpush.msra.mxu0 0.0
  %2213 = vmatpush.msra.mxu0 0.0
  %2214 = vmatpush.msra.mxu0 0.0
  %2215 = vmatpush.msra.mxu0 0.0
  %2216 = vmatpush.msra.mxu0 0.0
  %2217 = vmatpush.msra.mxu0 0.0
  %2218 = vmatpush.msra.mxu0 0.0
  %2219 = vmatpush.msra.mxu0 0.0
  %2220 = vmatpush.msra.mxu0 0.0
  %2221 = vmatpush.msra.mxu0 0.0
  %2222 = vmatpush.msra.mxu0 0.0
  %2223 = vmatpush.msra.mxu0 %v383
  %2224 = vmatpush.msra.mxu0 %v382
  %2225 = vmatpush.msra.mxu0 %v381
  %2226 = vmatpush.msra.mxu0 %v380
  %2227 = vmatmul.f32.gmra.mxu0 %v2189
  %v2228 = vpop.f32.mrf.mxu0
  %v2229 = vadd.f32 0.0, %v2228
  %2230 = vdwg.mxu0
  %2231 = vmatpush.msra.mxu0 0.0
  %2232 = vmatpush.msra.mxu0 0.0
  %2233 = vmatpush.msra.mxu0 0.0
  %2234 = vmatpush.msra.mxu0 0.0
  %2235 = vmatpush.msra.mxu0 0.0
  %2236 = vmatpush.msra.mxu0 0.0
  %2237 = vmatpush.msra.mxu0 0.0
  %2238 = vmatpush.msra.mxu0 0.0
  %2239 = vmatpush.msra.mxu0 0.0
  %2240 = vmatpush.msra.mxu0 0.0
  %2241 = vmatpush.msra.mxu0 0.0
  %2242 = vmatpush.msra.mxu0 0.0
  %2243 = vmatpush.msra.mxu0 %v387
  %2244 = vmatpush.msra.mxu0 %v386
  %2245 = vmatpush.msra.mxu0 %v385
  %2246 = vmatpush.msra.mxu0 %v384
  %2247 = vmatmul.f32.gmra.mxu0 %v2189
  %v2248 = vpop.f32.mrf.mxu0
  %v2249 = vadd.f32 %v390, %v2248
  %2250 = vdwg.mxu0
  %v2251 = vld [vmem:[#allocation2 + $0x40] sm:$0xff]
  %v2252 = vadd.f32 %v2251, %v2209
  %v2253 = vxor.u32 %v2252, 2147483648
  %v2254 = vmul.f32 %v2253, 1.442695
  %v2255 = vpow.pop %v2254
  %v2256 = vadd.f32 %v2255, 1.0
  %v2257 = vrcp.pop %v2256
  %v2258 = vmul.f32 %v2256, %v2257
  %v2259 = vsub.f32 1.0, %v2258
  %v2260 = vmul.f32 %v2257, %v2259
  %v2261 = vadd.f32 %v2257, %v2260
  %vm2262 = vweird.f32 %v2256
  %vm2263 = vweird.f32 %v2257
  %vm2264 = vmor %vm2262, %vm2263
  %v2265 = vsel %vm2264, %v2257, %v2261
  %v2266 = vand.u32 2147483647, %v2256
  %vm2267 = vcmp.eq.f32.partialorder %v2266, 8.507059e+37
  %v2268 = vand.u32 %v2256, 2147483648
  %v2269 = vor.u32 1.1754944e-38, %v2268
  %v2270 = vsel %vm2267, %v2269, %v2265
  %v2271 = vmul.f32 1.0, %v2270
  %v2272 = vld [vmem:[#allocation3 + $0x40] sm:$0xff]
  %v2273 = vadd.f32 %v2272, %v2229
  %v2274 = vxor.u32 %v2273, 2147483648
  %v2275 = vmul.f32 %v2274, 1.442695
  %v2276 = vpow.pop %v2275
  %v2277 = vadd.f32 %v2276, 1.0
  %v2278 = vrcp.pop %v2277
  %v2279 = vmul.f32 %v2277, %v2278
  %v2280 = vsub.f32 1.0, %v2279
  %v2281 = vmul.f32 %v2278, %v2280
  %v2282 = vadd.f32 %v2278, %v2281
  %vm2283 = vweird.f32 %v2277
  %vm2284 = vweird.f32 %v2278
  %vm2285 = vmor %vm2283, %vm2284
  %v2286 = vsel %vm2285, %v2278, %v2282
  %v2287 = vand.u32 2147483647, %v2277
  %vm2288 = vcmp.eq.f32.partialorder %v2287, 8.507059e+37
  %v2289 = vand.u32 %v2277, 2147483648
  %v2290 = vor.u32 1.1754944e-38, %v2289
  %v2291 = vsel %vm2288, %v2290, %v2286
  %v2292 = vmul.f32 1.0, %v2291
  %v2293 = vld [vmem:[#allocation4 + $0x40] sm:$0xff]
  %v2294 = vmul.f32 %v2271, %v2249
  %v2295 = vadd.f32 %v2293, %v2294
  %v2296 = vtanh.pop %v2295
  %v2297 = vsub.f32 1.0, %v2292
  %v2298 = vmul.f32 %v2297, %v2296
  %v2299 = vmul.f32 %v2292, %v2187
  %v2300 = vadd.f32 %v2298, %v2299
  %v2302 = vsel %vm68, %v2300, 0
  %2304 = vmatpush.msra.mxu0 0.0
  %2305 = vmatpush.msra.mxu0 0.0
  %2306 = vmatpush.msra.mxu0 0.0
  %2307 = vmatpush.msra.mxu0 0.0
  %2308 = vmatpush.msra.mxu0 0.0
  %2309 = vmatpush.msra.mxu0 0.0
  %2310 = vmatpush.msra.mxu0 0.0
  %2311 = vmatpush.msra.mxu0 0.0
  %2312 = vmatpush.msra.mxu0 0.0
  %2313 = vmatpush.msra.mxu0 0.0
  %2314 = vmatpush.msra.mxu0 0.0
  %2315 = vmatpush.msra.mxu0 0.0
  %2316 = vmatpush.msra.mxu0 %v379
  %2317 = vmatpush.msra.mxu0 %v378
  %2318 = vmatpush.msra.mxu0 %v377
  %2319 = vmatpush.msra.mxu0 %v376
  %2320 = vmatmul.f32.gmra.mxu0 %v2302
  %v2321 = vpop.f32.mrf.mxu0
  %v2322 = vadd.f32 0.0, %v2321
  %2323 = vdwg.mxu0
  %2324 = vmatpush.msra.mxu0 0.0
  %2325 = vmatpush.msra.mxu0 0.0
  %2326 = vmatpush.msra.mxu0 0.0
  %2327 = vmatpush.msra.mxu0 0.0
  %2328 = vmatpush.msra.mxu0 0.0
  %2329 = vmatpush.msra.mxu0 0.0
  %2330 = vmatpush.msra.mxu0 0.0
  %2331 = vmatpush.msra.mxu0 0.0
  %2332 = vmatpush.msra.mxu0 0.0
  %2333 = vmatpush.msra.mxu0 0.0
  %2334 = vmatpush.msra.mxu0 0.0
  %2335 = vmatpush.msra.mxu0 0.0
  %2336 = vmatpush.msra.mxu0 %v383
  %2337 = vmatpush.msra.mxu0 %v382
  %2338 = vmatpush.msra.mxu0 %v381
  %2339 = vmatpush.msra.mxu0 %v380
  %2340 = vmatmul.f32.gmra.mxu0 %v2302
  %v2341 = vpop.f32.mrf.mxu0
  %v2342 = vadd.f32 0.0, %v2341
  %2343 = vdwg.mxu0
  %2344 = vmatpush.msra.mxu0 0.0
  %2345 = vmatpush.msra.mxu0 0.0
  %2346 = vmatpush.msra.mxu0 0.0
  %2347 = vmatpush.msra.mxu0 0.0
  %2348 = vmatpush.msra.mxu0 0.0
  %2349 = vmatpush.msra.mxu0 0.0
  %2350 = vmatpush.msra.mxu0 0.0
  %2351 = vmatpush.msra.mxu0 0.0
  %2352 = vmatpush.msra.mxu0 0.0
  %2353 = vmatpush.msra.mxu0 0.0
  %2354 = vmatpush.msra.mxu0 0.0
  %2355 = vmatpush.msra.mxu0 0.0
  %2356 = vmatpush.msra.mxu0 %v387
  %2357 = vmatpush.msra.mxu0 %v386
  %2358 = vmatpush.msra.mxu0 %v385
  %2359 = vmatpush.msra.mxu0 %v384
  %2360 = vmatmul.f32.gmra.mxu0 %v2302
  %v2361 = vpop.f32.mrf.mxu0
  %v2362 = vadd.f32 %v390, %v2361
  %2363 = vdwg.mxu0
  %v2364 = vld [vmem:[#allocation2 + $0x50] sm:$0xff]
  %v2365 = vadd.f32 %v2364, %v2322
  %v2366 = vxor.u32 %v2365, 2147483648
  %v2367 = vmul.f32 %v2366, 1.442695
  %v2368 = vpow.pop %v2367
  %v2369 = vadd.f32 %v2368, 1.0
  %v2370 = vrcp.pop %v2369
  %v2371 = vmul.f32 %v2369, %v2370
  %v2372 = vsub.f32 1.0, %v2371
  %v2373 = vmul.f32 %v2370, %v2372
  %v2374 = vadd.f32 %v2370, %v2373
  %vm2375 = vweird.f32 %v2369
  %vm2376 = vweird.f32 %v2370
  %vm2377 = vmor %vm2375, %vm2376
  %v2378 = vsel %vm2377, %v2370, %v2374
  %v2379 = vand.u32 2147483647, %v2369
  %vm2380 = vcmp.eq.f32.partialorder %v2379, 8.507059e+37
  %v2381 = vand.u32 %v2369, 2147483648
  %v2382 = vor.u32 1.1754944e-38, %v2381
  %v2383 = vsel %vm2380, %v2382, %v2378
  %v2384 = vmul.f32 1.0, %v2383
  %v2385 = vld [vmem:[#allocation3 + $0x50] sm:$0xff]
  %v2386 = vadd.f32 %v2385, %v2342
  %v2387 = vxor.u32 %v2386, 2147483648
  %v2388 = vmul.f32 %v2387, 1.442695
  %v2389 = vpow.pop %v2388
  %v2390 = vadd.f32 %v2389, 1.0
  %v2391 = vrcp.pop %v2390
  %v2392 = vmul.f32 %v2390, %v2391
  %v2393 = vsub.f32 1.0, %v2392
  %v2394 = vmul.f32 %v2391, %v2393
  %v2395 = vadd.f32 %v2391, %v2394
  %vm2396 = vweird.f32 %v2390
  %vm2397 = vweird.f32 %v2391
  %vm2398 = vmor %vm2396, %vm2397
  %v2399 = vsel %vm2398, %v2391, %v2395
  %v2400 = vand.u32 2147483647, %v2390
  %vm2401 = vcmp.eq.f32.partialorder %v2400, 8.507059e+37
  %v2402 = vand.u32 %v2390, 2147483648
  %v2403 = vor.u32 1.1754944e-38, %v2402
  %v2404 = vsel %vm2401, %v2403, %v2399
  %v2405 = vmul.f32 1.0, %v2404
  %v2406 = vld [vmem:[#allocation4 + $0x50] sm:$0xff]
  %v2407 = vmul.f32 %v2384, %v2362
  %v2408 = vadd.f32 %v2406, %v2407
  %v2409 = vtanh.pop %v2408
  %v2410 = vsub.f32 1.0, %v2405
  %v2411 = vmul.f32 %v2410, %v2409
  %v2412 = vmul.f32 %v2405, %v2300
  %v2413 = vadd.f32 %v2411, %v2412
  %v2415 = vsel %vm68, %v2413, 0
  %2417 = vmatpush.msra.mxu0 0.0
  %2418 = vmatpush.msra.mxu0 0.0
  %2419 = vmatpush.msra.mxu0 0.0
  %2420 = vmatpush.msra.mxu0 0.0
  %2421 = vmatpush.msra.mxu0 0.0
  %2422 = vmatpush.msra.mxu0 0.0
  %2423 = vmatpush.msra.mxu0 0.0
  %2424 = vmatpush.msra.mxu0 0.0
  %2425 = vmatpush.msra.mxu0 0.0
  %2426 = vmatpush.msra.mxu0 0.0
  %2427 = vmatpush.msra.mxu0 0.0
  %2428 = vmatpush.msra.mxu0 0.0
  %2429 = vmatpush.msra.mxu0 %v379
  %2430 = vmatpush.msra.mxu0 %v378
  %2431 = vmatpush.msra.mxu0 %v377
  %2432 = vmatpush.msra.mxu0 %v376
  %2433 = vmatmul.f32.gmra.mxu0 %v2415
  %v2434 = vpop.f32.mrf.mxu0
  %v2435 = vadd.f32 0.0, %v2434
  %2436 = vdwg.mxu0
  %2437 = vmatpush.msra.mxu0 0.0
  %2438 = vmatpush.msra.mxu0 0.0
  %2439 = vmatpush.msra.mxu0 0.0
  %2440 = vmatpush.msra.mxu0 0.0
  %2441 = vmatpush.msra.mxu0 0.0
  %2442 = vmatpush.msra.mxu0 0.0
  %2443 = vmatpush.msra.mxu0 0.0
  %2444 = vmatpush.msra.mxu0 0.0
  %2445 = vmatpush.msra.mxu0 0.0
  %2446 = vmatpush.msra.mxu0 0.0
  %2447 = vmatpush.msra.mxu0 0.0
  %2448 = vmatpush.msra.mxu0 0.0
  %2449 = vmatpush.msra.mxu0 %v383
  %2450 = vmatpush.msra.mxu0 %v382
  %2451 = vmatpush.msra.mxu0 %v381
  %2452 = vmatpush.msra.mxu0 %v380
  %2453 = vmatmul.f32.gmra.mxu0 %v2415
  %v2454 = vpop.f32.mrf.mxu0
  %v2455 = vadd.f32 0.0, %v2454
  %2456 = vdwg.mxu0
  %2457 = vmatpush.msra.mxu0 0.0
  %2458 = vmatpush.msra.mxu0 0.0
  %2459 = vmatpush.msra.mxu0 0.0
  %2460 = vmatpush.msra.mxu0 0.0
  %2461 = vmatpush.msra.mxu0 0.0
  %2462 = vmatpush.msra.mxu0 0.0
  %2463 = vmatpush.msra.mxu0 0.0
  %2464 = vmatpush.msra.mxu0 0.0
  %2465 = vmatpush.msra.mxu0 0.0
  %2466 = vmatpush.msra.mxu0 0.0
  %2467 = vmatpush.msra.mxu0 0.0
  %2468 = vmatpush.msra.mxu0 0.0
  %2469 = vmatpush.msra.mxu0 %v387
  %2470 = vmatpush.msra.mxu0 %v386
  %2471 = vmatpush.msra.mxu0 %v385
  %2472 = vmatpush.msra.mxu0 %v384
  %2473 = vmatmul.f32.gmra.mxu0 %v2415
  %v2474 = vpop.f32.mrf.mxu0
  %v2475 = vadd.f32 %v390, %v2474
  %2476 = vdwg.mxu0
  %v2477 = vld [vmem:[#allocation2 + $0x60] sm:$0xff]
  %v2478 = vadd.f32 %v2477, %v2435
  %v2479 = vxor.u32 %v2478, 2147483648
  %v2480 = vmul.f32 %v2479, 1.442695
  %v2481 = vpow.pop %v2480
  %v2482 = vadd.f32 %v2481, 1.0
  %v2483 = vrcp.pop %v2482
  %v2484 = vmul.f32 %v2482, %v2483
  %v2485 = vsub.f32 1.0, %v2484
  %v2486 = vmul.f32 %v2483, %v2485
  %v2487 = vadd.f32 %v2483, %v2486
  %vm2488 = vweird.f32 %v2482
  %vm2489 = vweird.f32 %v2483
  %vm2490 = vmor %vm2488, %vm2489
  %v2491 = vsel %vm2490, %v2483, %v2487
  %v2492 = vand.u32 2147483647, %v2482
  %vm2493 = vcmp.eq.f32.partialorder %v2492, 8.507059e+37
  %v2494 = vand.u32 %v2482, 2147483648
  %v2495 = vor.u32 1.1754944e-38, %v2494
  %v2496 = vsel %vm2493, %v2495, %v2491
  %v2497 = vmul.f32 1.0, %v2496
  %v2498 = vld [vmem:[#allocation3 + $0x60] sm:$0xff]
  %v2499 = vadd.f32 %v2498, %v2455
  %v2500 = vxor.u32 %v2499, 2147483648
  %v2501 = vmul.f32 %v2500, 1.442695
  %v2502 = vpow.pop %v2501
  %v2503 = vadd.f32 %v2502, 1.0
  %v2504 = vrcp.pop %v2503
  %v2505 = vmul.f32 %v2503, %v2504
  %v2506 = vsub.f32 1.0, %v2505
  %v2507 = vmul.f32 %v2504, %v2506
  %v2508 = vadd.f32 %v2504, %v2507
  %vm2509 = vweird.f32 %v2503
  %vm2510 = vweird.f32 %v2504
  %vm2511 = vmor %vm2509, %vm2510
  %v2512 = vsel %vm2511, %v2504, %v2508
  %v2513 = vand.u32 2147483647, %v2503
  %vm2514 = vcmp.eq.f32.partialorder %v2513, 8.507059e+37
  %v2515 = vand.u32 %v2503, 2147483648
  %v2516 = vor.u32 1.1754944e-38, %v2515
  %v2517 = vsel %vm2514, %v2516, %v2512
  %v2518 = vmul.f32 1.0, %v2517
  %v2519 = vld [vmem:[#allocation4 + $0x60] sm:$0xff]
  %v2520 = vmul.f32 %v2497, %v2475
  %v2521 = vadd.f32 %v2519, %v2520
  %v2522 = vtanh.pop %v2521
  %v2523 = vsub.f32 1.0, %v2518
  %v2524 = vmul.f32 %v2523, %v2522
  %v2525 = vmul.f32 %v2518, %v2413
  %v2526 = vadd.f32 %v2524, %v2525
  %v2528 = vsel %vm68, %v2526, 0
  %2530 = vmatpush.msra.mxu0 0.0
  %2531 = vmatpush.msra.mxu0 0.0
  %2532 = vmatpush.msra.mxu0 0.0
  %2533 = vmatpush.msra.mxu0 0.0
  %2534 = vmatpush.msra.mxu0 0.0
  %2535 = vmatpush.msra.mxu0 0.0
  %2536 = vmatpush.msra.mxu0 0.0
  %2537 = vmatpush.msra.mxu0 0.0
  %2538 = vmatpush.msra.mxu0 0.0
  %2539 = vmatpush.msra.mxu0 0.0
  %2540 = vmatpush.msra.mxu0 0.0
  %2541 = vmatpush.msra.mxu0 0.0
  %2542 = vmatpush.msra.mxu0 %v379
  %2543 = vmatpush.msra.mxu0 %v378
  %2544 = vmatpush.msra.mxu0 %v377
  %2545 = vmatpush.msra.mxu0 %v376
  %2546 = vmatmul.f32.gmra.mxu0 %v2528
  %v2547 = vpop.f32.mrf.mxu0
  %v2548 = vadd.f32 0.0, %v2547
  %2549 = vdwg.mxu0
  %2550 = vmatpush.msra.mxu0 0.0
  %2551 = vmatpush.msra.mxu0 0.0
  %2552 = vmatpush.msra.mxu0 0.0
  %2553 = vmatpush.msra.mxu0 0.0
  %2554 = vmatpush.msra.mxu0 0.0
  %2555 = vmatpush.msra.mxu0 0.0
  %2556 = vmatpush.msra.mxu0 0.0
  %2557 = vmatpush.msra.mxu0 0.0
  %2558 = vmatpush.msra.mxu0 0.0
  %2559 = vmatpush.msra.mxu0 0.0
  %2560 = vmatpush.msra.mxu0 0.0
  %2561 = vmatpush.msra.mxu0 0.0
  %2562 = vmatpush.msra.mxu0 %v383
  %2563 = vmatpush.msra.mxu0 %v382
  %2564 = vmatpush.msra.mxu0 %v381
  %2565 = vmatpush.msra.mxu0 %v380
  %2566 = vmatmul.f32.gmra.mxu0 %v2528
  %v2567 = vpop.f32.mrf.mxu0
  %v2568 = vadd.f32 0.0, %v2567
  %2569 = vdwg.mxu0
  %2570 = vmatpush.msra.mxu0 0.0
  %2571 = vmatpush.msra.mxu0 0.0
  %2572 = vmatpush.msra.mxu0 0.0
  %2573 = vmatpush.msra.mxu0 0.0
  %2574 = vmatpush.msra.mxu0 0.0
  %2575 = vmatpush.msra.mxu0 0.0
  %2576 = vmatpush.msra.mxu0 0.0
  %2577 = vmatpush.msra.mxu0 0.0
  %2578 = vmatpush.msra.mxu0 0.0
  %2579 = vmatpush.msra.mxu0 0.0
  %2580 = vmatpush.msra.mxu0 0.0
  %2581 = vmatpush.msra.mxu0 0.0
  %2582 = vmatpush.msra.mxu0 %v387
  %2583 = vmatpush.msra.mxu0 %v386
  %2584 = vmatpush.msra.mxu0 %v385
  %2585 = vmatpush.msra.mxu0 %v384
  %2586 = vmatmul.f32.gmra.mxu0 %v2528
  %v2587 = vpop.f32.mrf.mxu0
  %v2588 = vadd.f32 %v390, %v2587
  %2589 = vdwg.mxu0
  %v2590 = vld [vmem:[#allocation2 + $0x70] sm:$0xff]
  %v2591 = vadd.f32 %v2590, %v2548
  %v2592 = vxor.u32 %v2591, 2147483648
  %v2593 = vmul.f32 %v2592, 1.442695
  %v2594 = vpow.pop %v2593
  %v2595 = vadd.f32 %v2594, 1.0
  %v2596 = vrcp.pop %v2595
  %v2597 = vmul.f32 %v2595, %v2596
  %v2598 = vsub.f32 1.0, %v2597
  %v2599 = vmul.f32 %v2596, %v2598
  %v2600 = vadd.f32 %v2596, %v2599
  %vm2601 = vweird.f32 %v2595
  %vm2602 = vweird.f32 %v2596
  %vm2603 = vmor %vm2601, %vm2602
  %v2604 = vsel %vm2603, %v2596, %v2600
  %v2605 = vand.u32 2147483647, %v2595
  %vm2606 = vcmp.eq.f32.partialorder %v2605, 8.507059e+37
  %v2607 = vand.u32 %v2595, 2147483648
  %v2608 = vor.u32 1.1754944e-38, %v2607
  %v2609 = vsel %vm2606, %v2608, %v2604
  %v2610 = vmul.f32 1.0, %v2609
  %v2611 = vld [vmem:[#allocation3 + $0x70] sm:$0xff]
  %v2612 = vadd.f32 %v2611, %v2568
  %v2613 = vxor.u32 %v2612, 2147483648
  %v2614 = vmul.f32 %v2613, 1.442695
  %v2615 = vpow.pop %v2614
  %v2616 = vadd.f32 %v2615, 1.0
  %v2617 = vrcp.pop %v2616
  %v2618 = vmul.f32 %v2616, %v2617
  %v2619 = vsub.f32 1.0, %v2618
  %v2620 = vmul.f32 %v2617, %v2619
  %v2621 = vadd.f32 %v2617, %v2620
  %vm2622 = vweird.f32 %v2616
  %vm2623 = vweird.f32 %v2617
  %vm2624 = vmor %vm2622, %vm2623
  %v2625 = vsel %vm2624, %v2617, %v2621
  %v2626 = vand.u32 2147483647, %v2616
  %vm2627 = vcmp.eq.f32.partialorder %v2626, 8.507059e+37
  %v2628 = vand.u32 %v2616, 2147483648
  %v2629 = vor.u32 1.1754944e-38, %v2628
  %v2630 = vsel %vm2627, %v2629, %v2625
  %v2631 = vmul.f32 1.0, %v2630
  %v2632 = vld [vmem:[#allocation4 + $0x70] sm:$0xff]
  %v2633 = vmul.f32 %v2610, %v2588
  %v2634 = vadd.f32 %v2632, %v2633
  %v2635 = vtanh.pop %v2634
  %v2636 = vsub.f32 1.0, %v2631
  %v2637 = vmul.f32 %v2636, %v2635
  %v2638 = vmul.f32 %v2631, %v2526
  %v2639 = vadd.f32 %v2637, %v2638
  %v2641 = vsel %vm68, %v2639, 0
  %2643 = vmatpush.msra.mxu0 0.0
  %2644 = vmatpush.msra.mxu0 0.0
  %2645 = vmatpush.msra.mxu0 0.0
  %2646 = vmatpush.msra.mxu0 0.0
  %2647 = vmatpush.msra.mxu0 0.0
  %2648 = vmatpush.msra.mxu0 0.0
  %2649 = vmatpush.msra.mxu0 0.0
  %2650 = vmatpush.msra.mxu0 0.0
  %2651 = vmatpush.msra.mxu0 0.0
  %2652 = vmatpush.msra.mxu0 0.0
  %2653 = vmatpush.msra.mxu0 0.0
  %2654 = vmatpush.msra.mxu0 0.0
  %2655 = vmatpush.msra.mxu0 %v379
  %2656 = vmatpush.msra.mxu0 %v378
  %2657 = vmatpush.msra.mxu0 %v377
  %2658 = vmatpush.msra.mxu0 %v376
  %2659 = vmatmul.f32.gmra.mxu0 %v2641
  %v2660 = vpop.f32.mrf.mxu0
  %v2661 = vadd.f32 0.0, %v2660
  %2662 = vdwg.mxu0
  %2663 = vmatpush.msra.mxu0 0.0
  %2664 = vmatpush.msra.mxu0 0.0
  %2665 = vmatpush.msra.mxu0 0.0
  %2666 = vmatpush.msra.mxu0 0.0
  %2667 = vmatpush.msra.mxu0 0.0
  %2668 = vmatpush.msra.mxu0 0.0
  %2669 = vmatpush.msra.mxu0 0.0
  %2670 = vmatpush.msra.mxu0 0.0
  %2671 = vmatpush.msra.mxu0 0.0
  %2672 = vmatpush.msra.mxu0 0.0
  %2673 = vmatpush.msra.mxu0 0.0
  %2674 = vmatpush.msra.mxu0 0.0
  %2675 = vmatpush.msra.mxu0 %v383
  %2676 = vmatpush.msra.mxu0 %v382
  %2677 = vmatpush.msra.mxu0 %v381
  %2678 = vmatpush.msra.mxu0 %v380
  %2679 = vmatmul.f32.gmra.mxu0 %v2641
  %v2680 = vpop.f32.mrf.mxu0
  %v2681 = vadd.f32 0.0, %v2680
  %2682 = vdwg.mxu0
  %2683 = vmatpush.msra.mxu0 0.0
  %2684 = vmatpush.msra.mxu0 0.0
  %2685 = vmatpush.msra.mxu0 0.0
  %2686 = vmatpush.msra.mxu0 0.0
  %2687 = vmatpush.msra.mxu0 0.0
  %2688 = vmatpush.msra.mxu0 0.0
  %2689 = vmatpush.msra.mxu0 0.0
  %2690 = vmatpush.msra.mxu0 0.0
  %2691 = vmatpush.msra.mxu0 0.0
  %2692 = vmatpush.msra.mxu0 0.0
  %2693 = vmatpush.msra.mxu0 0.0
  %2694 = vmatpush.msra.mxu0 0.0
  %2695 = vmatpush.msra.mxu0 %v387
  %2696 = vmatpush.msra.mxu0 %v386
  %2697 = vmatpush.msra.mxu0 %v385
  %2698 = vmatpush.msra.mxu0 %v384
  %2699 = vmatmul.f32.gmra.mxu0 %v2641
  %v2700 = vpop.f32.mrf.mxu0
  %v2701 = vadd.f32 %v390, %v2700
  %2702 = vdwg.mxu0
  %v2703 = vadd.f32 %v465, %v2661
  %v2704 = vxor.u32 %v2703, 2147483648
  %v2705 = vmul.f32 %v2704, 1.442695
  %v2706 = vpow.pop %v2705
  %v2707 = vadd.f32 %v2706, 1.0
  %v2708 = vrcp.pop %v2707
  %v2709 = vmul.f32 %v2707, %v2708
  %v2710 = vsub.f32 1.0, %v2709
  %v2711 = vmul.f32 %v2708, %v2710
  %v2712 = vadd.f32 %v2708, %v2711
  %vm2713 = vweird.f32 %v2707
  %vm2714 = vweird.f32 %v2708
  %vm2715 = vmor %vm2713, %vm2714
  %v2716 = vsel %vm2715, %v2708, %v2712
  %v2717 = vand.u32 2147483647, %v2707
  %vm2718 = vcmp.eq.f32.partialorder %v2717, 8.507059e+37
  %v2719 = vand.u32 %v2707, 2147483648
  %v2720 = vor.u32 1.1754944e-38, %v2719
  %v2721 = vsel %vm2718, %v2720, %v2716
  %v2722 = vmul.f32 1.0, %v2721
  %v2723 = vadd.f32 %v507, %v2681
  %v2724 = vxor.u32 %v2723, 2147483648
  %v2725 = vmul.f32 %v2724, 1.442695
  %v2726 = vpow.pop %v2725
  %v2727 = vadd.f32 %v2726, 1.0
  %v2728 = vrcp.pop %v2727
  %v2729 = vmul.f32 %v2727, %v2728
  %v2730 = vsub.f32 1.0, %v2729
  %v2731 = vmul.f32 %v2728, %v2730
  %v2732 = vadd.f32 %v2728, %v2731
  %vm2733 = vweird.f32 %v2727
  %vm2734 = vweird.f32 %v2728
  %vm2735 = vmor %vm2733, %vm2734
  %v2736 = vsel %vm2735, %v2728, %v2732
  %v2737 = vand.u32 2147483647, %v2727
  %vm2738 = vcmp.eq.f32.partialorder %v2737, 8.507059e+37
  %v2739 = vand.u32 %v2727, 2147483648
  %v2740 = vor.u32 1.1754944e-38, %v2739
  %v2741 = vsel %vm2738, %v2740, %v2736
  %v2742 = vmul.f32 1.0, %v2741
  %v2743 = vmul.f32 %v2722, %v2701
  %v2744 = vadd.f32 %v549, %v2743
  %v2745 = vtanh.pop %v2744
  %v2746 = vsub.f32 1.0, %v2742
  %v2747 = vmul.f32 %v2746, %v2745
  %v2748 = vmul.f32 %v2742, %v2639
  %v2749 = vadd.f32 %v2747, %v2748
  %v2751 = vsel %vm68, %v2749, 0
  %2753 = vmatpush.msra.mxu0 0.0
  %2754 = vmatpush.msra.mxu0 0.0
  %2755 = vmatpush.msra.mxu0 0.0
  %2756 = vmatpush.msra.mxu0 0.0
  %2757 = vmatpush.msra.mxu0 0.0
  %2758 = vmatpush.msra.mxu0 0.0
  %2759 = vmatpush.msra.mxu0 0.0
  %2760 = vmatpush.msra.mxu0 0.0
  %2761 = vmatpush.msra.mxu0 0.0
  %2762 = vmatpush.msra.mxu0 0.0
  %2763 = vmatpush.msra.mxu0 0.0
  %2764 = vmatpush.msra.mxu0 0.0
  %2765 = vmatpush.msra.mxu0 %v379
  %2766 = vmatpush.msra.mxu0 %v378
  %2767 = vmatpush.msra.mxu0 %v377
  %2768 = vmatpush.msra.mxu0 %v376
  %2769 = vmatmul.f32.gmra.mxu0 %v2751
  %v2770 = vpop.f32.mrf.mxu0
  %v2771 = vadd.f32 0.0, %v2770
  %2772 = vdwg.mxu0
  %2773 = vmatpush.msra.mxu0 0.0
  %2774 = vmatpush.msra.mxu0 0.0
  %2775 = vmatpush.msra.mxu0 0.0
  %2776 = vmatpush.msra.mxu0 0.0
  %2777 = vmatpush.msra.mxu0 0.0
  %2778 = vmatpush.msra.mxu0 0.0
  %2779 = vmatpush.msra.mxu0 0.0
  %2780 = vmatpush.msra.mxu0 0.0
  %2781 = vmatpush.msra.mxu0 0.0
  %2782 = vmatpush.msra.mxu0 0.0
  %2783 = vmatpush.msra.mxu0 0.0
  %2784 = vmatpush.msra.mxu0 0.0
  %2785 = vmatpush.msra.mxu0 %v383
  %2786 = vmatpush.msra.mxu0 %v382
  %2787 = vmatpush.msra.mxu0 %v381
  %2788 = vmatpush.msra.mxu0 %v380
  %2789 = vmatmul.f32.gmra.mxu0 %v2751
  %v2790 = vpop.f32.mrf.mxu0
  %v2791 = vadd.f32 0.0, %v2790
  %2792 = vdwg.mxu0
  %2793 = vmatpush.msra.mxu0 0.0
  %2794 = vmatpush.msra.mxu0 0.0
  %2795 = vmatpush.msra.mxu0 0.0
  %2796 = vmatpush.msra.mxu0 0.0
  %2797 = vmatpush.msra.mxu0 0.0
  %2798 = vmatpush.msra.mxu0 0.0
  %2799 = vmatpush.msra.mxu0 0.0
  %2800 = vmatpush.msra.mxu0 0.0
  %2801 = vmatpush.msra.mxu0 0.0
  %2802 = vmatpush.msra.mxu0 0.0
  %2803 = vmatpush.msra.mxu0 0.0
  %2804 = vmatpush.msra.mxu0 0.0
  %2805 = vmatpush.msra.mxu0 %v387
  %2806 = vmatpush.msra.mxu0 %v386
  %2807 = vmatpush.msra.mxu0 %v385
  %2808 = vmatpush.msra.mxu0 %v384
  %2809 = vmatmul.f32.gmra.mxu0 %v2751
  %v2810 = vpop.f32.mrf.mxu0
  %v2811 = vadd.f32 %v390, %v2810
  %2812 = vdwg.mxu0
  %v2813 = vadd.f32 %v640, %v2771
  %v2814 = vxor.u32 %v2813, 2147483648
  %v2815 = vmul.f32 %v2814, 1.442695
  %v2816 = vpow.pop %v2815
  %v2817 = vadd.f32 %v2816, 1.0
  %v2818 = vrcp.pop %v2817
  %v2819 = vmul.f32 %v2817, %v2818
  %v2820 = vsub.f32 1.0, %v2819
  %v2821 = vmul.f32 %v2818, %v2820
  %v2822 = vadd.f32 %v2818, %v2821
  %vm2823 = vweird.f32 %v2817
  %vm2824 = vweird.f32 %v2818
  %vm2825 = vmor %vm2823, %vm2824
  %v2826 = vsel %vm2825, %v2818, %v2822
  %v2827 = vand.u32 2147483647, %v2817
  %vm2828 = vcmp.eq.f32.partialorder %v2827, 8.507059e+37
  %v2829 = vand.u32 %v2817, 2147483648
  %v2830 = vor.u32 1.1754944e-38, %v2829
  %v2831 = vsel %vm2828, %v2830, %v2826
  %v2832 = vmul.f32 1.0, %v2831
  %v2833 = vadd.f32 %v682, %v2791
  %v2834 = vxor.u32 %v2833, 2147483648
  %v2835 = vmul.f32 %v2834, 1.442695
  %v2836 = vpow.pop %v2835
  %v2837 = vadd.f32 %v2836, 1.0
  %v2838 = vrcp.pop %v2837
  %v2839 = vmul.f32 %v2837, %v2838
  %v2840 = vsub.f32 1.0, %v2839
  %v2841 = vmul.f32 %v2838, %v2840
  %v2842 = vadd.f32 %v2838, %v2841
  %vm2843 = vweird.f32 %v2837
  %vm2844 = vweird.f32 %v2838
  %vm2845 = vmor %vm2843, %vm2844
  %v2846 = vsel %vm2845, %v2838, %v2842
  %v2847 = vand.u32 2147483647, %v2837
  %vm2848 = vcmp.eq.f32.partialorder %v2847, 8.507059e+37
  %v2849 = vand.u32 %v2837, 2147483648
  %v2850 = vor.u32 1.1754944e-38, %v2849
  %v2851 = vsel %vm2848, %v2850, %v2846
  %v2852 = vmul.f32 1.0, %v2851
  %v2853 = vmul.f32 %v2832, %v2811
  %v2854 = vadd.f32 %v724, %v2853
  %v2855 = vtanh.pop %v2854
  %v2856 = vsub.f32 1.0, %v2852
  %v2857 = vmul.f32 %v2856, %v2855
  %v2858 = vmul.f32 %v2852, %v2749
  %v2859 = vadd.f32 %v2857, %v2858
  %v2861 = vsel %vm68, %v2859, 0
  %2863 = vmatpush.msra.mxu0 0.0
  %2864 = vmatpush.msra.mxu0 0.0
  %2865 = vmatpush.msra.mxu0 0.0
  %2866 = vmatpush.msra.mxu0 0.0
  %2867 = vmatpush.msra.mxu0 0.0
  %2868 = vmatpush.msra.mxu0 0.0
  %2869 = vmatpush.msra.mxu0 0.0
  %2870 = vmatpush.msra.mxu0 0.0
  %2871 = vmatpush.msra.mxu0 0.0
  %2872 = vmatpush.msra.mxu0 0.0
  %2873 = vmatpush.msra.mxu0 0.0
  %2874 = vmatpush.msra.mxu0 0.0
  %2875 = vmatpush.msra.mxu0 %v379
  %2876 = vmatpush.msra.mxu0 %v378
  %2877 = vmatpush.msra.mxu0 %v377
  %2878 = vmatpush.msra.mxu0 %v376
  %2879 = vmatmul.f32.gmra.mxu0 %v2861
  %v2880 = vpop.f32.mrf.mxu0
  %v2881 = vadd.f32 0.0, %v2880
  %2882 = vdwg.mxu0
  %2883 = vmatpush.msra.mxu0 0.0
  %2884 = vmatpush.msra.mxu0 0.0
  %2885 = vmatpush.msra.mxu0 0.0
  %2886 = vmatpush.msra.mxu0 0.0
  %2887 = vmatpush.msra.mxu0 0.0
  %2888 = vmatpush.msra.mxu0 0.0
  %2889 = vmatpush.msra.mxu0 0.0
  %2890 = vmatpush.msra.mxu0 0.0
  %2891 = vmatpush.msra.mxu0 0.0
  %2892 = vmatpush.msra.mxu0 0.0
  %2893 = vmatpush.msra.mxu0 0.0
  %2894 = vmatpush.msra.mxu0 0.0
  %2895 = vmatpush.msra.mxu0 %v383
  %2896 = vmatpush.msra.mxu0 %v382
  %2897 = vmatpush.msra.mxu0 %v381
  %2898 = vmatpush.msra.mxu0 %v380
  %2899 = vmatmul.f32.gmra.mxu0 %v2861
  %v2900 = vpop.f32.mrf.mxu0
  %v2901 = vadd.f32 0.0, %v2900
  %2902 = vdwg.mxu0
  %2903 = vmatpush.msra.mxu0 0.0
  %2904 = vmatpush.msra.mxu0 0.0
  %2905 = vmatpush.msra.mxu0 0.0
  %2906 = vmatpush.msra.mxu0 0.0
  %2907 = vmatpush.msra.mxu0 0.0
  %2908 = vmatpush.msra.mxu0 0.0
  %2909 = vmatpush.msra.mxu0 0.0
  %2910 = vmatpush.msra.mxu0 0.0
  %2911 = vmatpush.msra.mxu0 0.0
  %2912 = vmatpush.msra.mxu0 0.0
  %2913 = vmatpush.msra.mxu0 0.0
  %2914 = vmatpush.msra.mxu0 0.0
  %2915 = vmatpush.msra.mxu0 %v387
  %2916 = vmatpush.msra.mxu0 %v386
  %2917 = vmatpush.msra.mxu0 %v385
  %2918 = vmatpush.msra.mxu0 %v384
  %2919 = vmatmul.f32.gmra.mxu0 %v2861
  %v2920 = vpop.f32.mrf.mxu0
  %v2921 = vadd.f32 %v390, %v2920
  %2922 = vdwg.mxu0
  %v2923 = vadd.f32 %v815, %v2881
  %v2924 = vxor.u32 %v2923, 2147483648
  %v2925 = vmul.f32 %v2924, 1.442695
  %v2926 = vpow.pop %v2925
  %v2927 = vadd.f32 %v2926, 1.0
  %v2928 = vrcp.pop %v2927
  %v2929 = vmul.f32 %v2927, %v2928
  %v2930 = vsub.f32 1.0, %v2929
  %v2931 = vmul.f32 %v2928, %v2930
  %v2932 = vadd.f32 %v2928, %v2931
  %vm2933 = vweird.f32 %v2927
  %vm2934 = vweird.f32 %v2928
  %vm2935 = vmor %vm2933, %vm2934
  %v2936 = vsel %vm2935, %v2928, %v2932
  %v2937 = vand.u32 2147483647, %v2927
  %vm2938 = vcmp.eq.f32.partialorder %v2937, 8.507059e+37
  %v2939 = vand.u32 %v2927, 2147483648
  %v2940 = vor.u32 1.1754944e-38, %v2939
  %v2941 = vsel %vm2938, %v2940, %v2936
  %v2942 = vmul.f32 1.0, %v2941
  %v2943 = vadd.f32 %v857, %v2901
  %v2944 = vxor.u32 %v2943, 2147483648
  %v2945 = vmul.f32 %v2944, 1.442695
  %v2946 = vpow.pop %v2945
  %v2947 = vadd.f32 %v2946, 1.0
  %v2948 = vrcp.pop %v2947
  %v2949 = vmul.f32 %v2947, %v2948
  %v2950 = vsub.f32 1.0, %v2949
  %v2951 = vmul.f32 %v2948, %v2950
  %v2952 = vadd.f32 %v2948, %v2951
  %vm2953 = vweird.f32 %v2947
  %vm2954 = vweird.f32 %v2948
  %vm2955 = vmor %vm2953, %vm2954
  %v2956 = vsel %vm2955, %v2948, %v2952
  %v2957 = vand.u32 2147483647, %v2947
  %vm2958 = vcmp.eq.f32.partialorder %v2957, 8.507059e+37
  %v2959 = vand.u32 %v2947, 2147483648
  %v2960 = vor.u32 1.1754944e-38, %v2959
  %v2961 = vsel %vm2958, %v2960, %v2956
  %v2962 = vmul.f32 1.0, %v2961
  %v2963 = vmul.f32 %v2942, %v2921
  %v2964 = vadd.f32 %v899, %v2963
  %v2965 = vtanh.pop %v2964
  %v2966 = vsub.f32 1.0, %v2962
  %v2967 = vmul.f32 %v2966, %v2965
  %v2968 = vmul.f32 %v2962, %v2859
  %v2969 = vadd.f32 %v2967, %v2968
  %v2971 = vsel %vm68, %v2969, 0
  %2973 = vmatpush.msra.mxu0 0.0
  %2974 = vmatpush.msra.mxu0 0.0
  %2975 = vmatpush.msra.mxu0 0.0
  %2976 = vmatpush.msra.mxu0 0.0
  %2977 = vmatpush.msra.mxu0 0.0
  %2978 = vmatpush.msra.mxu0 0.0
  %2979 = vmatpush.msra.mxu0 0.0
  %2980 = vmatpush.msra.mxu0 0.0
  %2981 = vmatpush.msra.mxu0 0.0
  %2982 = vmatpush.msra.mxu0 0.0
  %2983 = vmatpush.msra.mxu0 0.0
  %2984 = vmatpush.msra.mxu0 0.0
  %2985 = vmatpush.msra.mxu0 %v379
  %2986 = vmatpush.msra.mxu0 %v378
  %2987 = vmatpush.msra.mxu0 %v377
  %2988 = vmatpush.msra.mxu0 %v376
  %2989 = vmatmul.f32.gmra.mxu0 %v2971
  %v2990 = vpop.f32.mrf.mxu0
  %v2991 = vadd.f32 0.0, %v2990
  %2992 = vdwg.mxu0
  %2993 = vmatpush.msra.mxu0 0.0
  %2994 = vmatpush.msra.mxu0 0.0
  %2995 = vmatpush.msra.mxu0 0.0
  %2996 = vmatpush.msra.mxu0 0.0
  %2997 = vmatpush.msra.mxu0 0.0
  %2998 = vmatpush.msra.mxu0 0.0
  %2999 = vmatpush.msra.mxu0 0.0
  %3000 = vmatpush.msra.mxu0 0.0
  %3001 = vmatpush.msra.mxu0 0.0
  %3002 = vmatpush.msra.mxu0 0.0
  %3003 = vmatpush.msra.mxu0 0.0
  %3004 = vmatpush.msra.mxu0 0.0
  %3005 = vmatpush.msra.mxu0 %v383
  %3006 = vmatpush.msra.mxu0 %v382
  %3007 = vmatpush.msra.mxu0 %v381
  %3008 = vmatpush.msra.mxu0 %v380
  %3009 = vmatmul.f32.gmra.mxu0 %v2971
  %v3010 = vpop.f32.mrf.mxu0
  %v3011 = vadd.f32 0.0, %v3010
  %3012 = vdwg.mxu0
  %3013 = vmatpush.msra.mxu0 0.0
  %3014 = vmatpush.msra.mxu0 0.0
  %3015 = vmatpush.msra.mxu0 0.0
  %3016 = vmatpush.msra.mxu0 0.0
  %3017 = vmatpush.msra.mxu0 0.0
  %3018 = vmatpush.msra.mxu0 0.0
  %3019 = vmatpush.msra.mxu0 0.0
  %3020 = vmatpush.msra.mxu0 0.0
  %3021 = vmatpush.msra.mxu0 0.0
  %3022 = vmatpush.msra.mxu0 0.0
  %3023 = vmatpush.msra.mxu0 0.0
  %3024 = vmatpush.msra.mxu0 0.0
  %3025 = vmatpush.msra.mxu0 %v387
  %3026 = vmatpush.msra.mxu0 %v386
  %3027 = vmatpush.msra.mxu0 %v385
  %3028 = vmatpush.msra.mxu0 %v384
  %3029 = vmatmul.f32.gmra.mxu0 %v2971
  %v3030 = vpop.f32.mrf.mxu0
  %v3031 = vadd.f32 %v390, %v3030
  %3032 = vdwg.mxu0
  %v3033 = vadd.f32 %v990, %v2991
  %v3034 = vxor.u32 %v3033, 2147483648
  %v3035 = vmul.f32 %v3034, 1.442695
  %v3036 = vpow.pop %v3035
  %v3037 = vadd.f32 %v3036, 1.0
  %v3038 = vrcp.pop %v3037
  %v3039 = vmul.f32 %v3037, %v3038
  %v3040 = vsub.f32 1.0, %v3039
  %v3041 = vmul.f32 %v3038, %v3040
  %v3042 = vadd.f32 %v3038, %v3041
  %vm3043 = vweird.f32 %v3037
  %vm3044 = vweird.f32 %v3038
  %vm3045 = vmor %vm3043, %vm3044
  %v3046 = vsel %vm3045, %v3038, %v3042
  %v3047 = vand.u32 2147483647, %v3037
  %vm3048 = vcmp.eq.f32.partialorder %v3047, 8.507059e+37
  %v3049 = vand.u32 %v3037, 2147483648
  %v3050 = vor.u32 1.1754944e-38, %v3049
  %v3051 = vsel %vm3048, %v3050, %v3046
  %v3052 = vmul.f32 1.0, %v3051
  %v3053 = vadd.f32 %v1032, %v3011
  %v3054 = vxor.u32 %v3053, 2147483648
  %v3055 = vmul.f32 %v3054, 1.442695
  %v3056 = vpow.pop %v3055
  %v3057 = vadd.f32 %v3056, 1.0
  %v3058 = vrcp.pop %v3057
  %v3059 = vmul.f32 %v3057, %v3058
  %v3060 = vsub.f32 1.0, %v3059
  %v3061 = vmul.f32 %v3058, %v3060
  %v3062 = vadd.f32 %v3058, %v3061
  %vm3063 = vweird.f32 %v3057
  %vm3064 = vweird.f32 %v3058
  %vm3065 = vmor %vm3063, %vm3064
  %v3066 = vsel %vm3065, %v3058, %v3062
  %v3067 = vand.u32 2147483647, %v3057
  %vm3068 = vcmp.eq.f32.partialorder %v3067, 8.507059e+37
  %v3069 = vand.u32 %v3057, 2147483648
  %v3070 = vor.u32 1.1754944e-38, %v3069
  %v3071 = vsel %vm3068, %v3070, %v3066
  %v3072 = vmul.f32 1.0, %v3071
  %v3073 = vmul.f32 %v3052, %v3031
  %v3074 = vadd.f32 %v1074, %v3073
  %v3075 = vtanh.pop %v3074
  %v3076 = vsub.f32 1.0, %v3072
  %v3077 = vmul.f32 %v3076, %v3075
  %v3078 = vmul.f32 %v3072, %v2969
  %v3079 = vadd.f32 %v3077, %v3078
  %v3081 = vsel %vm68, %v3079, 0
  %3083 = vmatpush.msra.mxu0 0.0
  %3084 = vmatpush.msra.mxu0 0.0
  %3085 = vmatpush.msra.mxu0 0.0
  %3086 = vmatpush.msra.mxu0 0.0
  %3087 = vmatpush.msra.mxu0 0.0
  %3088 = vmatpush.msra.mxu0 0.0
  %3089 = vmatpush.msra.mxu0 0.0
  %3090 = vmatpush.msra.mxu0 0.0
  %3091 = vmatpush.msra.mxu0 0.0
  %3092 = vmatpush.msra.mxu0 0.0
  %3093 = vmatpush.msra.mxu0 0.0
  %3094 = vmatpush.msra.mxu0 0.0
  %3095 = vmatpush.msra.mxu0 %v379
  %3096 = vmatpush.msra.mxu0 %v378
  %3097 = vmatpush.msra.mxu0 %v377
  %3098 = vmatpush.msra.mxu0 %v376
  %3099 = vmatmul.f32.gmra.mxu0 %v3081
  %v3100 = vpop.f32.mrf.mxu0
  %v3101 = vadd.f32 0.0, %v3100
  %3102 = vdwg.mxu0
  %3103 = vmatpush.msra.mxu0 0.0
  %3104 = vmatpush.msra.mxu0 0.0
  %3105 = vmatpush.msra.mxu0 0.0
  %3106 = vmatpush.msra.mxu0 0.0
  %3107 = vmatpush.msra.mxu0 0.0
  %3108 = vmatpush.msra.mxu0 0.0
  %3109 = vmatpush.msra.mxu0 0.0
  %3110 = vmatpush.msra.mxu0 0.0
  %3111 = vmatpush.msra.mxu0 0.0
  %3112 = vmatpush.msra.mxu0 0.0
  %3113 = vmatpush.msra.mxu0 0.0
  %3114 = vmatpush.msra.mxu0 0.0
  %3115 = vmatpush.msra.mxu0 %v383
  %3116 = vmatpush.msra.mxu0 %v382
  %3117 = vmatpush.msra.mxu0 %v381
  %3118 = vmatpush.msra.mxu0 %v380
  %3119 = vmatmul.f32.gmra.mxu0 %v3081
  %v3120 = vpop.f32.mrf.mxu0
  %v3121 = vadd.f32 0.0, %v3120
  %3122 = vdwg.mxu0
  %3123 = vmatpush.msra.mxu0 0.0
  %3124 = vmatpush.msra.mxu0 0.0
  %3125 = vmatpush.msra.mxu0 0.0
  %3126 = vmatpush.msra.mxu0 0.0
  %3127 = vmatpush.msra.mxu0 0.0
  %3128 = vmatpush.msra.mxu0 0.0
  %3129 = vmatpush.msra.mxu0 0.0
  %3130 = vmatpush.msra.mxu0 0.0
  %3131 = vmatpush.msra.mxu0 0.0
  %3132 = vmatpush.msra.mxu0 0.0
  %3133 = vmatpush.msra.mxu0 0.0
  %3134 = vmatpush.msra.mxu0 0.0
  %3135 = vmatpush.msra.mxu0 %v387
  %3136 = vmatpush.msra.mxu0 %v386
  %3137 = vmatpush.msra.mxu0 %v385
  %3138 = vmatpush.msra.mxu0 %v384
  %3139 = vmatmul.f32.gmra.mxu0 %v3081
  %v3140 = vpop.f32.mrf.mxu0
  %v3141 = vadd.f32 %v390, %v3140
  %3142 = vdwg.mxu0
  %v3143 = vadd.f32 %v1165, %v3101
  %v3144 = vxor.u32 %v3143, 2147483648
  %v3145 = vmul.f32 %v3144, 1.442695
  %v3146 = vpow.pop %v3145
  %v3147 = vadd.f32 %v3146, 1.0
  %v3148 = vrcp.pop %v3147
  %v3149 = vmul.f32 %v3147, %v3148
  %v3150 = vsub.f32 1.0, %v3149
  %v3151 = vmul.f32 %v3148, %v3150
  %v3152 = vadd.f32 %v3148, %v3151
  %vm3153 = vweird.f32 %v3147
  %vm3154 = vweird.f32 %v3148
  %vm3155 = vmor %vm3153, %vm3154
  %v3156 = vsel %vm3155, %v3148, %v3152
  %v3157 = vand.u32 2147483647, %v3147
  %vm3158 = vcmp.eq.f32.partialorder %v3157, 8.507059e+37
  %v3159 = vand.u32 %v3147, 2147483648
  %v3160 = vor.u32 1.1754944e-38, %v3159
  %v3161 = vsel %vm3158, %v3160, %v3156
  %v3162 = vmul.f32 1.0, %v3161
  %v3163 = vadd.f32 %v1207, %v3121
  %v3164 = vxor.u32 %v3163, 2147483648
  %v3165 = vmul.f32 %v3164, 1.442695
  %v3166 = vpow.pop %v3165
  %v3167 = vadd.f32 %v3166, 1.0
  %v3168 = vrcp.pop %v3167
  %v3169 = vmul.f32 %v3167, %v3168
  %v3170 = vsub.f32 1.0, %v3169
  %v3171 = vmul.f32 %v3168, %v3170
  %v3172 = vadd.f32 %v3168, %v3171
  %vm3173 = vweird.f32 %v3167
  %vm3174 = vweird.f32 %v3168
  %vm3175 = vmor %vm3173, %vm3174
  %v3176 = vsel %vm3175, %v3168, %v3172
  %v3177 = vand.u32 2147483647, %v3167
  %vm3178 = vcmp.eq.f32.partialorder %v3177, 8.507059e+37
  %v3179 = vand.u32 %v3167, 2147483648
  %v3180 = vor.u32 1.1754944e-38, %v3179
  %v3181 = vsel %vm3178, %v3180, %v3176
  %v3182 = vmul.f32 1.0, %v3181
  %v3183 = vmul.f32 %v3162, %v3141
  %v3184 = vadd.f32 %v1249, %v3183
  %v3185 = vtanh.pop %v3184
  %v3186 = vsub.f32 1.0, %v3182
  %v3187 = vmul.f32 %v3186, %v3185
  %v3188 = vmul.f32 %v3182, %v3079
  %v3189 = vadd.f32 %v3187, %v3188
  %v3191 = vsel %vm68, %v3189, 0
  %3193 = vmatpush.msra.mxu0 0.0
  %3194 = vmatpush.msra.mxu0 0.0
  %3195 = vmatpush.msra.mxu0 0.0
  %3196 = vmatpush.msra.mxu0 0.0
  %3197 = vmatpush.msra.mxu0 0.0
  %3198 = vmatpush.msra.mxu0 0.0
  %3199 = vmatpush.msra.mxu0 0.0
  %3200 = vmatpush.msra.mxu0 0.0
  %3201 = vmatpush.msra.mxu0 0.0
  %3202 = vmatpush.msra.mxu0 0.0
  %3203 = vmatpush.msra.mxu0 0.0
  %3204 = vmatpush.msra.mxu0 0.0
  %3205 = vmatpush.msra.mxu0 %v379
  %3206 = vmatpush.msra.mxu0 %v378
  %3207 = vmatpush.msra.mxu0 %v377
  %3208 = vmatpush.msra.mxu0 %v376
  %3209 = vmatmul.f32.gmra.mxu0 %v3191
  %v3210 = vpop.f32.mrf.mxu0
  %v3211 = vadd.f32 0.0, %v3210
  %3212 = vdwg.mxu0
  %3213 = vmatpush.msra.mxu0 0.0
  %3214 = vmatpush.msra.mxu0 0.0
  %3215 = vmatpush.msra.mxu0 0.0
  %3216 = vmatpush.msra.mxu0 0.0
  %3217 = vmatpush.msra.mxu0 0.0
  %3218 = vmatpush.msra.mxu0 0.0
  %3219 = vmatpush.msra.mxu0 0.0
  %3220 = vmatpush.msra.mxu0 0.0
  %3221 = vmatpush.msra.mxu0 0.0
  %3222 = vmatpush.msra.mxu0 0.0
  %3223 = vmatpush.msra.mxu0 0.0
  %3224 = vmatpush.msra.mxu0 0.0
  %3225 = vmatpush.msra.mxu0 %v383
  %3226 = vmatpush.msra.mxu0 %v382
  %3227 = vmatpush.msra.mxu0 %v381
  %3228 = vmatpush.msra.mxu0 %v380
  %3229 = vmatmul.f32.gmra.mxu0 %v3191
  %v3230 = vpop.f32.mrf.mxu0
  %v3231 = vadd.f32 0.0, %v3230
  %3232 = vdwg.mxu0
  %3233 = vmatpush.msra.mxu0 0.0
  %3234 = vmatpush.msra.mxu0 0.0
  %3235 = vmatpush.msra.mxu0 0.0
  %3236 = vmatpush.msra.mxu0 0.0
  %3237 = vmatpush.msra.mxu0 0.0
  %3238 = vmatpush.msra.mxu0 0.0
  %3239 = vmatpush.msra.mxu0 0.0
  %3240 = vmatpush.msra.mxu0 0.0
  %3241 = vmatpush.msra.mxu0 0.0
  %3242 = vmatpush.msra.mxu0 0.0
  %3243 = vmatpush.msra.mxu0 0.0
  %3244 = vmatpush.msra.mxu0 0.0
  %3245 = vmatpush.msra.mxu0 %v387
  %3246 = vmatpush.msra.mxu0 %v386
  %3247 = vmatpush.msra.mxu0 %v385
  %3248 = vmatpush.msra.mxu0 %v384
  %3249 = vmatmul.f32.gmra.mxu0 %v3191
  %v3250 = vpop.f32.mrf.mxu0
  %v3251 = vadd.f32 %v390, %v3250
  %3252 = vdwg.mxu0
  %v3253 = vadd.f32 %v1340, %v3211
  %v3254 = vxor.u32 %v3253, 2147483648
  %v3255 = vmul.f32 %v3254, 1.442695
  %v3256 = vpow.pop %v3255
  %v3257 = vadd.f32 %v3256, 1.0
  %v3258 = vrcp.pop %v3257
  %v3259 = vmul.f32 %v3257, %v3258
  %v3260 = vsub.f32 1.0, %v3259
  %v3261 = vmul.f32 %v3258, %v3260
  %v3262 = vadd.f32 %v3258, %v3261
  %vm3263 = vweird.f32 %v3257
  %vm3264 = vweird.f32 %v3258
  %vm3265 = vmor %vm3263, %vm3264
  %v3266 = vsel %vm3265, %v3258, %v3262
  %v3267 = vand.u32 2147483647, %v3257
  %vm3268 = vcmp.eq.f32.partialorder %v3267, 8.507059e+37
  %v3269 = vand.u32 %v3257, 2147483648
  %v3270 = vor.u32 1.1754944e-38, %v3269
  %v3271 = vsel %vm3268, %v3270, %v3266
  %v3272 = vmul.f32 1.0, %v3271
  %v3273 = vadd.f32 %v1382, %v3231
  %v3274 = vxor.u32 %v3273, 2147483648
  %v3275 = vmul.f32 %v3274, 1.442695
  %v3276 = vpow.pop %v3275
  %v3277 = vadd.f32 %v3276, 1.0
  %v3278 = vrcp.pop %v3277
  %v3279 = vmul.f32 %v3277, %v3278
  %v3280 = vsub.f32 1.0, %v3279
  %v3281 = vmul.f32 %v3278, %v3280
  %v3282 = vadd.f32 %v3278, %v3281
  %vm3283 = vweird.f32 %v3277
  %vm3284 = vweird.f32 %v3278
  %vm3285 = vmor %vm3283, %vm3284
  %v3286 = vsel %vm3285, %v3278, %v3282
  %v3287 = vand.u32 2147483647, %v3277
  %vm3288 = vcmp.eq.f32.partialorder %v3287, 8.507059e+37
  %v3289 = vand.u32 %v3277, 2147483648
  %v3290 = vor.u32 1.1754944e-38, %v3289
  %v3291 = vsel %vm3288, %v3290, %v3286
  %v3292 = vmul.f32 1.0, %v3291
  %v3293 = vmul.f32 %v3272, %v3251
  %v3294 = vadd.f32 %v1424, %v3293
  %v3295 = vtanh.pop %v3294
  %v3296 = vsub.f32 1.0, %v3292
  %v3297 = vmul.f32 %v3296, %v3295
  %v3298 = vmul.f32 %v3292, %v3189
  %v3299 = vadd.f32 %v3297, %v3298
  %v3301 = vsel %vm68, %v3299, 0
  %3303 = vmatpush.msra.mxu0 0.0
  %3304 = vmatpush.msra.mxu0 0.0
  %3305 = vmatpush.msra.mxu0 0.0
  %3306 = vmatpush.msra.mxu0 0.0
  %3307 = vmatpush.msra.mxu0 0.0
  %3308 = vmatpush.msra.mxu0 0.0
  %3309 = vmatpush.msra.mxu0 0.0
  %3310 = vmatpush.msra.mxu0 0.0
  %3311 = vmatpush.msra.mxu0 0.0
  %3312 = vmatpush.msra.mxu0 0.0
  %3313 = vmatpush.msra.mxu0 0.0
  %3314 = vmatpush.msra.mxu0 0.0
  %3315 = vmatpush.msra.mxu0 %v379
  %3316 = vmatpush.msra.mxu0 %v378
  %3317 = vmatpush.msra.mxu0 %v377
  %3318 = vmatpush.msra.mxu0 %v376
  %3319 = vmatmul.f32.gmra.mxu0 %v3301
  %v3320 = vpop.f32.mrf.mxu0
  %v3321 = vadd.f32 0.0, %v3320
  %3322 = vdwg.mxu0
  %3323 = vmatpush.msra.mxu0 0.0
  %3324 = vmatpush.msra.mxu0 0.0
  %3325 = vmatpush.msra.mxu0 0.0
  %3326 = vmatpush.msra.mxu0 0.0
  %3327 = vmatpush.msra.mxu0 0.0
  %3328 = vmatpush.msra.mxu0 0.0
  %3329 = vmatpush.msra.mxu0 0.0
  %3330 = vmatpush.msra.mxu0 0.0
  %3331 = vmatpush.msra.mxu0 0.0
  %3332 = vmatpush.msra.mxu0 0.0
  %3333 = vmatpush.msra.mxu0 0.0
  %3334 = vmatpush.msra.mxu0 0.0
  %3335 = vmatpush.msra.mxu0 %v383
  %3336 = vmatpush.msra.mxu0 %v382
  %3337 = vmatpush.msra.mxu0 %v381
  %3338 = vmatpush.msra.mxu0 %v380
  %3339 = vmatmul.f32.gmra.mxu0 %v3301
  %v3340 = vpop.f32.mrf.mxu0
  %v3341 = vadd.f32 0.0, %v3340
  %3342 = vdwg.mxu0
  %3343 = vmatpush.msra.mxu0 0.0
  %3344 = vmatpush.msra.mxu0 0.0
  %3345 = vmatpush.msra.mxu0 0.0
  %3346 = vmatpush.msra.mxu0 0.0
  %3347 = vmatpush.msra.mxu0 0.0
  %3348 = vmatpush.msra.mxu0 0.0
  %3349 = vmatpush.msra.mxu0 0.0
  %3350 = vmatpush.msra.mxu0 0.0
  %3351 = vmatpush.msra.mxu0 0.0
  %3352 = vmatpush.msra.mxu0 0.0
  %3353 = vmatpush.msra.mxu0 0.0
  %3354 = vmatpush.msra.mxu0 0.0
  %3355 = vmatpush.msra.mxu0 %v387
  %3356 = vmatpush.msra.mxu0 %v386
  %3357 = vmatpush.msra.mxu0 %v385
  %3358 = vmatpush.msra.mxu0 %v384
  %3359 = vmatmul.f32.gmra.mxu0 %v3301
  %v3360 = vpop.f32.mrf.mxu0
  %v3361 = vadd.f32 %v390, %v3360
  %3362 = vdwg.mxu0
  %v3363 = vadd.f32 %v1515, %v3321
  %v3364 = vxor.u32 %v3363, 2147483648
  %v3365 = vmul.f32 %v3364, 1.442695
  %v3366 = vpow.pop %v3365
  %v3367 = vadd.f32 %v3366, 1.0
  %v3368 = vrcp.pop %v3367
  %v3369 = vmul.f32 %v3367, %v3368
  %v3370 = vsub.f32 1.0, %v3369
  %v3371 = vmul.f32 %v3368, %v3370
  %v3372 = vadd.f32 %v3368, %v3371
  %vm3373 = vweird.f32 %v3367
  %vm3374 = vweird.f32 %v3368
  %vm3375 = vmor %vm3373, %vm3374
  %v3376 = vsel %vm3375, %v3368, %v3372
  %v3377 = vand.u32 2147483647, %v3367
  %vm3378 = vcmp.eq.f32.partialorder %v3377, 8.507059e+37
  %v3379 = vand.u32 %v3367, 2147483648
  %v3380 = vor.u32 1.1754944e-38, %v3379
  %v3381 = vsel %vm3378, %v3380, %v3376
  %v3382 = vmul.f32 1.0, %v3381
  %v3383 = vadd.f32 %v1557, %v3341
  %v3384 = vxor.u32 %v3383, 2147483648
  %v3385 = vmul.f32 %v3384, 1.442695
  %v3386 = vpow.pop %v3385
  %v3387 = vadd.f32 %v3386, 1.0
  %v3388 = vrcp.pop %v3387
  %v3389 = vmul.f32 %v3387, %v3388
  %v3390 = vsub.f32 1.0, %v3389
  %v3391 = vmul.f32 %v3388, %v3390
  %v3392 = vadd.f32 %v3388, %v3391
  %vm3393 = vweird.f32 %v3387
  %vm3394 = vweird.f32 %v3388
  %vm3395 = vmor %vm3393, %vm3394
  %v3396 = vsel %vm3395, %v3388, %v3392
  %v3397 = vand.u32 2147483647, %v3387
  %vm3398 = vcmp.eq.f32.partialorder %v3397, 8.507059e+37
  %v3399 = vand.u32 %v3387, 2147483648
  %v3400 = vor.u32 1.1754944e-38, %v3399
  %v3401 = vsel %vm3398, %v3400, %v3396
  %v3402 = vmul.f32 1.0, %v3401
  %v3403 = vmul.f32 %v3382, %v3361
  %v3404 = vadd.f32 %v1599, %v3403
  %v3405 = vtanh.pop %v3404
  %v3406 = vsub.f32 1.0, %v3402
  %v3407 = vmul.f32 %v3406, %v3405
  %v3408 = vmul.f32 %v3402, %v3299
  %v3409 = vadd.f32 %v3407, %v3408
  %v3411 = vsel %vm68, %v3409, 0
  %3413 = vmatpush.msra.mxu0 0.0
  %3414 = vmatpush.msra.mxu0 0.0
  %3415 = vmatpush.msra.mxu0 0.0
  %3416 = vmatpush.msra.mxu0 0.0
  %3417 = vmatpush.msra.mxu0 0.0
  %3418 = vmatpush.msra.mxu0 0.0
  %3419 = vmatpush.msra.mxu0 0.0
  %3420 = vmatpush.msra.mxu0 0.0
  %3421 = vmatpush.msra.mxu0 0.0
  %3422 = vmatpush.msra.mxu0 0.0
  %3423 = vmatpush.msra.mxu0 0.0
  %3424 = vmatpush.msra.mxu0 0.0
  %3425 = vmatpush.msra.mxu0 %v379
  %3426 = vmatpush.msra.mxu0 %v378
  %3427 = vmatpush.msra.mxu0 %v377
  %3428 = vmatpush.msra.mxu0 %v376
  %3429 = vmatmul.f32.gmra.mxu0 %v3411
  %v3430 = vpop.f32.mrf.mxu0
  %v3431 = vadd.f32 0.0, %v3430
  %3432 = vdwg.mxu0
  %3433 = vmatpush.msra.mxu0 0.0
  %3434 = vmatpush.msra.mxu0 0.0
  %3435 = vmatpush.msra.mxu0 0.0
  %3436 = vmatpush.msra.mxu0 0.0
  %3437 = vmatpush.msra.mxu0 0.0
  %3438 = vmatpush.msra.mxu0 0.0
  %3439 = vmatpush.msra.mxu0 0.0
  %3440 = vmatpush.msra.mxu0 0.0
  %3441 = vmatpush.msra.mxu0 0.0
  %3442 = vmatpush.msra.mxu0 0.0
  %3443 = vmatpush.msra.mxu0 0.0
  %3444 = vmatpush.msra.mxu0 0.0
  %3445 = vmatpush.msra.mxu0 %v383
  %3446 = vmatpush.msra.mxu0 %v382
  %3447 = vmatpush.msra.mxu0 %v381
  %3448 = vmatpush.msra.mxu0 %v380
  %3449 = vmatmul.f32.gmra.mxu0 %v3411
  %v3450 = vpop.f32.mrf.mxu0
  %v3451 = vadd.f32 0.0, %v3450
  %3452 = vdwg.mxu0
  %3453 = vmatpush.msra.mxu0 0.0
  %3454 = vmatpush.msra.mxu0 0.0
  %3455 = vmatpush.msra.mxu0 0.0
  %3456 = vmatpush.msra.mxu0 0.0
  %3457 = vmatpush.msra.mxu0 0.0
  %3458 = vmatpush.msra.mxu0 0.0
  %3459 = vmatpush.msra.mxu0 0.0
  %3460 = vmatpush.msra.mxu0 0.0
  %3461 = vmatpush.msra.mxu0 0.0
  %3462 = vmatpush.msra.mxu0 0.0
  %3463 = vmatpush.msra.mxu0 0.0
  %3464 = vmatpush.msra.mxu0 0.0
  %3465 = vmatpush.msra.mxu0 %v387
  %3466 = vmatpush.msra.mxu0 %v386
  %3467 = vmatpush.msra.mxu0 %v385
  %3468 = vmatpush.msra.mxu0 %v384
  %3469 = vmatmul.f32.gmra.mxu0 %v3411
  %v3470 = vpop.f32.mrf.mxu0
  %v3471 = vadd.f32 %v390, %v3470
  %3472 = vdwg.mxu0
  %v3473 = vadd.f32 %v1686, %v3431
  %v3474 = vxor.u32 %v3473, 2147483648
  %v3475 = vmul.f32 %v3474, 1.442695
  %v3476 = vpow.pop %v3475
  %v3477 = vadd.f32 %v3476, 1.0
  %v3478 = vrcp.pop %v3477
  %v3479 = vmul.f32 %v3477, %v3478
  %v3480 = vsub.f32 1.0, %v3479
  %v3481 = vmul.f32 %v3478, %v3480
  %v3482 = vadd.f32 %v3478, %v3481
  %vm3483 = vweird.f32 %v3477
  %vm3484 = vweird.f32 %v3478
  %vm3485 = vmor %vm3483, %vm3484
  %v3486 = vsel %vm3485, %v3478, %v3482
  %v3487 = vand.u32 2147483647, %v3477
  %vm3488 = vcmp.eq.f32.partialorder %v3487, 8.507059e+37
  %v3489 = vand.u32 %v3477, 2147483648
  %v3490 = vor.u32 1.1754944e-38, %v3489
  %v3491 = vsel %vm3488, %v3490, %v3486
  %v3492 = vmul.f32 1.0, %v3491
  %v3493 = vadd.f32 %v1707, %v3451
  %v3494 = vxor.u32 %v3493, 2147483648
  %v3495 = vmul.f32 %v3494, 1.442695
  %v3496 = vpow.pop %v3495
  %v3497 = vadd.f32 %v3496, 1.0
  %v3498 = vrcp.pop %v3497
  %v3499 = vmul.f32 %v3497, %v3498
  %v3500 = vsub.f32 1.0, %v3499
  %v3501 = vmul.f32 %v3498, %v3500
  %v3502 = vadd.f32 %v3498, %v3501
  %vm3503 = vweird.f32 %v3497
  %vm3504 = vweird.f32 %v3498
  %vm3505 = vmor %vm3503, %vm3504
  %v3506 = vsel %vm3505, %v3498, %v3502
  %v3507 = vand.u32 2147483647, %v3497
  %vm3508 = vcmp.eq.f32.partialorder %v3507, 8.507059e+37
  %v3509 = vand.u32 %v3497, 2147483648
  %v3510 = vor.u32 1.1754944e-38, %v3509
  %v3511 = vsel %vm3508, %v3510, %v3506
  %v3512 = vmul.f32 1.0, %v3511
  %v3513 = vmul.f32 %v3492, %v3471
  %v3514 = vadd.f32 %v1728, %v3513
  %v3515 = vtanh.pop %v3514
  %v3516 = vsub.f32 1.0, %v3512
  %v3517 = vmul.f32 %v3516, %v3515
  %v3518 = vmul.f32 %v3512, %v3409
  %v3519 = vadd.f32 %v3517, %v3518
  %v3520 = vsub.f32 %v2639, %v3519
  %v3521 = vand.u32 2147483647, %v3520
  %v3522 = vld [vmem:[%s11] sm:$0xff]
  %v3523 = vld [vmem:[%s11 + $0x8] sm:$0xff]
  %v3524 = vld [vmem:[%s11 + $0x10] sm:$0xff]
  %v3525 = vld [vmem:[%s11 + $0x18] sm:$0xff]
  %v3526 = vld [vmem:[%s12] sm:$0x1]
  %v3528 = vperm.slane %v3526, 0
  %v3531 = vsel %vm68, %v3521, 0
  %3533 = vmatpush.msra.mxu0 0.0
  %3534 = vmatpush.msra.mxu0 0.0
  %3535 = vmatpush.msra.mxu0 0.0
  %3536 = vmatpush.msra.mxu0 0.0
  %3537 = vmatpush.msra.mxu0 0.0
  %3538 = vmatpush.msra.mxu0 0.0
  %3539 = vmatpush.msra.mxu0 0.0
  %3540 = vmatpush.msra.mxu0 0.0
  %3541 = vmatpush.msra.mxu0 0.0
  %3542 = vmatpush.msra.mxu0 0.0
  %3543 = vmatpush.msra.mxu0 0.0
  %3544 = vmatpush.msra.mxu0 0.0
  %3545 = vmatpush.msra.mxu0 %v3525
  %3546 = vmatpush.msra.mxu0 %v3524
  %3547 = vmatpush.msra.mxu0 %v3523
  %3548 = vmatpush.msra.mxu0 %v3522
  %3549 = vmatmul.f32.gmra.mxu0 %v3531
  %v3550 = vpop.f32.mrf.mxu0
  %v3551 = vadd.f32 %v3528, %v3550
  %3552 = vdwg.mxu0
  %vm3553 = vcmask 15360
  %v3554 = vsel %vm3553, %v3551, -inf
  %3555 = vmax.xlane.f32.xlu0 %v3554
  %v3556 = vpop.xlane.xlu0 %3555
  %v3557 = vsub.f32 %v3551, %v3556
  %v3558 = vmul.f32 %v3557, 1.442695
  %v3559 = vpow.pop %v3558
  %v3560 = vsel %vm3553, %v3559, 0.0
  %3561 = vadd.xlane.f32.xlu0 %v3560
  %v3562 = vpop.xlane.xlu0 %3561
  %v3563 = vrcp.pop %v3562
  %v3564 = vmul.f32 %v3562, %v3563
  %v3565 = vsub.f32 1.0, %v3564
  %v3566 = vmul.f32 %v3563, %v3565
  %v3567 = vadd.f32 %v3563, %v3566
  %vm3568 = vweird.f32 %v3562
  %vm3569 = vweird.f32 %v3563
  %vm3570 = vmor %vm3568, %vm3569
  %v3571 = vsel %vm3570, %v3563, %v3567
  %v3572 = vand.u32 2147483647, %v3562
  %vm3573 = vcmp.eq.f32.partialorder %v3572, 8.507059e+37
  %v3574 = vand.u32 %v3562, 2147483648
  %v3575 = vor.u32 1.1754944e-38, %v3574
  %v3576 = vsel %vm3573, %v3575, %v3571
  %v3577 = vmul.f32 %v3559, %v3576
  %3578 = vst.msk [vmem:[%s13] sm:$0xff] %vm3553, %v3577
  // Predicated region
  $region54: #{matcher_forward.1} parent=0 // pred_check
    _
  $region55: #{matcher_forward.1} parent=0 // pred_check_branch
    %3580 = sbr.rel (0) target = $region57
  $region56: #{matcher_forward.1} parent=0 // pred_region
    _
  $region57: #{matcher_forward.1} parent=0 // pred_fallthru
    _
  // Predicated region
  $region58: #{matcher_forward.1} parent=0 // pred_check
    _
  $region59: #{matcher_forward.1} parent=0 // pred_check_branch
    %3582 = sbr.rel (0) target = $region61
  $region60: #{matcher_forward.1} parent=0 // pred_region
    _
  $region61: #{matcher_forward.1} parent=0 // pred_fallthru
    _

</llo_original>
